<compile_context>
chip_gen: v7x
topology: tpu7x:2x2x1
jax: 0.10.0
libtpu: 0.0.40
codegen_flags: <defaults>
</compile_context>

<pallas_src>
import functools

import jax
import jax.numpy as jnp
from jax.experimental import pallas as pl
from jax.experimental.pallas import tpu as pltpu

_LANES = 128
_EPS = 1e-5
# Per activation block budget (before double buffering); keeps 2*in + 2*out + f32 acc well
# inside even the v7x scoped-VMEM limit while still giving large, lane-dense blocks.
_TILE_BUDGET_BYTES = 2 * 1024 * 1024


def _round_up(x, m):
    return ((x + m - 1) // m) * m


def _pad_last(a, target):
    extra = target - a.shape[-1]
    if extra == 0:
        return a
    return jnp.pad(a, [(0, 0)] * (a.ndim - 1) + [(0, extra)])


def _vmem_limit_bytes():
    """Generation-aware scoped VMEM limit: ~75% of physical (96 MiB v5e/v6e, 48 MiB v7x)."""
    try:
        cap = int(pltpu.get_tpu_info().vmem_capacity_bytes)
        return max(16 * 1024 * 1024, min((cap * 3) // 4, 100 * 1024 * 1024))
    except Exception:
        return 32 * 1024 * 1024


def _pick_tile(extent, unit, row_bytes, budget):
    """Largest divisor of `extent` that is a multiple of `unit` and fits `budget` bytes."""
    cands = [d for d in range(unit, extent + 1, unit) if extent % d == 0] or [extent]
    fit = [d for d in cands if d * row_bytes <= budget]
    return max(fit) if fit else min(cands)


# --------------------- stage 1: conv (kh, 1) over H + BN1 partial sums ---------------------

def _conv_h_kernel(x_ref, w_ref, h_ref, st_ref, *, K):
    """Block (1, H+K-1, Wt, Cin_p), input pre-padded along H on the host.

    K accumulating MXU matmuls (per-tap contraction Cin_p); taps are free leading-axis offsets.
    BN1 partial (sum, sum_sq) are computed from the f32 acc before the bf16 store.
    """
    _, Hp, Wt, Cin_p = x_ref.shape
    H = Hp - (K - 1)
    Cout_p = w_ref.shape[-1]

    acc = jnp.dot(x_ref[0, pl.ds(0, H), :, :].reshape(H * Wt, Cin_p), w_ref[0],
                  preferred_element_type=jnp.float32)                    # (H*Wt, Cout_p) f32
    for t in range(1, K):
        acc = acc + jnp.dot(x_ref[0, pl.ds(t, H), :, :].reshape(H * Wt, Cin_p), w_ref[t],
                            preferred_element_type=jnp.float32)

    h_ref[...] = acc.reshape(1, H, Wt, Cout_p).astype(h_ref.dtype)       # bf16 store
    st_ref[...] = jnp.concatenate(
        [jnp.sum(acc, axis=0, keepdims=True),
         jnp.sum(acc * acc, axis=0, keepdims=True)], axis=0).reshape(1, 1, 2, Cout_p)


def _conv_h_stage(x_p, w_p, K, vmem_limit):
    N, Hp, W, Cin_p = x_p.shape
    H = Hp - (K - 1)
    Cout_p = w_p.shape[-1]

    unit = 16 if W % 16 == 0 else (8 if W % 8 == 0 else W)
    row_bytes = (Hp * Cin_p + H * Cout_p) * 2 + H * Cout_p * 4           # in + out + f32 acc
    Wt = _pick_tile(W, unit, row_bytes, _TILE_BUDGET_BYTES)
    WT = W // Wt

    kernel = functools.partial(_conv_h_kernel, K=K)
    return pl.pallas_call(
        kernel,
        grid=(N, WT),
        in_specs=[
            pl.BlockSpec((1, Hp, Wt, Cin_p), lambda n, j: (n, 0, j, 0)),
            pl.BlockSpec((K, Cin_p, Cout_p), lambda n, j: (0, 0, 0)),
        ],
        out_specs=[
            pl.BlockSpec((1, H, Wt, Cout_p), lambda n, j: (n, 0, j, 0)),
            pl.BlockSpec((1, 1, 2, Cout_p), lambda n, j: (n, j, 0, 0)),
        ],
        out_shape=[
            jax.ShapeDtypeStruct((N, H, W, Cout_p), jnp.bfloat16),
            jax.ShapeDtypeStruct((N, WT, 2, Cout_p), jnp.float32),
        ],
        compiler_params=pltpu.CompilerParams(
            dimension_semantics=("parallel", "parallel"),
            vmem_limit_bytes=vmem_limit),
    )(x_p, w_p)


# --------- stage 2: BN1 affine + ReLU fused with conv (1, kw) over W + BN2 partials ---------

def _conv_w_kernel(h_ref, s_ref, b_ref, w_ref, o_ref, st_ref, *, K, pad):
    """Block (1, Ht, W, Cp): H-tiling is halo-free for a (1,kw) conv.

    BN1 normalize (global training-mode stats folded into per-channel s,b) + ReLU in f32,
    then K accumulating per-tap matmuls; W-shifted taps are built as value slices + zero
    strips so the image border is zero AFTER the activation.
    """
    _, Ht, W, Cp = h_ref.shape
    Cout_p = w_ref.shape[-1]
    M = Ht * W

    a = jnp.maximum(h_ref[0].astype(jnp.float32) * s_ref[...] + b_ref[...], 0.0)  # (Ht,W,Cp)

    acc = None
    for t in range(K):
        dt = t - pad
        if dt == 0:
            at = a
        elif dt > 0:
            at = jnp.concatenate(
                [a[:, dt:, :], jnp.zeros((Ht, dt, Cp), jnp.float32)], axis=1)
        else:
            at = jnp.concatenate(
                [jnp.zeros((Ht, -dt, Cp), jnp.float32), a[:, :dt, :]], axis=1)
        p = jnp.dot(at.reshape(M, Cp).astype(w_ref.dtype), w_ref[t],
                    preferred_element_type=jnp.float32)                  # (M, Cout_p) f32
        acc = p if acc is None else acc + p

    o_ref[...] = acc.reshape(1, Ht, W, Cout_p).astype(o_ref.dtype)       # bf16 store
    st_ref[...] = jnp.concatenate(
        [jnp.sum(acc, axis=0, keepdims=True),
         jnp.sum(acc * acc, axis=0, keepdims=True)], axis=0).reshape(1, 1, 2, Cout_p)


def _conv_w_stage(h1, s1, b1, w_p, K, vmem_limit):
    N, H, W, Cp = h1.shape
    Cout_p = w_p.shape[-1]
    pad = (K - 1) // 2

    row_bytes = W * (Cp + Cout_p) * 2 + W * Cp * 4 + W * Cout_p * 4      # in + out + f32 temps
    Ht = _pick_tile(H, 1, row_bytes, _TILE_BUDGET_BYTES)
    HT = H // Ht

    kernel = functools.partial(_conv_w_kernel, K=K, pad=pad)
    return pl.pallas_call(
        kernel,
        grid=(N, HT),
        in_specs=[
            pl.BlockSpec((1, Ht, W, Cp), lambda n, j: (n, j, 0, 0)),
            pl.BlockSpec((1, Cp), lambda n, j: (0, 0)),
            pl.BlockSpec((1, Cp), lambda n, j: (0, 0)),
            pl.BlockSpec((K, Cp, Cout_p), lambda n, j: (0, 0, 0)),
        ],
        out_specs=[
            pl.BlockSpec((1, Ht, W, Cout_p), lambda n, j: (n, j, 0, 0)),
            pl.BlockSpec((1, 1, 2, Cout_p), lambda n, j: (n, j, 0, 0)),
        ],
        out_shape=[
            jax.ShapeDtypeStruct((N, H, W, Cout_p), jnp.bfloat16),
            jax.ShapeDtypeStruct((N, HT, 2, Cout_p), jnp.float32),
        ],
        compiler_params=pltpu.CompilerParams(
            dimension_semantics=("parallel", "parallel"),
            vmem_limit_bytes=vmem_limit),
    )(h1, s1, b1, w_p)


# ----------------------------------- host-side glue ----------------------------------------

def _bn_affine(partial_stats, gamma_p, beta_p, count, eps):
    """Fold training-mode BN (batch mean, biased variance) into per-channel scale/shift."""
    tot = jnp.sum(partial_stats.astype(jnp.float32), axis=(0, 1))   # (2, Cp): [sum, sum_sq]
    mean = tot[0] / count
    var = jnp.maximum(tot[1] / count - mean * mean, 0.0)            # biased variance, f32 sums
    s = gamma_p * jax.lax.rsqrt(var + eps)
    b = beta_p - mean * s
    return s.reshape(1, -1), b.reshape(1, -1)                       # padded lanes: gamma=0 -> 0


def separated_conv_forward(x_nchw, params, final_activation=True, eps=_EPS):
    """SeparatedConv.forward((x, final_activation)) with height_first=True, stride=1,
    batch_norm=True (training-mode batch statistics)."""
    N, Cin, H, W = x_nchw.shape
    kh, _, Cout = params["w1"].shape
    kw = params["w2"].shape[0]
    Cin_p = _round_up(Cin, _LANES)
    Cout_p = _round_up(Cout, _LANES)
    pad_h = (kh - 1) // 2
    vmem_limit = _vmem_limit_bytes()

    # NCHW -> NHWC, zero H-halo, zero channel pad, bf16 cast: one fused XLA pass over x.
    x_nhwc = jnp.transpose(x_nchw, (0, 2, 3, 1)).astype(jnp.bfloat16)
    x_p = jnp.pad(x_nhwc, ((0, 0), (pad_h, pad_h), (0, 0), (0, Cin_p - Cin)))

    # Weights packed tap-major (K, Cin_p, Cout_p) in bf16; padded rows/cols stay zero so padded
    # lanes never dilute BN statistics.
    w1_p = jnp.zeros((kh, Cin_p, Cout_p), jnp.float32)
    w1_p = w1_p.at[:, :Cin, :Cout].set(params["w1"]).astype(jnp.bfloat16)
    w2_p = jnp.zeros((kw, Cout_p, Cout_p), jnp.float32)
    w2_p = w2_p.at[:, :Cout, :Cout].set(params["w2"]).astype(jnp.bfloat16)
    g1 = _pad_last(params["gamma1"].astype(jnp.float32), Cout_p)
    be1 = _pad_last(params["beta1"].astype(jnp.float32), Cout_p)
    g2 = _pad_last(params["gamma2"].astype(jnp.float32), Cout_p)
    be2 = _pad_last(params["beta2"].astype(jnp.float32), Cout_p)

    count = N * H * W

    # Stage 1: conv (kh,1) along H + BN1 partial sums (f32 acc, single sweep).
    h1, st1 = _conv_h_stage(x_p, w1_p, kh, vmem_limit)
    s1, b1 = _bn_affine(st1, g1, be1, count, eps)

    # Stage 2: BN1 normalize + ReLU1 fused with conv (1,kw) along W + BN2 partial sums.
    h2, st2 = _conv_w_stage(h1, s1, b1, w2_p, kw, vmem_limit)
    s2, b2 = _bn_affine(st2, g2, be2, count, eps)

    # BN2 affine (+ ReLU2 iff final_activation) fused by XLA with the channel un-pad and the
    # NHWC->NCHW transpose: one read of h2, one write of the output (no stage-3 pallas_call).
    y = h2.astype(jnp.float32) * s2.reshape(1, 1, 1, -1) + b2.reshape(1, 1, 1, -1)
    if final_activation:
        y = jnp.maximum(y, 0.0)
    return jnp.transpose(y[..., :Cout], (0, 3, 1, 2))


# ------------------------------------- self-check ------------------------------------------

def _reference(x_nchw, params, final_activation, eps=_EPS):
    """Pure-JAX f32 reference matching the PyTorch module (training-mode BN)."""
    kh = params["w1"].shape[0]
    kw = params["w2"].shape[0]
    w1 = jnp.transpose(params["w1"], (2, 1, 0))[..., None]       # (Cout, Cin, kh, 1)
    w2 = jnp.transpose(params["w2"], (2, 1, 0))[:, :, None, :]   # (Cout, Cout, 1, kw)

    def bn(h, gamma, beta):
        mean = jnp.mean(h, axis=(0, 2, 3), keepdims=True)
        var = jnp.mean((h - mean) ** 2, axis=(0, 2, 3), keepdims=True)
        return ((h - mean) * jax.lax.rsqrt(var + eps) * gamma.reshape(1, -1, 1, 1)
                + beta.reshape(1, -1, 1, 1))

    dn = ("NCHW", "OIHW", "NCHW")
    h = jax.lax.conv_general_dilated(
        x_nchw, w1, (1, 1), (((kh - 1) // 2, (kh - 1) // 2), (0, 0)),
        dimension_numbers=dn, precision=jax.lax.Precision.HIGHEST)
    h = jnp.maximum(bn(h, params["gamma1"], params["beta1"]), 0.0)
    h = jax.lax.conv_general_dilated(
        h, w2, (1, 1), ((0, 0), ((kw - 1) // 2, (kw - 1) // 2)),
        dimension_numbers=dn, precision=jax.lax.Precision.HIGHEST)
    h = bn(h, params["gamma2"], params["beta2"])
    return jnp.maximum(h, 0.0) if final_activation else h


if __name__ == "__main__":
    N, Cin, Cout, H, W, kh, kw = 2, 4, 8, 16, 16, 3, 3

    key = jax.random.PRNGKey(0)
    kx, k1, k2 = jax.random.split(key, 3)
    # conv1.weight (Cout,Cin,kh,1) stored as (kh,Cin,Cout); conv2.weight (Cout,Cout,1,kw) as
    # (kw,Cout,Cout); BN gamma=1, beta=0 (PyTorch defaults), eps=1e-5, no conv bias.
    params = {
        "w1": 0.1 * jax.random.normal(k1, (kh, Cin, Cout), jnp.float32),
        "gamma1": jnp.ones((Cout,), jnp.float32),
        "beta1": jnp.zeros((Cout,), jnp.float32),
        "w2": 0.1 * jax.random.normal(k2, (kw, Cout, Cout), jnp.float32),
        "gamma2": jnp.ones((Cout,), jnp.float32),
        "beta2": jnp.zeros((Cout,), jnp.float32),
    }
    x = jax.random.normal(kx, (N, Cin, H, W), jnp.float32)

    fwd = jax.jit(lambda xx, pp: separated_conv_forward(xx, pp, final_activation=True))
    out = jax.block_until_ready(fwd(x, params))

    assert out.shape == (N, Cout, H, W), out.shape
    assert bool(jnp.all(jnp.isfinite(out)))

    # bf16 activations/weights vs. an f32 HIGHEST-precision reference: allow ~bf16-level error
    # on the unit-variance (BN-normalized) outputs.
    ref = _reference(x, params, True)
    err = float(jnp.max(jnp.abs(out - ref)))
    assert err < 5e-2, f"max |pallas - reference| = {err}"

    print("KERNEL_OK")
</pallas_src>

<mosaic_0001>
module attributes {stable_mosaic.version = 11 : i64} {
  func.func @_conv_h_kernel(%arg0: i32, %arg1: i32, %arg2: memref<1x18x16x128xbf16, #tpu.memory_space<vmem>>, %arg3: memref<3x128x128xbf16, #tpu.memory_space<vmem>>, %arg4: memref<1x16x16x128xbf16, #tpu.memory_space<vmem>>, %arg5: memref<1x1x2x128xf32, #tpu.memory_space<vmem>>) attributes {dimension_semantics = [#tpu.dimension_semantics<parallel>, #tpu.dimension_semantics<parallel>], iteration_bounds = array<i64: 2, 1>, scalar_prefetch = 0 : i64, scratch_operands = 0 : i64, tpu.core_type = #tpu.core_type<tc>, window_params = [{transform_indices = @transform_0, window_bounds = array<i64: 1, 18, 16, 128>}, {pipeline_mode = #tpu.pipeline_mode<synchronous>, transform_indices = @transform_1, window_bounds = array<i64: 3, 128, 128>}, {transform_indices = @transform_2, window_bounds = array<i64: 1, 16, 16, 128>}, {transform_indices = @transform_3, window_bounds = array<i64: 1, 1, 2, 128>}]} {
    %c0 = arith.constant 0 : index
    %c0_0 = arith.constant 0 : index
    %c0_1 = arith.constant 0 : index
    %c0_2 = arith.constant 0 : index
    %0 = vector.load %arg2[%c0, %c0_0, %c0_1, %c0_2] : memref<1x18x16x128xbf16, #tpu.memory_space<vmem>>, vector<1x16x16x128xbf16>
    %1 = vector.shape_cast %0 : vector<1x16x16x128xbf16> to vector<16x16x128xbf16>
    %2 = vector.shape_cast %1 : vector<16x16x128xbf16> to vector<256x128xbf16>
    %c0_3 = arith.constant 0 : index
    %c0_4 = arith.constant 0 : index
    %c0_5 = arith.constant 0 : index
    %3 = vector.load %arg3[%c0_3, %c0_4, %c0_5] : memref<3x128x128xbf16, #tpu.memory_space<vmem>>, vector<1x128x128xbf16>
    %4 = vector.shape_cast %3 : vector<1x128x128xbf16> to vector<128x128xbf16>
    %cst = arith.constant dense<0.000000e+00> : vector<256x128xf32>
    %5 = tpu.matmul %2, %4, %cst {dimension_numbers = #tpu.dot_dimension_numbers<[1], [0], [0], [1], [0, 0, 1, 1], [], []>} : vector<256x128xbf16>, vector<128x128xbf16>, vector<256x128xf32> -> vector<256x128xf32>
    %c0_6 = arith.constant 0 : index
    %c1 = arith.constant 1 : index
    %c0_7 = arith.constant 0 : index
    %c0_8 = arith.constant 0 : index
    %6 = vector.load %arg2[%c0_6, %c1, %c0_7, %c0_8] : memref<1x18x16x128xbf16, #tpu.memory_space<vmem>>, vector<1x16x16x128xbf16>
    %7 = vector.shape_cast %6 : vector<1x16x16x128xbf16> to vector<16x16x128xbf16>
    %8 = vector.shape_cast %7 : vector<16x16x128xbf16> to vector<256x128xbf16>
    %c1_9 = arith.constant 1 : index
    %c0_10 = arith.constant 0 : index
    %c0_11 = arith.constant 0 : index
    %9 = vector.load %arg3[%c1_9, %c0_10, %c0_11] : memref<3x128x128xbf16, #tpu.memory_space<vmem>>, vector<1x128x128xbf16>
    %10 = vector.shape_cast %9 : vector<1x128x128xbf16> to vector<128x128xbf16>
    %cst_12 = arith.constant dense<0.000000e+00> : vector<256x128xf32>
    %11 = tpu.matmul %8, %10, %cst_12 {dimension_numbers = #tpu.dot_dimension_numbers<[1], [0], [0], [1], [0, 0, 1, 1], [], []>} : vector<256x128xbf16>, vector<128x128xbf16>, vector<256x128xf32> -> vector<256x128xf32>
    %12 = arith.addf %5, %11 : vector<256x128xf32>
    %c0_13 = arith.constant 0 : index
    %c2 = arith.constant 2 : index
    %c0_14 = arith.constant 0 : index
    %c0_15 = arith.constant 0 : index
    %13 = vector.load %arg2[%c0_13, %c2, %c0_14, %c0_15] : memref<1x18x16x128xbf16, #tpu.memory_space<vmem>>, vector<1x16x16x128xbf16>
    %14 = vector.shape_cast %13 : vector<1x16x16x128xbf16> to vector<16x16x128xbf16>
    %15 = vector.shape_cast %14 : vector<16x16x128xbf16> to vector<256x128xbf16>
    %c2_16 = arith.constant 2 : index
    %c0_17 = arith.constant 0 : index
    %c0_18 = arith.constant 0 : index
    %16 = vector.load %arg3[%c2_16, %c0_17, %c0_18] : memref<3x128x128xbf16, #tpu.memory_space<vmem>>, vector<1x128x128xbf16>
    %17 = vector.shape_cast %16 : vector<1x128x128xbf16> to vector<128x128xbf16>
    %cst_19 = arith.constant dense<0.000000e+00> : vector<256x128xf32>
    %18 = tpu.matmul %15, %17, %cst_19 {dimension_numbers = #tpu.dot_dimension_numbers<[1], [0], [0], [1], [0, 0, 1, 1], [], []>} : vector<256x128xbf16>, vector<128x128xbf16>, vector<256x128xf32> -> vector<256x128xf32>
    %19 = arith.addf %12, %18 : vector<256x128xf32>
    %20 = vector.shape_cast %19 : vector<256x128xf32> to vector<1x16x16x128xf32>
    %21 = arith.truncf %20 : vector<1x16x16x128xf32> to vector<1x16x16x128xbf16>
    %c0_20 = arith.constant 0 : index
    %c0_21 = arith.constant 0 : index
    %c0_22 = arith.constant 0 : index
    %c0_23 = arith.constant 0 : index
    %22 = vector.load %arg4[%c0_20, %c0_21, %c0_22, %c0_23] : memref<1x16x16x128xbf16, #tpu.memory_space<vmem>>, vector<1x16x16x128xbf16>
    tpu.vector_store %arg4[%c0_20, %c0_21, %c0_22, %c0_23], %21 {strides = array<i32>} : memref<1x16x16x128xbf16, #tpu.memory_space<vmem>>, vector<1x16x16x128xbf16>,
    %cst_24 = arith.constant dense<0.000000e+00> : vector<128xf32>
    %23 = vector.multi_reduction <add>, %19, %cst_24 [0] : vector<256x128xf32> to vector<128xf32>
    %24 = vector.shape_cast %23 : vector<128xf32> to vector<1x128xf32>
    %25 = arith.mulf %19, %19 : vector<256x128xf32>
    %cst_25 = arith.constant dense<0.000000e+00> : vector<128xf32>
    %26 = vector.multi_reduction <add>, %25, %cst_25 [0] : vector<256x128xf32> to vector<128xf32>
    %27 = vector.shape_cast %26 : vector<128xf32> to vector<1x128xf32>
    %28 = tpu.concatenate %24, %27 in 0 : vector<1x128xf32>, vector<1x128xf32> -> vector<2x128xf32>
    %29 = vector.shape_cast %28 : vector<2x128xf32> to vector<1x1x2x128xf32>
    %c0_26 = arith.constant 0 : index
    %c0_27 = arith.constant 0 : index
    %c0_28 = arith.constant 0 : index
    %c0_29 = arith.constant 0 : index
    %30 = vector.load %arg5[%c0_26, %c0_27, %c0_28, %c0_29] : memref<1x1x2x128xf32, #tpu.memory_space<vmem>>, vector<1x1x2x128xf32>
    tpu.vector_store %arg5[%c0_26, %c0_27, %c0_28, %c0_29], %29 {strides = array<i32>} : memref<1x1x2x128xf32, #tpu.memory_space<vmem>>, vector<1x1x2x128xf32>,
    return
  }
  func.func @transform_0(%arg0: i32, %arg1: i32) -> (i32, i32, i32, i32) {
    %c0_i32 = arith.constant 0 : i32
    %c0_i32_0 = arith.constant 0 : i32
    %c0_i32_1 = arith.constant 0 : i32
    return %arg0, %c0_i32, %arg1, %c0_i32_0 : i32, i32, i32, i32
  }
  func.func @transform_1(%arg0: i32, %arg1: i32) -> (i32, i32, i32) {
    %c0_i32 = arith.constant 0 : i32
    %c0_i32_0 = arith.constant 0 : i32
    %c0_i32_1 = arith.constant 0 : i32
    %c0_i32_2 = arith.constant 0 : i32
    return %c0_i32, %c0_i32_0, %c0_i32_1 : i32, i32, i32
  }
  func.func @transform_2(%arg0: i32, %arg1: i32) -> (i32, i32, i32, i32) {
    %c0_i32 = arith.constant 0 : i32
    %c0_i32_0 = arith.constant 0 : i32
    %c0_i32_1 = arith.constant 0 : i32
    return %arg0, %c0_i32, %arg1, %c0_i32_0 : i32, i32, i32, i32
  }
  func.func @transform_3(%arg0: i32, %arg1: i32) -> (i32, i32, i32, i32) {
    %c0_i32 = arith.constant 0 : i32
    %c0_i32_0 = arith.constant 0 : i32
    %c0_i32_1 = arith.constant 0 : i32
    return %arg0, %arg1, %c0_i32, %c0_i32_0 : i32, i32, i32, i32
  }
}

module attributes {stable_mosaic.version = 11 : i64} {
  func.func @_conv_w_kernel(%arg0: i32, %arg1: i32, %arg2: memref<1x16x16x128xbf16, #tpu.memory_space<vmem>>, %arg3: memref<1x128xf32, #tpu.memory_space<vmem>>, %arg4: memref<1x128xf32, #tpu.memory_space<vmem>>, %arg5: memref<3x128x128xbf16, #tpu.memory_space<vmem>>, %arg6: memref<1x16x16x128xbf16, #tpu.memory_space<vmem>>, %arg7: memref<1x1x2x128xf32, #tpu.memory_space<vmem>>) attributes {dimension_semantics = [#tpu.dimension_semantics<parallel>, #tpu.dimension_semantics<parallel>], iteration_bounds = array<i64: 2, 1>, scalar_prefetch = 0 : i64, scratch_operands = 0 : i64, tpu.core_type = #tpu.core_type<tc>, window_params = [{transform_indices = @transform_0, window_bounds = array<i64: 1, 16, 16, 128>}, {pipeline_mode = #tpu.pipeline_mode<synchronous>, transform_indices = @transform_1, window_bounds = array<i64: 1, 128>}, {pipeline_mode = #tpu.pipeline_mode<synchronous>, transform_indices = @transform_2, window_bounds = array<i64: 1, 128>}, {pipeline_mode = #tpu.pipeline_mode<synchronous>, transform_indices = @transform_3, window_bounds = array<i64: 3, 128, 128>}, {transform_indices = @transform_4, window_bounds = array<i64: 1, 16, 16, 128>}, {transform_indices = @transform_5, window_bounds = array<i64: 1, 1, 2, 128>}]} {
    %c0 = arith.constant 0 : index
    %c0_0 = arith.constant 0 : index
    %c0_1 = arith.constant 0 : index
    %c0_2 = arith.constant 0 : index
    %0 = vector.load %arg2[%c0, %c0_0, %c0_1, %c0_2] : memref<1x16x16x128xbf16, #tpu.memory_space<vmem>>, vector<1x16x16x128xbf16>
    %1 = vector.shape_cast %0 : vector<1x16x16x128xbf16> to vector<16x16x128xbf16>
    %2 = arith.extf %1 : vector<16x16x128xbf16> to vector<16x16x128xf32>
    %c0_3 = arith.constant 0 : index
    %c0_4 = arith.constant 0 : index
    %3 = vector.load %arg3[%c0_3, %c0_4] : memref<1x128xf32, #tpu.memory_space<vmem>>, vector<1x128xf32>
    %4 = vector.shape_cast %3 : vector<1x128xf32> to vector<1x1x128xf32>
    %5 = vector.broadcast %4 : vector<1x1x128xf32> to vector<16x16x128xf32>
    %6 = arith.mulf %2, %5 : vector<16x16x128xf32>
    %c0_5 = arith.constant 0 : index
    %c0_6 = arith.constant 0 : index
    %7 = vector.load %arg4[%c0_5, %c0_6] : memref<1x128xf32, #tpu.memory_space<vmem>>, vector<1x128xf32>
    %8 = vector.shape_cast %7 : vector<1x128xf32> to vector<1x1x128xf32>
    %9 = vector.broadcast %8 : vector<1x1x128xf32> to vector<16x16x128xf32>
    %10 = arith.addf %6, %9 : vector<16x16x128xf32>
    %cst = arith.constant 0.000000e+00 : f32
    %11 = vector.broadcast %cst : f32 to vector<16x16x128xf32>
    %12 = arith.maximumf %10, %11 : vector<16x16x128xf32>
    %cst_7 = arith.constant 0.000000e+00 : f32
    %13 = vector.broadcast %cst_7 : f32 to vector<16x1x128xf32>
    %14 = vector.extract_strided_slice %12 {offsets = [0, 0, 0], sizes = [16, 15, 128], strides = [1, 1, 1]} : vector<16x16x128xf32> to vector<16x15x128xf32>
    %15 = tpu.concatenate %13, %14 in 1 : vector<16x1x128xf32>, vector<16x15x128xf32> -> vector<16x16x128xf32>
    %16 = vector.shape_cast %15 : vector<16x16x128xf32> to vector<256x128xf32>
    %17 = arith.truncf %16 : vector<256x128xf32> to vector<256x128xbf16>
    %c0_8 = arith.constant 0 : index
    %c0_9 = arith.constant 0 : index
    %c0_10 = arith.constant 0 : index
    %18 = vector.load %arg5[%c0_8, %c0_9, %c0_10] : memref<3x128x128xbf16, #tpu.memory_space<vmem>>, vector<1x128x128xbf16>
    %19 = vector.shape_cast %18 : vector<1x128x128xbf16> to vector<128x128xbf16>
    %cst_11 = arith.constant dense<0.000000e+00> : vector<256x128xf32>
    %20 = tpu.matmul %17, %19, %cst_11 {dimension_numbers = #tpu.dot_dimension_numbers<[1], [0], [0], [1], [0, 0, 1, 1], [], []>} : vector<256x128xbf16>, vector<128x128xbf16>, vector<256x128xf32> -> vector<256x128xf32>
    %21 = vector.shape_cast %12 : vector<16x16x128xf32> to vector<256x128xf32>
    %22 = arith.truncf %21 : vector<256x128xf32> to vector<256x128xbf16>
    %c1 = arith.constant 1 : index
    %c0_12 = arith.constant 0 : index
    %c0_13 = arith.constant 0 : index
    %23 = vector.load %arg5[%c1, %c0_12, %c0_13] : memref<3x128x128xbf16, #tpu.memory_space<vmem>>, vector<1x128x128xbf16>
    %24 = vector.shape_cast %23 : vector<1x128x128xbf16> to vector<128x128xbf16>
    %cst_14 = arith.constant dense<0.000000e+00> : vector<256x128xf32>
    %25 = tpu.matmul %22, %24, %cst_14 {dimension_numbers = #tpu.dot_dimension_numbers<[1], [0], [0], [1], [0, 0, 1, 1], [], []>} : vector<256x128xbf16>, vector<128x128xbf16>, vector<256x128xf32> -> vector<256x128xf32>
    %26 = arith.addf %20, %25 : vector<256x128xf32>
    %27 = vector.extract_strided_slice %12 {offsets = [0, 1, 0], sizes = [16, 15, 128], strides = [1, 1, 1]} : vector<16x16x128xf32> to vector<16x15x128xf32>
    %cst_15 = arith.constant 0.000000e+00 : f32
    %28 = vector.broadcast %cst_15 : f32 to vector<16x1x128xf32>
    %29 = tpu.concatenate %27, %28 in 1 : vector<16x15x128xf32>, vector<16x1x128xf32> -> vector<16x16x128xf32>
    %30 = vector.shape_cast %29 : vector<16x16x128xf32> to vector<256x128xf32>
    %31 = arith.truncf %30 : vector<256x128xf32> to vector<256x128xbf16>
    %c2 = arith.constant 2 : index
    %c0_16 = arith.constant 0 : index
    %c0_17 = arith.constant 0 : index
    %32 = vector.load %arg5[%c2, %c0_16, %c0_17] : memref<3x128x128xbf16, #tpu.memory_space<vmem>>, vector<1x128x128xbf16>
    %33 = vector.shape_cast %32 : vector<1x128x128xbf16> to vector<128x128xbf16>
    %cst_18 = arith.constant dense<0.000000e+00> : vector<256x128xf32>
    %34 = tpu.matmul %31, %33, %cst_18 {dimension_numbers = #tpu.dot_dimension_numbers<[1], [0], [0], [1], [0, 0, 1, 1], [], []>} : vector<256x128xbf16>, vector<128x128xbf16>, vector<256x128xf32> -> vector<256x128xf32>
    %35 = arith.addf %26, %34 : vector<256x128xf32>
    %36 = vector.shape_cast %35 : vector<256x128xf32> to vector<1x16x16x128xf32>
    %37 = arith.truncf %36 : vector<1x16x16x128xf32> to vector<1x16x16x128xbf16>
    %c0_19 = arith.constant 0 : index
    %c0_20 = arith.constant 0 : index
    %c0_21 = arith.constant 0 : index
    %c0_22 = arith.constant 0 : index
    %38 = vector.load %arg6[%c0_19, %c0_20, %c0_21, %c0_22] : memref<1x16x16x128xbf16, #tpu.memory_space<vmem>>, vector<1x16x16x128xbf16>
    tpu.vector_store %arg6[%c0_19, %c0_20, %c0_21, %c0_22], %37 {strides = array<i32>} : memref<1x16x16x128xbf16, #tpu.memory_space<vmem>>, vector<1x16x16x128xbf16>,
    %cst_23 = arith.constant dense<0.000000e+00> : vector<128xf32>
    %39 = vector.multi_reduction <add>, %35, %cst_23 [0] : vector<256x128xf32> to vector<128xf32>
    %40 = vector.shape_cast %39 : vector<128xf32> to vector<1x128xf32>
    %41 = arith.mulf %35, %35 : vector<256x128xf32>
    %cst_24 = arith.constant dense<0.000000e+00> : vector<128xf32>
    %42 = vector.multi_reduction <add>, %41, %cst_24 [0] : vector<256x128xf32> to vector<128xf32>
    %43 = vector.shape_cast %42 : vector<128xf32> to vector<1x128xf32>
    %44 = tpu.concatenate %40, %43 in 0 : vector<1x128xf32>, vector<1x128xf32> -> vector<2x128xf32>
    %45 = vector.shape_cast %44 : vector<2x128xf32> to vector<1x1x2x128xf32>
    %c0_25 = arith.constant 0 : index
    %c0_26 = arith.constant 0 : index
    %c0_27 = arith.constant 0 : index
    %c0_28 = arith.constant 0 : index
    %46 = vector.load %arg7[%c0_25, %c0_26, %c0_27, %c0_28] : memref<1x1x2x128xf32, #tpu.memory_space<vmem>>, vector<1x1x2x128xf32>
    tpu.vector_store %arg7[%c0_25, %c0_26, %c0_27, %c0_28], %45 {strides = array<i32>} : memref<1x1x2x128xf32, #tpu.memory_space<vmem>>, vector<1x1x2x128xf32>,
    return
  }
  func.func @transform_0(%arg0: i32, %arg1: i32) -> (i32, i32, i32, i32) {
    %c0_i32 = arith.constant 0 : i32
    %c0_i32_0 = arith.constant 0 : i32
    %c0_i32_1 = arith.constant 0 : i32
    return %arg0, %arg1, %c0_i32, %c0_i32_0 : i32, i32, i32, i32
  }
  func.func @transform_1(%arg0: i32, %arg1: i32) -> (i32, i32) {
    %c0_i32 = arith.constant 0 : i32
    %c0_i32_0 = arith.constant 0 : i32
    %c0_i32_1 = arith.constant 0 : i32
    return %c0_i32, %c0_i32_0 : i32, i32
  }
  func.func @transform_2(%arg0: i32, %arg1: i32) -> (i32, i32) {
    %c0_i32 = arith.constant 0 : i32
    %c0_i32_0 = arith.constant 0 : i32
    %c0_i32_1 = arith.constant 0 : i32
    return %c0_i32, %c0_i32_0 : i32, i32
  }
  func.func @transform_3(%arg0: i32, %arg1: i32) -> (i32, i32, i32) {
    %c0_i32 = arith.constant 0 : i32
    %c0_i32_0 = arith.constant 0 : i32
    %c0_i32_1 = arith.constant 0 : i32
    %c0_i32_2 = arith.constant 0 : i32
    return %c0_i32, %c0_i32_0, %c0_i32_1 : i32, i32, i32
  }
  func.func @transform_4(%arg0: i32, %arg1: i32) -> (i32, i32, i32, i32) {
    %c0_i32 = arith.constant 0 : i32
    %c0_i32_0 = arith.constant 0 : i32
    %c0_i32_1 = arith.constant 0 : i32
    return %arg0, %arg1, %c0_i32, %c0_i32_0 : i32, i32, i32, i32
  }
  func.func @transform_5(%arg0: i32, %arg1: i32) -> (i32, i32, i32, i32) {
    %c0_i32 = arith.constant 0 : i32
    %c0_i32_0 = arith.constant 0 : i32
    %c0_i32_1 = arith.constant 0 : i32
    return %arg0, %arg1, %c0_i32, %c0_i32_0 : i32, i32, i32, i32
  }
}

</mosaic_0001>

<llo_original>
// kernel: _lambda_.2
$region0: #{_lambda_.2}
  #allocation0 [shape = 'u32[]', space=smem, size = 0x4, offset = 0x4, fixed_abs, tag = 'smem constant byte address 0x4 - core index']
  #allocation1 [shape = 'u32[144,128]{1,0:T(1,128)}', space=vmem, size = 0x12000, scoped, tag = 'internal scratch']
  %s0 = inlined_call_operand.vmem [shape: bf16[2,18,16,128], index: 0, kind: input, shape index: {}]
  %s1 = inlined_call_operand.vmem [shape: bf16[3,128,128], index: 1, kind: input, shape index: {}]
  %s2 = inlined_call_operand.vmem [shape: bf16[2,16,16,128], index: 2, kind: output, shape index: {0}]
  %s3 = inlined_call_operand.vmem [shape: f32[2,1,2,128], index: 3, kind: output, shape index: {1}]
  %4 = xla_tuple %s2, %s3
  %s5 = sld [smem:[#allocation0]]
  $region49: #{_lambda_.2} parent=0
    _
  %s7 = ssub.s32 1, %s5
  %s8 = scalar_select 0, %s7, %s5
  loop: start=0, step=1, limit=4
  $region2: #{_lambda_.2} parent=0 // loop_pre_header
    _
  $region3: #{_lambda_.2} parent=0 // loop_header
    %s10 = sphi 0, %s14
    %p11 = scmp.ge.s32.totalorder %s10, 4
    %s17 = sphi 0, %s29
    %s18 = sphi 0, %s25
    %s19 = sphi 0, %s17
    %s20 = sphi 0, %s18
    %s21 = sphi 0, %s19
    %s22 = sphi 0, %s20
    %s34 = sphi 0, %s36
    %s37 = sphi 0, %s34
    %s38 = sphi 0, %s37
    %s54 = sphi 0, %s38
    %s58 = sphi 0, %s58
    %s60 = sphi 0, %s58
    %s61 = sphi 0, %s60
    %s75 = sphi 0, %s61
    %s83 = sphi 0, %s85
    %s86 = sphi 0, %s83
    %s87 = sphi 0, %s86
    %s103 = sphi 0, %s87
    %s111 = sphi 0, %s113
    %s114 = sphi 0, %s111
    %s115 = sphi 0, %s114
    %s131 = sphi 0, %s115
  $region4: #{_lambda_.2} parent=0 // loop_header_branch
    %13 = sbr.rel (%p11) target = $region8
  $region5: #{_lambda_.2} parent=0 // loop_body
    %s15 = ssub.s32 %s10, 1
    %s16 = ssub.s32 %s10, 2
    %s23 = sadd.s32 1, %s18
    %p24 = scmp.ge.s32.totalorder %s23, 1
    %s25 = scalar_select %p24, 0, %s23
    %s26 = sadd.s32 1, %s17
    %s27 = scalar_select %p24, %s26, %s17
    %p28 = scmp.ge.s32.totalorder %s27, 2
    %s29 = scalar_select %p28, 0, %s27
    %s30 = ssub.s32 %s17, %s29
    %s31 = ssub.s32 %s18, %s25
    %s32 = sor.u32 %s30, %s31
    %p33 = scmp.eq.s32.totalorder %s32, 0
    %s35 = sadd.s32 %s34, 1
    %s36 = scalar_select %p33, %s34, %s35
    %p39 = pneg %p33
    %p40 = scmp.eq.s32.totalorder %s10, 1
    %p41 = por %p39, %p40
    %p42 = scmp.ne.s32.totalorder %s34, %s37
    %p43 = scmp.eq.s32.totalorder %s10, 0
    %p44 = por %p42, %p43
    %p45 = scmp.ne.s32.totalorder %s34, %s37
    %p46 = scmp.eq.s32.totalorder %s15, 1
    %p47 = por %p45, %p46
    %p48 = scmp.ne.s32.totalorder %s37, %s38
    %p49 = scmp.eq.s32.totalorder %s15, 0
    %p50 = por %p48, %p49
    %p51 = scmp.ne.s32.totalorder %s37, %s38
    %p52 = scmp.eq.s32.totalorder %s16, 1
    %p53 = por %p51, %p52
    %p55 = scmp.ne.s32.totalorder %s38, %s54
    %p56 = scmp.eq.s32.totalorder %s16, 0
    %p57 = por %p55, %p56
    %s59 = sadd.s32 %s58, 1
    %p62 = scmp.eq.s32.totalorder %s10, 1
    %p63 = scmp.ne.s32.totalorder %s58, %s60
    %p64 = scmp.eq.s32.totalorder %s10, 0
    %p65 = por %p63, %p64
    %p66 = scmp.ne.s32.totalorder %s58, %s60
    %p67 = scmp.eq.s32.totalorder %s15, 1
    %p68 = por %p66, %p67
    %p69 = scmp.ne.s32.totalorder %s60, %s61
    %p70 = scmp.eq.s32.totalorder %s15, 0
    %p71 = por %p69, %p70
    %p72 = scmp.ne.s32.totalorder %s60, %s61
    %p73 = scmp.eq.s32.totalorder %s16, 1
    %p74 = por %p72, %p73
    %p76 = scmp.ne.s32.totalorder %s61, %s75
    %p77 = scmp.eq.s32.totalorder %s16, 0
    %p78 = por %p76, %p77
    %s79 = ssub.s32 %s17, %s29
    %s80 = ssub.s32 %s18, %s25
    %s81 = sor.u32 %s79, %s80
    %p82 = scmp.eq.s32.totalorder %s81, 0
    %s84 = sadd.s32 %s83, 1
    %s85 = scalar_select %p82, %s83, %s84
    %p88 = pneg %p82
    %p89 = scmp.eq.s32.totalorder %s10, 1
    %p90 = por %p88, %p89
    %p91 = scmp.ne.s32.totalorder %s83, %s86
    %p92 = scmp.eq.s32.totalorder %s10, 0
    %p93 = por %p91, %p92
    %p94 = scmp.ne.s32.totalorder %s83, %s86
    %p95 = scmp.eq.s32.totalorder %s15, 1
    %p96 = por %p94, %p95
    %p97 = scmp.ne.s32.totalorder %s86, %s87
    %p98 = scmp.eq.s32.totalorder %s15, 0
    %p99 = por %p97, %p98
    %p100 = scmp.ne.s32.totalorder %s86, %s87
    %p101 = scmp.eq.s32.totalorder %s16, 1
    %p102 = por %p100, %p101
    %p104 = scmp.ne.s32.totalorder %s87, %s103
    %p105 = scmp.eq.s32.totalorder %s16, 0
    %p106 = por %p104, %p105
    %s107 = ssub.s32 %s17, %s29
    %s108 = ssub.s32 %s18, %s25
    %s109 = sor.u32 %s107, %s108
    %p110 = scmp.eq.s32.totalorder %s109, 0
    %s112 = sadd.s32 %s111, 1
    %s113 = scalar_select %p110, %s111, %s112
    %p116 = pneg %p110
    %p117 = scmp.eq.s32.totalorder %s10, 1
    %p118 = por %p116, %p117
    %p119 = scmp.ne.s32.totalorder %s111, %s114
    %p120 = scmp.eq.s32.totalorder %s10, 0
    %p121 = por %p119, %p120
    %p122 = scmp.ne.s32.totalorder %s111, %s114
    %p123 = scmp.eq.s32.totalorder %s15, 1
    %p124 = por %p122, %p123
    %p125 = scmp.ne.s32.totalorder %s114, %s115
    %p126 = scmp.eq.s32.totalorder %s15, 0
    %p127 = por %p125, %p126
    %p128 = scmp.ne.s32.totalorder %s114, %s115
    %p129 = scmp.eq.s32.totalorder %s16, 1
    %p130 = por %p128, %p129
    %p132 = scmp.ne.s32.totalorder %s115, %s131
    %p133 = scmp.eq.s32.totalorder %s16, 0
    %p134 = por %p132, %p133
    %p135 = scmp.le.s32.totalorder 1, %s10
    %p136 = scmp.lt.s32.totalorder %s10, 3
    %p137 = pnand %p135, %p136
    %p138 = pneg %p137
    // Predicated region
    $region9: #{_lambda_.2} parent=5 // pred_check
      _
    $region10: #{_lambda_.2} parent=5 // pred_check_branch
      %140 = sbr.rel (%p137) target = $region12
    $region11: #{_lambda_.2} parent=5 // pred_region
      %s141 = ssub.s32 %s10, 1
      // Predicated region
      $region13: #{_lambda_.2} parent=11 // pred_check
        %p142 = pneg %p71
      $region14: #{_lambda_.2} parent=11 // pred_check_branch
        %144 = sbr.rel (%p142) target = $region16
      $region15: #{_lambda_.2} parent=11 // pred_region
        _
      $region16: #{_lambda_.2} parent=11 // pred_fallthru
        _
    $region12: #{_lambda_.2} parent=5 // pred_fallthru
      _
    %p145 = scmp.lt.s32.totalorder %s10, 2
    // Predicated region
    $region17: #{_lambda_.2} parent=5 // pred_check
      %p146 = pneg %p145
    $region18: #{_lambda_.2} parent=5 // pred_check_branch
      %148 = sbr.rel (%p146) target = $region20
    $region19: #{_lambda_.2} parent=5 // pred_region
      // Predicated region
      $region21: #{_lambda_.2} parent=19 // pred_check
        %p149 = pneg %p44
      $region22: #{_lambda_.2} parent=19 // pred_check_branch
        %151 = sbr.rel (%p149) target = $region24
      $region23: #{_lambda_.2} parent=19 // pred_region
        %s152 = smul.u32 2, %s18
        %p153 = scmp.lt.s32.totalorder %s17, 1
        %s154 = scalar_select %p153, %s17, 1
        %p155 = scmp.lt.s32.totalorder %s152, 1
        %s156 = scalar_select %p155, %s152, 1
        %s157 = smul.addr %s154, 36
        %s158 = sadd.s32 %s156, %s157
        %s159 = smul.addr %s158, 4
        %s160 = scalar_lea.vmem %s0, %s159
        %s161 = smul.u32 2, %s18
      $region24: #{_lambda_.2} parent=19 // pred_fallthru
        _
    $region20: #{_lambda_.2} parent=5 // pred_fallthru
      _
    %p162 = scmp.le.s32.totalorder 1, %s10
    %p163 = scmp.lt.s32.totalorder %s10, 3
    %p164 = pnand %p162, %p163
    %p165 = pneg %p164
    // Predicated region
    $region25: #{_lambda_.2} parent=5 // pred_check
      _
    $region26: #{_lambda_.2} parent=5 // pred_check_branch
      %167 = sbr.rel (%p164) target = $region28
    $region27: #{_lambda_.2} parent=5 // pred_region
      %s168 = ssub.s32 %s10, 1
      %s169 = smul.u32 2, %s20
      %p170 = scmp.lt.s32.totalorder %s19, 1
      %s171 = scalar_select %p170, %s19, 1
      %p172 = scmp.lt.s32.totalorder %s169, 1
      %s173 = scalar_select %p172, %s169, 1
      %s174 = smul.addr %s171, 36
      %s175 = sadd.s32 %s173, %s174
      %s176 = smul.addr %s175, 4
      %s177 = scalar_lea.vmem %s0, %s176
      %p178 = pneg %p50
      %p179 = pneg %p47
      %p180 = pneg %p71
      %p181 = pneg %p68
      %p182 = pneg %p99
      %p183 = pneg %p96
      %s184 = smul.u32 2, %s20
      %p185 = scmp.lt.s32.totalorder %s19, 1
      %s186 = scalar_select %p185, %s19, 1
      %p187 = scmp.lt.s32.totalorder %s184, 1
      %s188 = scalar_select %p187, %s184, 1
      %s189 = smul.addr %s186, 32
      %s190 = sadd.s32 %s188, %s189
      %s191 = smul.addr %s190, 4
      %s192 = scalar_lea.vmem %s2, %s191
      %p193 = pneg %p127
      %p194 = pneg %p124
      %p195 = scmp.lt.s32.totalorder %s19, 1
      %s196 = scalar_select %p195, %s19, 1
      %p197 = scmp.lt.s32.totalorder %s20, 0
      %s198 = scalar_select %p197, %s20, 0
      %s199 = sadd.s32 %s198, %s196
      %s200 = smul.addr %s199, 2
      %s201 = scalar_lea.vmem %s3, %s200
      %s202 = smul.u32 2, %s20
      %p203 = scmp.lt.s32.totalorder %s19, 1
      %s204 = scalar_select %p203, %s19, 1
      %p205 = scmp.lt.s32.totalorder %s202, 1
      %s206 = scalar_select %p205, %s202, 1
      %s207 = smul.addr %s204, 36
      %s208 = sadd.s32 %s206, %s207
      %s209 = smul.addr %s208, 4
      %s210 = scalar_lea.vmem %s0, %s209
      %s211 = smul.u32 2, %s20
      %s212 = smul.u32 2, %s20
      %p213 = scmp.lt.s32.totalorder %s19, 1
      %s214 = scalar_select %p213, %s19, 1
      %p215 = scmp.lt.s32.totalorder %s212, 1
      %s216 = scalar_select %p215, %s212, 1
      %s217 = smul.addr %s214, 32
      %s218 = sadd.s32 %s216, %s217
      %s219 = smul.addr %s218, 4
      %s220 = scalar_lea.vmem %s2, %s219
      %s221 = smul.u32 2, %s20
      %p222 = scmp.lt.s32.totalorder %s19, 1
      %s223 = scalar_select %p222, %s19, 1
      %p224 = scmp.lt.s32.totalorder %s20, 0
      %s225 = scalar_select %p224, %s20, 0
      %s226 = sadd.s32 %s225, %s223
      %s227 = smul.addr %s226, 2
      %s228 = scalar_lea.vmem %s3, %s227
      %v230 = vld [vmem:[%s210] sm:$0xf]
      %v231 = vld [vmem:[%s210 + $0x4] sm:$0xf]
      %v232 = vld [vmem:[%s210 + $0x8] sm:$0xf]
      %v233 = vld [vmem:[%s210 + $0xc] sm:$0xf]
      %v234 = vld [vmem:[%s210 + $0x10] sm:$0xf]
      %v235 = vld [vmem:[%s210 + $0x14] sm:$0xf]
      %v236 = vld [vmem:[%s210 + $0x18] sm:$0xf]
      %v237 = vld [vmem:[%s210 + $0x1c] sm:$0xf]
      %v238 = vld [vmem:[%s210 + $0x20] sm:$0xf]
      %v239 = vld [vmem:[%s210 + $0x24] sm:$0xf]
      %v240 = vld [vmem:[%s210 + $0x28] sm:$0xf]
      %v241 = vld [vmem:[%s210 + $0x2c] sm:$0xf]
      %v242 = vld [vmem:[%s210 + $0x30] sm:$0xf]
      %v243 = vld [vmem:[%s210 + $0x34] sm:$0xf]
      %v244 = vld [vmem:[%s210 + $0x38] sm:$0xf]
      %v245 = vld [vmem:[%s210 + $0x3c] sm:$0xf]
      %v246 = vld [vmem:[%s210 + $0x40] sm:$0xf]
      %v247 = vld [vmem:[%s210 + $0x44] sm:$0xf]
      %v248 = vld [vmem:[%s210 + $0x48] sm:$0xf]
      %v249 = vld [vmem:[%s210 + $0x4c] sm:$0xf]
      %v250 = vld [vmem:[%s210 + $0x50] sm:$0xf]
      %v251 = vld [vmem:[%s210 + $0x54] sm:$0xf]
      %v252 = vld [vmem:[%s210 + $0x58] sm:$0xf]
      %v253 = vld [vmem:[%s210 + $0x5c] sm:$0xf]
      %v254 = vld [vmem:[%s210 + $0x60] sm:$0xf]
      %v255 = vld [vmem:[%s210 + $0x64] sm:$0xf]
      %v256 = vld [vmem:[%s210 + $0x68] sm:$0xf]
      %v257 = vld [vmem:[%s210 + $0x6c] sm:$0xf]
      %v258 = vld [vmem:[%s210 + $0x70] sm:$0xf]
      %v259 = vld [vmem:[%s210 + $0x74] sm:$0xf]
      %v260 = vld [vmem:[%s210 + $0x78] sm:$0xf]
      %v261 = vld [vmem:[%s210 + $0x7c] sm:$0xf]
      %v262 = vld [vmem:[%s1] sm:$0xf]
      %v263 = vld [vmem:[%s1 + $0x4] sm:$0xf]
      %v264 = vld [vmem:[%s1 + $0x8] sm:$0xf]
      %v265 = vld [vmem:[%s1 + $0xc] sm:$0xf]
      %v266 = vld [vmem:[%s1 + $0x10] sm:$0xf]
      %v267 = vld [vmem:[%s1 + $0x14] sm:$0xf]
      %v268 = vld [vmem:[%s1 + $0x18] sm:$0xf]
      %v269 = vld [vmem:[%s1 + $0x1c] sm:$0xf]
      %v270 = vld [vmem:[%s1 + $0x20] sm:$0xf]
      %v271 = vld [vmem:[%s1 + $0x24] sm:$0xf]
      %v272 = vld [vmem:[%s1 + $0x28] sm:$0xf]
      %v273 = vld [vmem:[%s1 + $0x2c] sm:$0xf]
      %v274 = vld [vmem:[%s1 + $0x30] sm:$0xf]
      %v275 = vld [vmem:[%s1 + $0x34] sm:$0xf]
      %v276 = vld [vmem:[%s1 + $0x38] sm:$0xf]
      %v277 = vld [vmem:[%s1 + $0x3c] sm:$0xf]
      %s278 = scalar_lea.vmem %s210, 8
      %v279 = vld [vmem:[%s278] sm:$0xf]
      %v280 = vld [vmem:[%s278 + $0x4] sm:$0xf]
      %v281 = vld [vmem:[%s278 + $0x8] sm:$0xf]
      %v282 = vld [vmem:[%s278 + $0xc] sm:$0xf]
      %v283 = vld [vmem:[%s278 + $0x10] sm:$0xf]
      %v284 = vld [vmem:[%s278 + $0x14] sm:$0xf]
      %v285 = vld [vmem:[%s278 + $0x18] sm:$0xf]
      %v286 = vld [vmem:[%s278 + $0x1c] sm:$0xf]
      %v287 = vld [vmem:[%s278 + $0x20] sm:$0xf]
      %v288 = vld [vmem:[%s278 + $0x24] sm:$0xf]
      %v289 = vld [vmem:[%s278 + $0x28] sm:$0xf]
      %v290 = vld [vmem:[%s278 + $0x2c] sm:$0xf]
      %v291 = vld [vmem:[%s278 + $0x30] sm:$0xf]
      %v292 = vld [vmem:[%s278 + $0x34] sm:$0xf]
      %v293 = vld [vmem:[%s278 + $0x38] sm:$0xf]
      %v294 = vld [vmem:[%s278 + $0x3c] sm:$0xf]
      %v295 = vld [vmem:[%s278 + $0x40] sm:$0xf]
      %v296 = vld [vmem:[%s278 + $0x44] sm:$0xf]
      %v297 = vld [vmem:[%s278 + $0x48] sm:$0xf]
      %v298 = vld [vmem:[%s278 + $0x4c] sm:$0xf]
      %v299 = vld [vmem:[%s278 + $0x50] sm:$0xf]
      %v300 = vld [vmem:[%s278 + $0x54] sm:$0xf]
      %v301 = vld [vmem:[%s278 + $0x58] sm:$0xf]
      %v302 = vld [vmem:[%s278 + $0x5c] sm:$0xf]
      %v303 = vld [vmem:[%s278 + $0x60] sm:$0xf]
      %v304 = vld [vmem:[%s278 + $0x64] sm:$0xf]
      %v305 = vld [vmem:[%s278 + $0x68] sm:$0xf]
      %v306 = vld [vmem:[%s278 + $0x6c] sm:$0xf]
      %v307 = vld [vmem:[%s278 + $0x70] sm:$0xf]
      %v308 = vld [vmem:[%s278 + $0x74] sm:$0xf]
      %v309 = vld [vmem:[%s278 + $0x78] sm:$0xf]
      %v310 = vld [vmem:[%s278 + $0x7c] sm:$0xf]
      %s311 = scalar_lea.vmem %s1, 64
      %v312 = vld [vmem:[%s311] sm:$0xf]
      %v313 = vld [vmem:[%s311 + $0x4] sm:$0xf]
      %v314 = vld [vmem:[%s311 + $0x8] sm:$0xf]
      %v315 = vld [vmem:[%s311 + $0xc] sm:$0xf]
      %v316 = vld [vmem:[%s311 + $0x10] sm:$0xf]
      %v317 = vld [vmem:[%s311 + $0x14] sm:$0xf]
      %v318 = vld [vmem:[%s311 + $0x18] sm:$0xf]
      %v319 = vld [vmem:[%s311 + $0x1c] sm:$0xf]
      %v320 = vld [vmem:[%s311 + $0x20] sm:$0xf]
      %v321 = vld [vmem:[%s311 + $0x24] sm:$0xf]
      %v322 = vld [vmem:[%s311 + $0x28] sm:$0xf]
      %v323 = vld [vmem:[%s311 + $0x2c] sm:$0xf]
      %v324 = vld [vmem:[%s311 + $0x30] sm:$0xf]
      %v325 = vld [vmem:[%s311 + $0x34] sm:$0xf]
      %v326 = vld [vmem:[%s311 + $0x38] sm:$0xf]
      %v327 = vld [vmem:[%s311 + $0x3c] sm:$0xf]
      %v360 = vunpack.c.l.b16 %v279
      %v361 = vunpack.c.l.b16 %v280
      %v362 = vunpack.c.l.b16 %v281
      %v363 = vunpack.c.l.b16 %v282
      %v364 = vunpack.c.l.b16 %v283
      %v365 = vunpack.c.l.b16 %v284
      %v366 = vunpack.c.l.b16 %v285
      %v367 = vunpack.c.l.b16 %v286
      %v368 = vunpack.c.l.b16 %v287
      %v369 = vunpack.c.l.b16 %v288
      %v370 = vunpack.c.l.b16 %v289
      %v371 = vunpack.c.l.b16 %v290
      %v372 = vunpack.c.l.b16 %v291
      %v373 = vunpack.c.l.b16 %v292
      %v374 = vunpack.c.l.b16 %v293
      %v375 = vunpack.c.l.b16 %v294
      %v376 = vunpack.c.l.b16 %v295
      %v377 = vunpack.c.l.b16 %v296
      %v378 = vunpack.c.l.b16 %v297
      %v379 = vunpack.c.l.b16 %v298
      %v380 = vunpack.c.l.b16 %v299
      %v381 = vunpack.c.l.b16 %v300
      %v382 = vunpack.c.l.b16 %v301
      %v383 = vunpack.c.l.b16 %v302
      %v384 = vunpack.c.l.b16 %v303
      %v385 = vunpack.c.l.b16 %v304
      %v386 = vunpack.c.l.b16 %v305
      %v387 = vunpack.c.l.b16 %v306
      %v388 = vunpack.c.l.b16 %v307
      %v389 = vunpack.c.l.b16 %v308
      %v390 = vunpack.c.l.b16 %v309
      %v391 = vunpack.c.l.b16 %v310
      %v392 = vpack.c.b16 %v361, %v360
      %v393 = vpack.c.b16 %v363, %v362
      %v394 = vpack.c.b16 %v365, %v364
      %v395 = vpack.c.b16 %v367, %v366
      %v396 = vpack.c.b16 %v369, %v368
      %v397 = vpack.c.b16 %v371, %v370
      %v398 = vpack.c.b16 %v373, %v372
      %v399 = vpack.c.b16 %v375, %v374
      %v400 = vpack.c.b16 %v377, %v376
      %v401 = vpack.c.b16 %v379, %v378
      %v402 = vpack.c.b16 %v381, %v380
      %v403 = vpack.c.b16 %v383, %v382
      %v404 = vpack.c.b16 %v385, %v384
      %v405 = vpack.c.b16 %v387, %v386
      %v406 = vpack.c.b16 %v389, %v388
      %v407 = vpack.c.b16 %v391, %v390
      %v440 = vunpack.c.l.b16 %v312
      %v441 = vunpack.c.l.b16 %v313
      %v442 = vunpack.c.l.b16 %v314
      %v443 = vunpack.c.l.b16 %v315
      %v444 = vunpack.c.l.b16 %v316
      %v445 = vunpack.c.l.b16 %v317
      %v446 = vunpack.c.l.b16 %v318
      %v447 = vunpack.c.l.b16 %v319
      %v448 = vunpack.c.l.b16 %v320
      %v449 = vunpack.c.l.b16 %v321
      %v450 = vunpack.c.l.b16 %v322
      %v451 = vunpack.c.l.b16 %v323
      %v452 = vunpack.c.l.b16 %v324
      %v453 = vunpack.c.l.b16 %v325
      %v454 = vunpack.c.l.b16 %v326
      %v455 = vunpack.c.l.b16 %v327
      %v456 = vpack.c.b16 %v441, %v440
      %v457 = vpack.c.b16 %v443, %v442
      %v458 = vpack.c.b16 %v445, %v444
      %v459 = vpack.c.b16 %v447, %v446
      %v460 = vpack.c.b16 %v449, %v448
      %v461 = vpack.c.b16 %v451, %v450
      %v462 = vpack.c.b16 %v453, %v452
      %v463 = vpack.c.b16 %v455, %v454
      %472 = vmatprep.subr.bf16.mxu0 0
      %473 = vmatpush1.bf16.msra.mxu0 %v456
      %474 = vmatprep.subr.bf16.mxu0 0
      %475 = vmatpush1.bf16.msra.mxu0 %v457
      %476 = vmatprep.subr.bf16.mxu0 0
      %477 = vmatpush1.bf16.msra.mxu0 %v458
      %478 = vmatprep.subr.bf16.mxu0 0
      %479 = vmatpush1.bf16.msra.mxu0 %v459
      %480 = vmatprep.subr.bf16.mxu0 0
      %481 = vmatpush1.bf16.msra.mxu0 %v460
      %482 = vmatprep.subr.bf16.mxu0 0
      %483 = vmatpush1.bf16.msra.mxu0 %v461
      %484 = vmatprep.subr.bf16.mxu0 0
      %485 = vmatpush1.bf16.msra.mxu0 %v462
      %486 = vmatprep.subr.bf16.mxu0 0
      %487 = vmatpush1.bf16.msra.mxu0 %v463
      %488 = vmatprep.subr.bf16.mxu0 0
      %489 = vmatpush1.bf16.msra.mxu0 0
      %490 = vmatprep.subr.bf16.mxu0 0
      %491 = vmatpush1.bf16.msra.mxu0 0
      %492 = vmatprep.subr.bf16.mxu0 0
      %493 = vmatpush1.bf16.msra.mxu0 0
      %494 = vmatprep.subr.bf16.mxu0 0
      %495 = vmatpush1.bf16.msra.mxu0 0
      %496 = vmatprep.subr.bf16.mxu0 0
      %497 = vmatpush1.bf16.msra.mxu0 0
      %498 = vmatprep.subr.bf16.mxu0 0
      %499 = vmatpush1.bf16.msra.mxu0 0
      %500 = vmatprep.subr.bf16.mxu0 0
      %501 = vmatpush1.bf16.msra.mxu0 0
      %502 = vmatprep.subr.bf16.mxu0 0
      %503 = vmatpush1.bf16.msra.mxu0 0
      %504 = vmatprep.mubr.bf16.mxu0 0
      %505 = vmatmul.mubr.bf16.gmra.mrb[0].mxu0 %v392
      %v506 = vpop.f32.mrb[0].mxu0
      %v507 = vadd.f32 0.0, %v506
      %v508 = vpop.f32.mrb[0].mxu0
      %v509 = vpop.f32.mrb[0].mxu0
      %v510 = vadd.f32 0.0, %v509
      %v511 = vpop.f32.mrb[0].mxu0
      %512 = vmatprep.mubr.bf16.mxu0 0
      %513 = vmatmul.mubr.bf16.gmra.mrb[0].mxu0 %v393
      %v514 = vpop.f32.mrb[0].mxu0
      %v515 = vadd.f32 0.0, %v514
      %v516 = vpop.f32.mrb[0].mxu0
      %v517 = vpop.f32.mrb[0].mxu0
      %v518 = vadd.f32 0.0, %v517
      %v519 = vpop.f32.mrb[0].mxu0
      %520 = vmatprep.mubr.bf16.mxu0 0
      %521 = vmatmul.mubr.bf16.gmra.mrb[0].mxu0 %v394
      %v522 = vpop.f32.mrb[0].mxu0
      %v523 = vadd.f32 0.0, %v522
      %v524 = vpop.f32.mrb[0].mxu0
      %v525 = vpop.f32.mrb[0].mxu0
      %v526 = vadd.f32 0.0, %v525
      %v527 = vpop.f32.mrb[0].mxu0
      %528 = vmatprep.mubr.bf16.mxu0 0
      %529 = vmatmul.mubr.bf16.gmra.mrb[0].mxu0 %v395
      %v530 = vpop.f32.mrb[0].mxu0
      %v531 = vadd.f32 0.0, %v530
      %v532 = vpop.f32.mrb[0].mxu0
      %v533 = vpop.f32.mrb[0].mxu0
      %v534 = vadd.f32 0.0, %v533
      %v535 = vpop.f32.mrb[0].mxu0
      %536 = vmatprep.mubr.bf16.mxu0 0
      %537 = vmatmul.mubr.bf16.gmra.mrb[0].mxu0 %v396
      %v538 = vpop.f32.mrb[0].mxu0
      %v539 = vadd.f32 0.0, %v538
      %v540 = vpop.f32.mrb[0].mxu0
      %v541 = vpop.f32.mrb[0].mxu0
      %v542 = vadd.f32 0.0, %v541
      %v543 = vpop.f32.mrb[0].mxu0
      %544 = vmatprep.mubr.bf16.mxu0 0
      %545 = vmatmul.mubr.bf16.gmra.mrb[0].mxu0 %v397
      %v546 = vpop.f32.mrb[0].mxu0
      %v547 = vadd.f32 0.0, %v546
      %v548 = vpop.f32.mrb[0].mxu0
      %v549 = vpop.f32.mrb[0].mxu0
      %v550 = vadd.f32 0.0, %v549
      %v551 = vpop.f32.mrb[0].mxu0
      %552 = vmatprep.mubr.bf16.mxu0 0
      %553 = vmatmul.mubr.bf16.gmra.mrb[0].mxu0 %v398
      %v554 = vpop.f32.mrb[0].mxu0
      %v555 = vadd.f32 0.0, %v554
      %v556 = vpop.f32.mrb[0].mxu0
      %v557 = vpop.f32.mrb[0].mxu0
      %v558 = vadd.f32 0.0, %v557
      %v559 = vpop.f32.mrb[0].mxu0
      %560 = vmatprep.mubr.bf16.mxu0 0
      %561 = vmatmul.mubr.bf16.gmra.mrb[0].mxu0 %v399
      %v562 = vpop.f32.mrb[0].mxu0
      %v563 = vadd.f32 0.0, %v562
      %v564 = vpop.f32.mrb[0].mxu0
      %v565 = vpop.f32.mrb[0].mxu0
      %v566 = vadd.f32 0.0, %v565
      %v567 = vpop.f32.mrb[0].mxu0
      %568 = vmatprep.mubr.bf16.mxu0 0
      %569 = vmatmul.mubr.bf16.gmra.mrb[0].mxu0 %v400
      %v570 = vpop.f32.mrb[0].mxu0
      %v571 = vadd.f32 0.0, %v570
      %v572 = vpop.f32.mrb[0].mxu0
      %v573 = vpop.f32.mrb[0].mxu0
      %v574 = vadd.f32 0.0, %v573
      %v575 = vpop.f32.mrb[0].mxu0
      %576 = vmatprep.mubr.bf16.mxu0 0
      %577 = vmatmul.mubr.bf16.gmra.mrb[0].mxu0 %v401
      %v578 = vpop.f32.mrb[0].mxu0
      %v579 = vadd.f32 0.0, %v578
      %v580 = vpop.f32.mrb[0].mxu0
      %v581 = vpop.f32.mrb[0].mxu0
      %v582 = vadd.f32 0.0, %v581
      %v583 = vpop.f32.mrb[0].mxu0
      %584 = vmatprep.mubr.bf16.mxu0 0
      %585 = vmatmul.mubr.bf16.gmra.mrb[0].mxu0 %v402
      %v586 = vpop.f32.mrb[0].mxu0
      %v587 = vadd.f32 0.0, %v586
      %v588 = vpop.f32.mrb[0].mxu0
      %v589 = vpop.f32.mrb[0].mxu0
      %v590 = vadd.f32 0.0, %v589
      %v591 = vpop.f32.mrb[0].mxu0
      %592 = vmatprep.mubr.bf16.mxu0 0
      %593 = vmatmul.mubr.bf16.gmra.mrb[0].mxu0 %v403
      %v594 = vpop.f32.mrb[0].mxu0
      %v595 = vadd.f32 0.0, %v594
      %v596 = vpop.f32.mrb[0].mxu0
      %v597 = vpop.f32.mrb[0].mxu0
      %v598 = vadd.f32 0.0, %v597
      %v599 = vpop.f32.mrb[0].mxu0
      %600 = vmatprep.mubr.bf16.mxu0 0
      %601 = vmatmul.mubr.bf16.gmra.mrb[0].mxu0 %v404
      %v602 = vpop.f32.mrb[0].mxu0
      %v603 = vadd.f32 0.0, %v602
      %v604 = vpop.f32.mrb[0].mxu0
      %v605 = vpop.f32.mrb[0].mxu0
      %v606 = vadd.f32 0.0, %v605
      %v607 = vpop.f32.mrb[0].mxu0
      %608 = vmatprep.mubr.bf16.mxu0 0
      %609 = vmatmul.mubr.bf16.gmra.mrb[0].mxu0 %v405
      %v610 = vpop.f32.mrb[0].mxu0
      %v611 = vadd.f32 0.0, %v610
      %v612 = vpop.f32.mrb[0].mxu0
      %v613 = vpop.f32.mrb[0].mxu0
      %v614 = vadd.f32 0.0, %v613
      %v615 = vpop.f32.mrb[0].mxu0
      %616 = vmatprep.mubr.bf16.mxu0 0
      %617 = vmatmul.mubr.bf16.gmra.mrb[0].mxu0 %v406
      %v618 = vpop.f32.mrb[0].mxu0
      %v619 = vadd.f32 0.0, %v618
      %v620 = vpop.f32.mrb[0].mxu0
      %v621 = vpop.f32.mrb[0].mxu0
      %v622 = vadd.f32 0.0, %v621
      %v623 = vpop.f32.mrb[0].mxu0
      %624 = vmatprep.mubr.bf16.mxu0 0
      %625 = vmatmul.mubr.bf16.gmra.mrb[0].mxu0 %v407
      %v626 = vpop.f32.mrb[0].mxu0
      %v627 = vadd.f32 0.0, %v626
      %v628 = vpop.f32.mrb[0].mxu0
      %v629 = vpop.f32.mrb[0].mxu0
      %v630 = vadd.f32 0.0, %v629
      %v631 = vpop.f32.mrb[0].mxu0
      %632 = vdwg.mxu0
      %v665 = vunpack.c.l.b16 %v230
      %v666 = vunpack.c.l.b16 %v231
      %v667 = vunpack.c.l.b16 %v232
      %v668 = vunpack.c.l.b16 %v233
      %v669 = vunpack.c.l.b16 %v234
      %v670 = vunpack.c.l.b16 %v235
      %v671 = vunpack.c.l.b16 %v236
      %v672 = vunpack.c.l.b16 %v237
      %v673 = vunpack.c.l.b16 %v238
      %v674 = vunpack.c.l.b16 %v239
      %v675 = vunpack.c.l.b16 %v240
      %v676 = vunpack.c.l.b16 %v241
      %v677 = vunpack.c.l.b16 %v242
      %v678 = vunpack.c.l.b16 %v243
      %v679 = vunpack.c.l.b16 %v244
      %v680 = vunpack.c.l.b16 %v245
      %v681 = vunpack.c.l.b16 %v246
      %v682 = vunpack.c.l.b16 %v247
      %v683 = vunpack.c.l.b16 %v248
      %v684 = vunpack.c.l.b16 %v249
      %v685 = vunpack.c.l.b16 %v250
      %v686 = vunpack.c.l.b16 %v251
      %v687 = vunpack.c.l.b16 %v252
      %v688 = vunpack.c.l.b16 %v253
      %v689 = vunpack.c.l.b16 %v254
      %v690 = vunpack.c.l.b16 %v255
      %v691 = vunpack.c.l.b16 %v256
      %v692 = vunpack.c.l.b16 %v257
      %v693 = vunpack.c.l.b16 %v258
      %v694 = vunpack.c.l.b16 %v259
      %v695 = vunpack.c.l.b16 %v260
      %v696 = vunpack.c.l.b16 %v261
      %v697 = vpack.c.b16 %v666, %v665
      %v698 = vpack.c.b16 %v668, %v667
      %v699 = vpack.c.b16 %v670, %v669
      %v700 = vpack.c.b16 %v672, %v671
      %v701 = vpack.c.b16 %v674, %v673
      %v702 = vpack.c.b16 %v676, %v675
      %v703 = vpack.c.b16 %v678, %v677
      %v704 = vpack.c.b16 %v680, %v679
      %v705 = vpack.c.b16 %v682, %v681
      %v706 = vpack.c.b16 %v684, %v683
      %v707 = vpack.c.b16 %v686, %v685
      %v708 = vpack.c.b16 %v688, %v687
      %v709 = vpack.c.b16 %v690, %v689
      %v710 = vpack.c.b16 %v692, %v691
      %v711 = vpack.c.b16 %v694, %v693
      %v712 = vpack.c.b16 %v696, %v695
      %v745 = vunpack.c.l.b16 %v262
      %v746 = vunpack.c.l.b16 %v263
      %v747 = vunpack.c.l.b16 %v264
      %v748 = vunpack.c.l.b16 %v265
      %v749 = vunpack.c.l.b16 %v266
      %v750 = vunpack.c.l.b16 %v267
      %v751 = vunpack.c.l.b16 %v268
      %v752 = vunpack.c.l.b16 %v269
      %v753 = vunpack.c.l.b16 %v270
      %v754 = vunpack.c.l.b16 %v271
      %v755 = vunpack.c.l.b16 %v272
      %v756 = vunpack.c.l.b16 %v273
      %v757 = vunpack.c.l.b16 %v274
      %v758 = vunpack.c.l.b16 %v275
      %v759 = vunpack.c.l.b16 %v276
      %v760 = vunpack.c.l.b16 %v277
      %v761 = vpack.c.b16 %v746, %v745
      %v762 = vpack.c.b16 %v748, %v747
      %v763 = vpack.c.b16 %v750, %v749
      %v764 = vpack.c.b16 %v752, %v751
      %v765 = vpack.c.b16 %v754, %v753
      %v766 = vpack.c.b16 %v756, %v755
      %v767 = vpack.c.b16 %v758, %v757
      %v768 = vpack.c.b16 %v760, %v759
      %777 = vmatprep.subr.bf16.mxu0 0
      %778 = vmatpush1.bf16.msra.mxu0 %v761
      %779 = vmatprep.subr.bf16.mxu0 0
      %780 = vmatpush1.bf16.msra.mxu0 %v762
      %781 = vmatprep.subr.bf16.mxu0 0
      %782 = vmatpush1.bf16.msra.mxu0 %v763
      %783 = vmatprep.subr.bf16.mxu0 0
      %784 = vmatpush1.bf16.msra.mxu0 %v764
      %785 = vmatprep.subr.bf16.mxu0 0
      %786 = vmatpush1.bf16.msra.mxu0 %v765
      %787 = vmatprep.subr.bf16.mxu0 0
      %788 = vmatpush1.bf16.msra.mxu0 %v766
      %789 = vmatprep.subr.bf16.mxu0 0
      %790 = vmatpush1.bf16.msra.mxu0 %v767
      %791 = vmatprep.subr.bf16.mxu0 0
      %792 = vmatpush1.bf16.msra.mxu0 %v768
      %793 = vmatprep.subr.bf16.mxu0 0
      %794 = vmatpush1.bf16.msra.mxu0 0
      %795 = vmatprep.subr.bf16.mxu0 0
      %796 = vmatpush1.bf16.msra.mxu0 0
      %797 = vmatprep.subr.bf16.mxu0 0
      %798 = vmatpush1.bf16.msra.mxu0 0
      %799 = vmatprep.subr.bf16.mxu0 0
      %800 = vmatpush1.bf16.msra.mxu0 0
      %801 = vmatprep.subr.bf16.mxu0 0
      %802 = vmatpush1.bf16.msra.mxu0 0
      %803 = vmatprep.subr.bf16.mxu0 0
      %804 = vmatpush1.bf16.msra.mxu0 0
      %805 = vmatprep.subr.bf16.mxu0 0
      %806 = vmatpush1.bf16.msra.mxu0 0
      %807 = vmatprep.subr.bf16.mxu0 0
      %808 = vmatpush1.bf16.msra.mxu0 0
      %809 = vmatprep.mubr.bf16.mxu0 0
      %810 = vmatmul.mubr.bf16.gmra.mrb[0].mxu0 %v697
      %v811 = vpop.f32.mrb[0].mxu0
      %v812 = vadd.f32 %v507, %v811
      %v813 = vpop.f32.mrb[0].mxu0
      %v814 = vpop.f32.mrb[0].mxu0
      %v815 = vadd.f32 %v510, %v814
      %v816 = vpop.f32.mrb[0].mxu0
      %817 = vmatprep.mubr.bf16.mxu0 0
      %818 = vmatmul.mubr.bf16.gmra.mrb[0].mxu0 %v698
      %v819 = vpop.f32.mrb[0].mxu0
      %v820 = vadd.f32 %v515, %v819
      %v821 = vpop.f32.mrb[0].mxu0
      %v822 = vpop.f32.mrb[0].mxu0
      %v823 = vadd.f32 %v518, %v822
      %v824 = vpop.f32.mrb[0].mxu0
      %825 = vmatprep.mubr.bf16.mxu0 0
      %826 = vmatmul.mubr.bf16.gmra.mrb[0].mxu0 %v699
      %v827 = vpop.f32.mrb[0].mxu0
      %v828 = vadd.f32 %v523, %v827
      %v829 = vpop.f32.mrb[0].mxu0
      %v830 = vpop.f32.mrb[0].mxu0
      %v831 = vadd.f32 %v526, %v830
      %v832 = vpop.f32.mrb[0].mxu0
      %833 = vmatprep.mubr.bf16.mxu0 0
      %834 = vmatmul.mubr.bf16.gmra.mrb[0].mxu0 %v700
      %v835 = vpop.f32.mrb[0].mxu0
      %v836 = vadd.f32 %v531, %v835
      %v837 = vpop.f32.mrb[0].mxu0
      %v838 = vpop.f32.mrb[0].mxu0
      %v839 = vadd.f32 %v534, %v838
      %v840 = vpop.f32.mrb[0].mxu0
      %841 = vmatprep.mubr.bf16.mxu0 0
      %842 = vmatmul.mubr.bf16.gmra.mrb[0].mxu0 %v701
      %v843 = vpop.f32.mrb[0].mxu0
      %v844 = vadd.f32 %v539, %v843
      %v845 = vpop.f32.mrb[0].mxu0
      %v846 = vpop.f32.mrb[0].mxu0
      %v847 = vadd.f32 %v542, %v846
      %v848 = vpop.f32.mrb[0].mxu0
      %849 = vmatprep.mubr.bf16.mxu0 0
      %850 = vmatmul.mubr.bf16.gmra.mrb[0].mxu0 %v702
      %v851 = vpop.f32.mrb[0].mxu0
      %v852 = vadd.f32 %v547, %v851
      %v853 = vpop.f32.mrb[0].mxu0
      %v854 = vpop.f32.mrb[0].mxu0
      %v855 = vadd.f32 %v550, %v854
      %v856 = vpop.f32.mrb[0].mxu0
      %857 = vmatprep.mubr.bf16.mxu0 0
      %858 = vmatmul.mubr.bf16.gmra.mrb[0].mxu0 %v703
      %v859 = vpop.f32.mrb[0].mxu0
      %v860 = vadd.f32 %v555, %v859
      %v861 = vpop.f32.mrb[0].mxu0
      %v862 = vpop.f32.mrb[0].mxu0
      %v863 = vadd.f32 %v558, %v862
      %v864 = vpop.f32.mrb[0].mxu0
      %865 = vmatprep.mubr.bf16.mxu0 0
      %866 = vmatmul.mubr.bf16.gmra.mrb[0].mxu0 %v704
      %v867 = vpop.f32.mrb[0].mxu0
      %v868 = vadd.f32 %v563, %v867
      %v869 = vpop.f32.mrb[0].mxu0
      %v870 = vpop.f32.mrb[0].mxu0
      %v871 = vadd.f32 %v566, %v870
      %v872 = vpop.f32.mrb[0].mxu0
      %873 = vmatprep.mubr.bf16.mxu0 0
      %874 = vmatmul.mubr.bf16.gmra.mrb[0].mxu0 %v705
      %v875 = vpop.f32.mrb[0].mxu0
      %v876 = vadd.f32 %v571, %v875
      %v877 = vpop.f32.mrb[0].mxu0
      %v878 = vpop.f32.mrb[0].mxu0
      %v879 = vadd.f32 %v574, %v878
      %v880 = vpop.f32.mrb[0].mxu0
      %881 = vmatprep.mubr.bf16.mxu0 0
      %882 = vmatmul.mubr.bf16.gmra.mrb[0].mxu0 %v706
      %v883 = vpop.f32.mrb[0].mxu0
      %v884 = vadd.f32 %v579, %v883
      %v885 = vpop.f32.mrb[0].mxu0
      %v886 = vpop.f32.mrb[0].mxu0
      %v887 = vadd.f32 %v582, %v886
      %v888 = vpop.f32.mrb[0].mxu0
      %889 = vmatprep.mubr.bf16.mxu0 0
      %890 = vmatmul.mubr.bf16.gmra.mrb[0].mxu0 %v707
      %v891 = vpop.f32.mrb[0].mxu0
      %v892 = vadd.f32 %v587, %v891
      %v893 = vpop.f32.mrb[0].mxu0
      %v894 = vpop.f32.mrb[0].mxu0
      %v895 = vadd.f32 %v590, %v894
      %v896 = vpop.f32.mrb[0].mxu0
      %897 = vmatprep.mubr.bf16.mxu0 0
      %898 = vmatmul.mubr.bf16.gmra.mrb[0].mxu0 %v708
      %v899 = vpop.f32.mrb[0].mxu0
      %v900 = vadd.f32 %v595, %v899
      %v901 = vpop.f32.mrb[0].mxu0
      %v902 = vpop.f32.mrb[0].mxu0
      %v903 = vadd.f32 %v598, %v902
      %v904 = vpop.f32.mrb[0].mxu0
      %905 = vmatprep.mubr.bf16.mxu0 0
      %906 = vmatmul.mubr.bf16.gmra.mrb[0].mxu0 %v709
      %v907 = vpop.f32.mrb[0].mxu0
      %v908 = vadd.f32 %v603, %v907
      %v909 = vpop.f32.mrb[0].mxu0
      %v910 = vpop.f32.mrb[0].mxu0
      %v911 = vadd.f32 %v606, %v910
      %v912 = vpop.f32.mrb[0].mxu0
      %913 = vmatprep.mubr.bf16.mxu0 0
      %914 = vmatmul.mubr.bf16.gmra.mrb[0].mxu0 %v710
      %v915 = vpop.f32.mrb[0].mxu0
      %v916 = vadd.f32 %v611, %v915
      %v917 = vpop.f32.mrb[0].mxu0
      %v918 = vpop.f32.mrb[0].mxu0
      %v919 = vadd.f32 %v614, %v918
      %v920 = vpop.f32.mrb[0].mxu0
      %921 = vmatprep.mubr.bf16.mxu0 0
      %922 = vmatmul.mubr.bf16.gmra.mrb[0].mxu0 %v711
      %v923 = vpop.f32.mrb[0].mxu0
      %v924 = vadd.f32 %v619, %v923
      %v925 = vpop.f32.mrb[0].mxu0
      %v926 = vpop.f32.mrb[0].mxu0
      %v927 = vadd.f32 %v622, %v926
      %v928 = vpop.f32.mrb[0].mxu0
      %929 = vmatprep.mubr.bf16.mxu0 0
      %930 = vmatmul.mubr.bf16.gmra.mrb[0].mxu0 %v712
      %v931 = vpop.f32.mrb[0].mxu0
      %v932 = vadd.f32 %v627, %v931
      %v933 = vpop.f32.mrb[0].mxu0
      %v934 = vpop.f32.mrb[0].mxu0
      %v935 = vadd.f32 %v630, %v934
      %v936 = vpop.f32.mrb[0].mxu0
      %937 = vdwg.mxu0
      %s938 = scalar_lea.vmem %s210, 16
      %v939 = vld [vmem:[%s938] sm:$0xf]
      %v940 = vld [vmem:[%s938 + $0x4] sm:$0xf]
      %v941 = vld [vmem:[%s938 + $0x8] sm:$0xf]
      %v942 = vld [vmem:[%s938 + $0xc] sm:$0xf]
      %v943 = vld [vmem:[%s938 + $0x10] sm:$0xf]
      %v944 = vld [vmem:[%s938 + $0x14] sm:$0xf]
      %v945 = vld [vmem:[%s938 + $0x18] sm:$0xf]
      %v946 = vld [vmem:[%s938 + $0x1c] sm:$0xf]
      %v947 = vld [vmem:[%s938 + $0x20] sm:$0xf]
      %v948 = vld [vmem:[%s938 + $0x24] sm:$0xf]
      %v949 = vld [vmem:[%s938 + $0x28] sm:$0xf]
      %v950 = vld [vmem:[%s938 + $0x2c] sm:$0xf]
      %v951 = vld [vmem:[%s938 + $0x30] sm:$0xf]
      %v952 = vld [vmem:[%s938 + $0x34] sm:$0xf]
      %v953 = vld [vmem:[%s938 + $0x38] sm:$0xf]
      %v954 = vld [vmem:[%s938 + $0x3c] sm:$0xf]
      %v955 = vld [vmem:[%s938 + $0x40] sm:$0xf]
      %v956 = vld [vmem:[%s938 + $0x44] sm:$0xf]
      %v957 = vld [vmem:[%s938 + $0x48] sm:$0xf]
      %v958 = vld [vmem:[%s938 + $0x4c] sm:$0xf]
      %v959 = vld [vmem:[%s938 + $0x50] sm:$0xf]
      %v960 = vld [vmem:[%s938 + $0x54] sm:$0xf]
      %v961 = vld [vmem:[%s938 + $0x58] sm:$0xf]
      %v962 = vld [vmem:[%s938 + $0x5c] sm:$0xf]
      %v963 = vld [vmem:[%s938 + $0x60] sm:$0xf]
      %v964 = vld [vmem:[%s938 + $0x64] sm:$0xf]
      %v965 = vld [vmem:[%s938 + $0x68] sm:$0xf]
      %v966 = vld [vmem:[%s938 + $0x6c] sm:$0xf]
      %v967 = vld [vmem:[%s938 + $0x70] sm:$0xf]
      %v968 = vld [vmem:[%s938 + $0x74] sm:$0xf]
      %v969 = vld [vmem:[%s938 + $0x78] sm:$0xf]
      %v970 = vld [vmem:[%s938 + $0x7c] sm:$0xf]
      %s971 = scalar_lea.vmem %s1, 128
      %v972 = vld [vmem:[%s971] sm:$0xf]
      %v973 = vld [vmem:[%s971 + $0x4] sm:$0xf]
      %v974 = vld [vmem:[%s971 + $0x8] sm:$0xf]
      %v975 = vld [vmem:[%s971 + $0xc] sm:$0xf]
      %v976 = vld [vmem:[%s971 + $0x10] sm:$0xf]
      %v977 = vld [vmem:[%s971 + $0x14] sm:$0xf]
      %v978 = vld [vmem:[%s971 + $0x18] sm:$0xf]
      %v979 = vld [vmem:[%s971 + $0x1c] sm:$0xf]
      %v980 = vld [vmem:[%s971 + $0x20] sm:$0xf]
      %v981 = vld [vmem:[%s971 + $0x24] sm:$0xf]
      %v982 = vld [vmem:[%s971 + $0x28] sm:$0xf]
      %v983 = vld [vmem:[%s971 + $0x2c] sm:$0xf]
      %v984 = vld [vmem:[%s971 + $0x30] sm:$0xf]
      %v985 = vld [vmem:[%s971 + $0x34] sm:$0xf]
      %v986 = vld [vmem:[%s971 + $0x38] sm:$0xf]
      %v987 = vld [vmem:[%s971 + $0x3c] sm:$0xf]
      %v1020 = vunpack.c.l.b16 %v939
      %v1021 = vunpack.c.l.b16 %v940
      %v1022 = vunpack.c.l.b16 %v941
      %v1023 = vunpack.c.l.b16 %v942
      %v1024 = vunpack.c.l.b16 %v943
      %v1025 = vunpack.c.l.b16 %v944
      %v1026 = vunpack.c.l.b16 %v945
      %v1027 = vunpack.c.l.b16 %v946
      %v1028 = vunpack.c.l.b16 %v947
      %v1029 = vunpack.c.l.b16 %v948
      %v1030 = vunpack.c.l.b16 %v949
      %v1031 = vunpack.c.l.b16 %v950
      %v1032 = vunpack.c.l.b16 %v951
      %v1033 = vunpack.c.l.b16 %v952
      %v1034 = vunpack.c.l.b16 %v953
      %v1035 = vunpack.c.l.b16 %v954
      %v1036 = vunpack.c.l.b16 %v955
      %v1037 = vunpack.c.l.b16 %v956
      %v1038 = vunpack.c.l.b16 %v957
      %v1039 = vunpack.c.l.b16 %v958
      %v1040 = vunpack.c.l.b16 %v959
      %v1041 = vunpack.c.l.b16 %v960
      %v1042 = vunpack.c.l.b16 %v961
      %v1043 = vunpack.c.l.b16 %v962
      %v1044 = vunpack.c.l.b16 %v963
      %v1045 = vunpack.c.l.b16 %v964
      %v1046 = vunpack.c.l.b16 %v965
      %v1047 = vunpack.c.l.b16 %v966
      %v1048 = vunpack.c.l.b16 %v967
      %v1049 = vunpack.c.l.b16 %v968
      %v1050 = vunpack.c.l.b16 %v969
      %v1051 = vunpack.c.l.b16 %v970
      %v1052 = vpack.c.b16 %v1021, %v1020
      %v1053 = vpack.c.b16 %v1023, %v1022
      %v1054 = vpack.c.b16 %v1025, %v1024
      %v1055 = vpack.c.b16 %v1027, %v1026
      %v1056 = vpack.c.b16 %v1029, %v1028
      %v1057 = vpack.c.b16 %v1031, %v1030
      %v1058 = vpack.c.b16 %v1033, %v1032
      %v1059 = vpack.c.b16 %v1035, %v1034
      %v1060 = vpack.c.b16 %v1037, %v1036
      %v1061 = vpack.c.b16 %v1039, %v1038
      %v1062 = vpack.c.b16 %v1041, %v1040
      %v1063 = vpack.c.b16 %v1043, %v1042
      %v1064 = vpack.c.b16 %v1045, %v1044
      %v1065 = vpack.c.b16 %v1047, %v1046
      %v1066 = vpack.c.b16 %v1049, %v1048
      %v1067 = vpack.c.b16 %v1051, %v1050
      %v1100 = vunpack.c.l.b16 %v972
      %v1101 = vunpack.c.l.b16 %v973
      %v1102 = vunpack.c.l.b16 %v974
      %v1103 = vunpack.c.l.b16 %v975
      %v1104 = vunpack.c.l.b16 %v976
      %v1105 = vunpack.c.l.b16 %v977
      %v1106 = vunpack.c.l.b16 %v978
      %v1107 = vunpack.c.l.b16 %v979
      %v1108 = vunpack.c.l.b16 %v980
      %v1109 = vunpack.c.l.b16 %v981
      %v1110 = vunpack.c.l.b16 %v982
      %v1111 = vunpack.c.l.b16 %v983
      %v1112 = vunpack.c.l.b16 %v984
      %v1113 = vunpack.c.l.b16 %v985
      %v1114 = vunpack.c.l.b16 %v986
      %v1115 = vunpack.c.l.b16 %v987
      %v1116 = vpack.c.b16 %v1101, %v1100
      %v1117 = vpack.c.b16 %v1103, %v1102
      %v1118 = vpack.c.b16 %v1105, %v1104
      %v1119 = vpack.c.b16 %v1107, %v1106
      %v1120 = vpack.c.b16 %v1109, %v1108
      %v1121 = vpack.c.b16 %v1111, %v1110
      %v1122 = vpack.c.b16 %v1113, %v1112
      %v1123 = vpack.c.b16 %v1115, %v1114
      %1132 = vmatprep.subr.bf16.mxu0 0
      %1133 = vmatpush1.bf16.msra.mxu0 %v1116
      %1134 = vmatprep.subr.bf16.mxu0 0
      %1135 = vmatpush1.bf16.msra.mxu0 %v1117
      %1136 = vmatprep.subr.bf16.mxu0 0
      %1137 = vmatpush1.bf16.msra.mxu0 %v1118
      %1138 = vmatprep.subr.bf16.mxu0 0
      %1139 = vmatpush1.bf16.msra.mxu0 %v1119
      %1140 = vmatprep.subr.bf16.mxu0 0
      %1141 = vmatpush1.bf16.msra.mxu0 %v1120
      %1142 = vmatprep.subr.bf16.mxu0 0
      %1143 = vmatpush1.bf16.msra.mxu0 %v1121
      %1144 = vmatprep.subr.bf16.mxu0 0
      %1145 = vmatpush1.bf16.msra.mxu0 %v1122
      %1146 = vmatprep.subr.bf16.mxu0 0
      %1147 = vmatpush1.bf16.msra.mxu0 %v1123
      %1148 = vmatprep.subr.bf16.mxu0 0
      %1149 = vmatpush1.bf16.msra.mxu0 0
      %1150 = vmatprep.subr.bf16.mxu0 0
      %1151 = vmatpush1.bf16.msra.mxu0 0
      %1152 = vmatprep.subr.bf16.mxu0 0
      %1153 = vmatpush1.bf16.msra.mxu0 0
      %1154 = vmatprep.subr.bf16.mxu0 0
      %1155 = vmatpush1.bf16.msra.mxu0 0
      %1156 = vmatprep.subr.bf16.mxu0 0
      %1157 = vmatpush1.bf16.msra.mxu0 0
      %1158 = vmatprep.subr.bf16.mxu0 0
      %1159 = vmatpush1.bf16.msra.mxu0 0
      %1160 = vmatprep.subr.bf16.mxu0 0
      %1161 = vmatpush1.bf16.msra.mxu0 0
      %1162 = vmatprep.subr.bf16.mxu0 0
      %1163 = vmatpush1.bf16.msra.mxu0 0
      %1164 = vmatprep.mubr.bf16.mxu0 0
      %1165 = vmatmul.mubr.bf16.gmra.mrb[0].mxu0 %v1052
      %v1166 = vpop.f32.mrb[0].mxu0
      %v1167 = vadd.f32 0.0, %v1166
      %v1168 = vpop.f32.mrb[0].mxu0
      %v1169 = vpop.f32.mrb[0].mxu0
      %v1170 = vadd.f32 0.0, %v1169
      %v1171 = vpop.f32.mrb[0].mxu0
      %1172 = vmatprep.mubr.bf16.mxu0 0
      %1173 = vmatmul.mubr.bf16.gmra.mrb[0].mxu0 %v1053
      %v1174 = vpop.f32.mrb[0].mxu0
      %v1175 = vadd.f32 0.0, %v1174
      %v1176 = vpop.f32.mrb[0].mxu0
      %v1177 = vpop.f32.mrb[0].mxu0
      %v1178 = vadd.f32 0.0, %v1177
      %v1179 = vpop.f32.mrb[0].mxu0
      %1180 = vmatprep.mubr.bf16.mxu0 0
      %1181 = vmatmul.mubr.bf16.gmra.mrb[0].mxu0 %v1054
      %v1182 = vpop.f32.mrb[0].mxu0
      %v1183 = vadd.f32 0.0, %v1182
      %v1184 = vpop.f32.mrb[0].mxu0
      %v1185 = vpop.f32.mrb[0].mxu0
      %v1186 = vadd.f32 0.0, %v1185
      %v1187 = vpop.f32.mrb[0].mxu0
      %1188 = vmatprep.mubr.bf16.mxu0 0
      %1189 = vmatmul.mubr.bf16.gmra.mrb[0].mxu0 %v1055
      %v1190 = vpop.f32.mrb[0].mxu0
      %v1191 = vadd.f32 0.0, %v1190
      %v1192 = vpop.f32.mrb[0].mxu0
      %v1193 = vpop.f32.mrb[0].mxu0
      %v1194 = vadd.f32 0.0, %v1193
      %v1195 = vpop.f32.mrb[0].mxu0
      %1196 = vmatprep.mubr.bf16.mxu0 0
      %1197 = vmatmul.mubr.bf16.gmra.mrb[0].mxu0 %v1056
      %v1198 = vpop.f32.mrb[0].mxu0
      %v1199 = vadd.f32 0.0, %v1198
      %v1200 = vpop.f32.mrb[0].mxu0
      %v1201 = vpop.f32.mrb[0].mxu0
      %v1202 = vadd.f32 0.0, %v1201
      %v1203 = vpop.f32.mrb[0].mxu0
      %1204 = vmatprep.mubr.bf16.mxu0 0
      %1205 = vmatmul.mubr.bf16.gmra.mrb[0].mxu0 %v1057
      %v1206 = vpop.f32.mrb[0].mxu0
      %v1207 = vadd.f32 0.0, %v1206
      %v1208 = vpop.f32.mrb[0].mxu0
      %v1209 = vpop.f32.mrb[0].mxu0
      %v1210 = vadd.f32 0.0, %v1209
      %v1211 = vpop.f32.mrb[0].mxu0
      %1212 = vmatprep.mubr.bf16.mxu0 0
      %1213 = vmatmul.mubr.bf16.gmra.mrb[0].mxu0 %v1058
      %v1214 = vpop.f32.mrb[0].mxu0
      %v1215 = vadd.f32 0.0, %v1214
      %v1216 = vpop.f32.mrb[0].mxu0
      %v1217 = vpop.f32.mrb[0].mxu0
      %v1218 = vadd.f32 0.0, %v1217
      %v1219 = vpop.f32.mrb[0].mxu0
      %1220 = vmatprep.mubr.bf16.mxu0 0
      %1221 = vmatmul.mubr.bf16.gmra.mrb[0].mxu0 %v1059
      %v1222 = vpop.f32.mrb[0].mxu0
      %v1223 = vadd.f32 0.0, %v1222
      %v1224 = vpop.f32.mrb[0].mxu0
      %v1225 = vpop.f32.mrb[0].mxu0
      %v1226 = vadd.f32 0.0, %v1225
      %v1227 = vpop.f32.mrb[0].mxu0
      %1228 = vmatprep.mubr.bf16.mxu0 0
      %1229 = vmatmul.mubr.bf16.gmra.mrb[0].mxu0 %v1060
      %v1230 = vpop.f32.mrb[0].mxu0
      %v1231 = vadd.f32 0.0, %v1230
      %v1232 = vpop.f32.mrb[0].mxu0
      %v1233 = vpop.f32.mrb[0].mxu0
      %v1234 = vadd.f32 0.0, %v1233
      %v1235 = vpop.f32.mrb[0].mxu0
      %1236 = vmatprep.mubr.bf16.mxu0 0
      %1237 = vmatmul.mubr.bf16.gmra.mrb[0].mxu0 %v1061
      %v1238 = vpop.f32.mrb[0].mxu0
      %v1239 = vadd.f32 0.0, %v1238
      %v1240 = vpop.f32.mrb[0].mxu0
      %v1241 = vpop.f32.mrb[0].mxu0
      %v1242 = vadd.f32 0.0, %v1241
      %v1243 = vpop.f32.mrb[0].mxu0
      %1244 = vmatprep.mubr.bf16.mxu0 0
      %1245 = vmatmul.mubr.bf16.gmra.mrb[0].mxu0 %v1062
      %v1246 = vpop.f32.mrb[0].mxu0
      %v1247 = vadd.f32 0.0, %v1246
      %v1248 = vpop.f32.mrb[0].mxu0
      %v1249 = vpop.f32.mrb[0].mxu0
      %v1250 = vadd.f32 0.0, %v1249
      %v1251 = vpop.f32.mrb[0].mxu0
      %1252 = vmatprep.mubr.bf16.mxu0 0
      %1253 = vmatmul.mubr.bf16.gmra.mrb[0].mxu0 %v1063
      %v1254 = vpop.f32.mrb[0].mxu0
      %v1255 = vadd.f32 0.0, %v1254
      %v1256 = vpop.f32.mrb[0].mxu0
      %v1257 = vpop.f32.mrb[0].mxu0
      %v1258 = vadd.f32 0.0, %v1257
      %v1259 = vpop.f32.mrb[0].mxu0
      %1260 = vmatprep.mubr.bf16.mxu0 0
      %1261 = vmatmul.mubr.bf16.gmra.mrb[0].mxu0 %v1064
      %v1262 = vpop.f32.mrb[0].mxu0
      %v1263 = vadd.f32 0.0, %v1262
      %v1264 = vpop.f32.mrb[0].mxu0
      %v1265 = vpop.f32.mrb[0].mxu0
      %v1266 = vadd.f32 0.0, %v1265
      %v1267 = vpop.f32.mrb[0].mxu0
      %1268 = vmatprep.mubr.bf16.mxu0 0
      %1269 = vmatmul.mubr.bf16.gmra.mrb[0].mxu0 %v1065
      %v1270 = vpop.f32.mrb[0].mxu0
      %v1271 = vadd.f32 0.0, %v1270
      %v1272 = vpop.f32.mrb[0].mxu0
      %v1273 = vpop.f32.mrb[0].mxu0
      %v1274 = vadd.f32 0.0, %v1273
      %v1275 = vpop.f32.mrb[0].mxu0
      %1276 = vmatprep.mubr.bf16.mxu0 0
      %1277 = vmatmul.mubr.bf16.gmra.mrb[0].mxu0 %v1066
      %v1278 = vpop.f32.mrb[0].mxu0
      %v1279 = vadd.f32 0.0, %v1278
      %v1280 = vpop.f32.mrb[0].mxu0
      %v1281 = vpop.f32.mrb[0].mxu0
      %v1282 = vadd.f32 0.0, %v1281
      %v1283 = vpop.f32.mrb[0].mxu0
      %1284 = vmatprep.mubr.bf16.mxu0 0
      %1285 = vmatmul.mubr.bf16.gmra.mrb[0].mxu0 %v1067
      %v1286 = vpop.f32.mrb[0].mxu0
      %v1287 = vadd.f32 0.0, %v1286
      %v1288 = vpop.f32.mrb[0].mxu0
      %v1289 = vpop.f32.mrb[0].mxu0
      %v1290 = vadd.f32 0.0, %v1289
      %v1291 = vpop.f32.mrb[0].mxu0
      %1292 = vdwg.mxu0
      %v1293 = vadd.f32 %v812, %v1167
      %v1294 = vadd.f32 %v815, %v1170
      %v1295 = vadd.f32 %v820, %v1175
      %v1296 = vadd.f32 %v823, %v1178
      %v1297 = vadd.f32 %v828, %v1183
      %v1298 = vadd.f32 %v831, %v1186
      %v1299 = vadd.f32 %v836, %v1191
      %v1300 = vadd.f32 %v839, %v1194
      %v1301 = vadd.f32 %v844, %v1199
      %v1302 = vadd.f32 %v847, %v1202
      %v1303 = vadd.f32 %v852, %v1207
      %v1304 = vadd.f32 %v855, %v1210
      %v1305 = vadd.f32 %v860, %v1215
      %v1306 = vadd.f32 %v863, %v1218
      %v1307 = vadd.f32 %v868, %v1223
      %v1308 = vadd.f32 %v871, %v1226
      %v1309 = vadd.f32 %v876, %v1231
      %v1310 = vadd.f32 %v879, %v1234
      %v1311 = vadd.f32 %v884, %v1239
      %v1312 = vadd.f32 %v887, %v1242
      %v1313 = vadd.f32 %v892, %v1247
      %v1314 = vadd.f32 %v895, %v1250
      %v1315 = vadd.f32 %v900, %v1255
      %v1316 = vadd.f32 %v903, %v1258
      %v1317 = vadd.f32 %v908, %v1263
      %v1318 = vadd.f32 %v911, %v1266
      %v1319 = vadd.f32 %v916, %v1271
      %v1320 = vadd.f32 %v919, %v1274
      %v1321 = vadd.f32 %v924, %v1279
      %v1322 = vadd.f32 %v927, %v1282
      %v1323 = vadd.f32 %v932, %v1287
      %v1324 = vadd.f32 %v935, %v1290
      %v1325 = vpack.c.bf16 %v1294, %v1293
      %v1326 = vpack.c.bf16 %v1296, %v1295
      %v1327 = vpack.c.bf16 %v1298, %v1297
      %v1328 = vpack.c.bf16 %v1300, %v1299
      %v1329 = vpack.c.bf16 %v1302, %v1301
      %v1330 = vpack.c.bf16 %v1304, %v1303
      %v1331 = vpack.c.bf16 %v1306, %v1305
      %v1332 = vpack.c.bf16 %v1308, %v1307
      %v1333 = vpack.c.bf16 %v1310, %v1309
      %v1334 = vpack.c.bf16 %v1312, %v1311
      %v1335 = vpack.c.bf16 %v1314, %v1313
      %v1336 = vpack.c.bf16 %v1316, %v1315
      %v1337 = vpack.c.bf16 %v1318, %v1317
      %v1338 = vpack.c.bf16 %v1320, %v1319
      %v1339 = vpack.c.bf16 %v1322, %v1321
      %v1340 = vpack.c.bf16 %v1324, %v1323
      %v1357 = vunpack.c.l.b16 %v1325
      %v1358 = vunpack.c.h.b16 %v1325
      %v1359 = vunpack.c.l.b16 %v1326
      %v1360 = vunpack.c.h.b16 %v1326
      %v1361 = vunpack.c.l.b16 %v1327
      %v1362 = vunpack.c.h.b16 %v1327
      %v1363 = vunpack.c.l.b16 %v1328
      %v1364 = vunpack.c.h.b16 %v1328
      %v1365 = vunpack.c.l.b16 %v1329
      %v1366 = vunpack.c.h.b16 %v1329
      %v1367 = vunpack.c.l.b16 %v1330
      %v1368 = vunpack.c.h.b16 %v1330
      %v1369 = vunpack.c.l.b16 %v1331
      %v1370 = vunpack.c.h.b16 %v1331
      %v1371 = vunpack.c.l.b16 %v1332
      %v1372 = vunpack.c.h.b16 %v1332
      %v1373 = vunpack.c.l.b16 %v1333
      %v1374 = vunpack.c.h.b16 %v1333
      %v1375 = vunpack.c.l.b16 %v1334
      %v1376 = vunpack.c.h.b16 %v1334
      %v1377 = vunpack.c.l.b16 %v1335
      %v1378 = vunpack.c.h.b16 %v1335
      %v1379 = vunpack.c.l.b16 %v1336
      %v1380 = vunpack.c.h.b16 %v1336
      %v1381 = vunpack.c.l.b16 %v1337
      %v1382 = vunpack.c.h.b16 %v1337
      %v1383 = vunpack.c.l.b16 %v1338
      %v1384 = vunpack.c.h.b16 %v1338
      %v1385 = vunpack.c.l.b16 %v1339
      %v1386 = vunpack.c.h.b16 %v1339
      %v1387 = vunpack.c.l.b16 %v1340
      %v1388 = vunpack.c.h.b16 %v1340
      %v1389 = vpack.c.b16 %v1357, %v1357
      %v1390 = vpack.c.b16 %v1358, %v1358
      %v1391 = vpack.c.b16 %v1359, %v1359
      %v1392 = vpack.c.b16 %v1360, %v1360
      %v1393 = vpack.c.b16 %v1361, %v1361
      %v1394 = vpack.c.b16 %v1362, %v1362
      %v1395 = vpack.c.b16 %v1363, %v1363
      %v1396 = vpack.c.b16 %v1364, %v1364
      %v1397 = vpack.c.b16 %v1365, %v1365
      %v1398 = vpack.c.b16 %v1366, %v1366
      %v1399 = vpack.c.b16 %v1367, %v1367
      %v1400 = vpack.c.b16 %v1368, %v1368
      %v1401 = vpack.c.b16 %v1369, %v1369
      %v1402 = vpack.c.b16 %v1370, %v1370
      %v1403 = vpack.c.b16 %v1371, %v1371
      %v1404 = vpack.c.b16 %v1372, %v1372
      %v1405 = vpack.c.b16 %v1373, %v1373
      %v1406 = vpack.c.b16 %v1374, %v1374
      %v1407 = vpack.c.b16 %v1375, %v1375
      %v1408 = vpack.c.b16 %v1376, %v1376
      %v1409 = vpack.c.b16 %v1377, %v1377
      %v1410 = vpack.c.b16 %v1378, %v1378
      %v1411 = vpack.c.b16 %v1379, %v1379
      %v1412 = vpack.c.b16 %v1380, %v1380
      %v1413 = vpack.c.b16 %v1381, %v1381
      %v1414 = vpack.c.b16 %v1382, %v1382
      %v1415 = vpack.c.b16 %v1383, %v1383
      %v1416 = vpack.c.b16 %v1384, %v1384
      %v1417 = vpack.c.b16 %v1385, %v1385
      %v1418 = vpack.c.b16 %v1386, %v1386
      %v1419 = vpack.c.b16 %v1387, %v1387
      %v1420 = vpack.c.b16 %v1388, %v1388
      %1453 = vst [vmem:[%s220] sm:$0xf] %v1389
      %1454 = vst [vmem:[%s220 + $0x4] sm:$0xf] %v1390
      %1455 = vst [vmem:[%s220 + $0x8] sm:$0xf] %v1391
      %1456 = vst [vmem:[%s220 + $0xc] sm:$0xf] %v1392
      %1457 = vst [vmem:[%s220 + $0x10] sm:$0xf] %v1393
      %1458 = vst [vmem:[%s220 + $0x14] sm:$0xf] %v1394
      %1459 = vst [vmem:[%s220 + $0x18] sm:$0xf] %v1395
      %1460 = vst [vmem:[%s220 + $0x1c] sm:$0xf] %v1396
      %1461 = vst [vmem:[%s220 + $0x20] sm:$0xf] %v1397
      %1462 = vst [vmem:[%s220 + $0x24] sm:$0xf] %v1398
      %1463 = vst [vmem:[%s220 + $0x28] sm:$0xf] %v1399
      %1464 = vst [vmem:[%s220 + $0x2c] sm:$0xf] %v1400
      %1465 = vst [vmem:[%s220 + $0x30] sm:$0xf] %v1401
      %1466 = vst [vmem:[%s220 + $0x34] sm:$0xf] %v1402
      %1467 = vst [vmem:[%s220 + $0x38] sm:$0xf] %v1403
      %1468 = vst [vmem:[%s220 + $0x3c] sm:$0xf] %v1404
      %1469 = vst [vmem:[%s220 + $0x40] sm:$0xf] %v1405
      %1470 = vst [vmem:[%s220 + $0x44] sm:$0xf] %v1406
      %1471 = vst [vmem:[%s220 + $0x48] sm:$0xf] %v1407
      %1472 = vst [vmem:[%s220 + $0x4c] sm:$0xf] %v1408
      %1473 = vst [vmem:[%s220 + $0x50] sm:$0xf] %v1409
      %1474 = vst [vmem:[%s220 + $0x54] sm:$0xf] %v1410
      %1475 = vst [vmem:[%s220 + $0x58] sm:$0xf] %v1411
      %1476 = vst [vmem:[%s220 + $0x5c] sm:$0xf] %v1412
      %1477 = vst [vmem:[%s220 + $0x60] sm:$0xf] %v1413
      %1478 = vst [vmem:[%s220 + $0x64] sm:$0xf] %v1414
      %1479 = vst [vmem:[%s220 + $0x68] sm:$0xf] %v1415
      %1480 = vst [vmem:[%s220 + $0x6c] sm:$0xf] %v1416
      %1481 = vst [vmem:[%s220 + $0x70] sm:$0xf] %v1417
      %1482 = vst [vmem:[%s220 + $0x74] sm:$0xf] %v1418
      %1483 = vst [vmem:[%s220 + $0x78] sm:$0xf] %v1419
      %1484 = vst [vmem:[%s220 + $0x7c] sm:$0xf] %v1420
      %v1485 = vadd.f32 %v1293, %v1294
      %v1486 = vadd.f32 %v1485, %v1295
      %v1487 = vadd.f32 %v1486, %v1296
      %v1488 = vadd.f32 %v1487, %v1297
      %v1489 = vadd.f32 %v1488, %v1298
      %v1490 = vadd.f32 %v1489, %v1299
      %v1491 = vadd.f32 %v1490, %v1300
      %v1492 = vadd.f32 %v1491, %v1301
      %v1493 = vadd.f32 %v1492, %v1302
      %v1494 = vadd.f32 %v1493, %v1303
      %v1495 = vadd.f32 %v1494, %v1304
      %v1496 = vadd.f32 %v1495, %v1305
      %v1497 = vadd.f32 %v1496, %v1306
      %v1498 = vadd.f32 %v1497, %v1307
      %v1499 = vadd.f32 %v1498, %v1308
      %v1500 = vadd.f32 %v1499, %v1309
      %v1501 = vadd.f32 %v1500, %v1310
      %v1502 = vadd.f32 %v1501, %v1311
      %v1503 = vadd.f32 %v1502, %v1312
      %v1504 = vadd.f32 %v1503, %v1313
      %v1505 = vadd.f32 %v1504, %v1314
      %v1506 = vadd.f32 %v1505, %v1315
      %v1507 = vadd.f32 %v1506, %v1316
      %v1508 = vadd.f32 %v1507, %v1317
      %v1509 = vadd.f32 %v1508, %v1318
      %v1510 = vadd.f32 %v1509, %v1319
      %v1511 = vadd.f32 %v1510, %v1320
      %v1512 = vadd.f32 %v1511, %v1321
      %v1513 = vadd.f32 %v1512, %v1322
      %v1514 = vadd.f32 %v1513, %v1323
      %v1515 = vadd.f32 %v1514, %v1324
      %v1516 = vrot.slane %v1515, 4
      %v1517 = vadd.f32 %v1515, %v1516
      %v1518 = vrot.slane %v1517, 2
      %v1519 = vadd.f32 %v1517, %v1518
      %v1520 = vrot.slane %v1519, 1
      %v1521 = vadd.f32 %v1519, %v1520
      %v1522 = vmul.f32 %v1293, %v1293
      %v1523 = vmul.f32 %v1294, %v1294
      %v1524 = vmul.f32 %v1295, %v1295
      %v1525 = vmul.f32 %v1296, %v1296
      %v1526 = vmul.f32 %v1297, %v1297
      %v1527 = vmul.f32 %v1298, %v1298
      %v1528 = vmul.f32 %v1299, %v1299
      %v1529 = vmul.f32 %v1300, %v1300
      %v1530 = vmul.f32 %v1301, %v1301
      %v1531 = vmul.f32 %v1302, %v1302
      %v1532 = vmul.f32 %v1303, %v1303
      %v1533 = vmul.f32 %v1304, %v1304
      %v1534 = vmul.f32 %v1305, %v1305
      %v1535 = vmul.f32 %v1306, %v1306
      %v1536 = vmul.f32 %v1307, %v1307
      %v1537 = vmul.f32 %v1308, %v1308
      %v1538 = vmul.f32 %v1309, %v1309
      %v1539 = vmul.f32 %v1310, %v1310
      %v1540 = vmul.f32 %v1311, %v1311
      %v1541 = vmul.f32 %v1312, %v1312
      %v1542 = vmul.f32 %v1313, %v1313
      %v1543 = vmul.f32 %v1314, %v1314
      %v1544 = vmul.f32 %v1315, %v1315
      %v1545 = vmul.f32 %v1316, %v1316
      %v1546 = vmul.f32 %v1317, %v1317
      %v1547 = vmul.f32 %v1318, %v1318
      %v1548 = vmul.f32 %v1319, %v1319
      %v1549 = vmul.f32 %v1320, %v1320
      %v1550 = vmul.f32 %v1321, %v1321
      %v1551 = vmul.f32 %v1322, %v1322
      %v1552 = vmul.f32 %v1323, %v1323
      %v1553 = vmul.f32 %v1324, %v1324
      %v1554 = vadd.f32 %v1522, %v1523
      %v1555 = vadd.f32 %v1554, %v1524
      %v1556 = vadd.f32 %v1555, %v1525
      %v1557 = vadd.f32 %v1556, %v1526
      %v1558 = vadd.f32 %v1557, %v1527
      %v1559 = vadd.f32 %v1558, %v1528
      %v1560 = vadd.f32 %v1559, %v1529
      %v1561 = vadd.f32 %v1560, %v1530
      %v1562 = vadd.f32 %v1561, %v1531
      %v1563 = vadd.f32 %v1562, %v1532
      %v1564 = vadd.f32 %v1563, %v1533
      %v1565 = vadd.f32 %v1564, %v1534
      %v1566 = vadd.f32 %v1565, %v1535
      %v1567 = vadd.f32 %v1566, %v1536
      %v1568 = vadd.f32 %v1567, %v1537
      %v1569 = vadd.f32 %v1568, %v1538
      %v1570 = vadd.f32 %v1569, %v1539
      %v1571 = vadd.f32 %v1570, %v1540
      %v1572 = vadd.f32 %v1571, %v1541
      %v1573 = vadd.f32 %v1572, %v1542
      %v1574 = vadd.f32 %v1573, %v1543
      %v1575 = vadd.f32 %v1574, %v1544
      %v1576 = vadd.f32 %v1575, %v1545
      %v1577 = vadd.f32 %v1576, %v1546
      %v1578 = vadd.f32 %v1577, %v1547
      %v1579 = vadd.f32 %v1578, %v1548
      %v1580 = vadd.f32 %v1579, %v1549
      %v1581 = vadd.f32 %v1580, %v1550
      %v1582 = vadd.f32 %v1581, %v1551
      %v1583 = vadd.f32 %v1582, %v1552
      %v1584 = vadd.f32 %v1583, %v1553
      %v1585 = vrot.slane %v1584, 4
      %v1586 = vadd.f32 %v1584, %v1585
      %v1587 = vrot.slane %v1586, 2
      %v1588 = vadd.f32 %v1586, %v1587
      %v1589 = vrot.slane %v1588, 1
      %v1590 = vadd.f32 %v1588, %v1589
      %vm1591 = vcmask 1040384
      %v1592 = vsel %vm1591, %v1521, %v1590
      %1593 = vst [vmem:[%s228] sm:$0x3] %v1592
      %s1594 = smul.u32 2, %s20
      %p1595 = scmp.lt.s32.totalorder %s19, 1
      %s1596 = scalar_select %p1595, %s19, 1
      %p1597 = scmp.lt.s32.totalorder %s1594, 1
      %s1598 = scalar_select %p1597, %s1594, 1
      %s1599 = smul.addr %s1596, 32
      %s1600 = sadd.s32 %s1598, %s1599
      %s1601 = smul.addr %s1600, 4
      %s1602 = scalar_lea.vmem %s2, %s1601
      %p1603 = scmp.lt.s32.totalorder %s19, 1
      %s1604 = scalar_select %p1603, %s19, 1
      %p1605 = scmp.lt.s32.totalorder %s20, 0
      %s1606 = scalar_select %p1605, %s20, 0
      %s1607 = sadd.s32 %s1606, %s1604
      %s1608 = smul.addr %s1607, 2
      %s1609 = scalar_lea.vmem %s3, %s1608
      // Predicated region
      $region29: #{_lambda_.2} parent=27 // pred_check
        %p1610 = pneg %p96
      $region30: #{_lambda_.2} parent=27 // pred_check_branch
        %1612 = sbr.rel (%p1610) target = $region32
      $region31: #{_lambda_.2} parent=27 // pred_region
        %s1613 = smul.u32 2, %s20
      $region32: #{_lambda_.2} parent=27 // pred_fallthru
        _
      // Predicated region
      $region33: #{_lambda_.2} parent=27 // pred_check
        %p1614 = pneg %p124
      $region34: #{_lambda_.2} parent=27 // pred_check_branch
        %1616 = sbr.rel (%p1614) target = $region36
      $region35: #{_lambda_.2} parent=27 // pred_region
        _
      $region36: #{_lambda_.2} parent=27 // pred_fallthru
        _
    $region28: #{_lambda_.2} parent=5 // pred_fallthru
      _
    %p1617 = scmp.le.s32.totalorder 2, %s10
    // Predicated region
    $region37: #{_lambda_.2} parent=5 // pred_check
      %p1618 = pneg %p1617
    $region38: #{_lambda_.2} parent=5 // pred_check_branch
      %1620 = sbr.rel (%p1618) target = $region40
    $region39: #{_lambda_.2} parent=5 // pred_region
      %s1621 = ssub.s32 %s10, 2
      // Predicated region
      $region41: #{_lambda_.2} parent=39 // pred_check
        %p1622 = pneg %p102
      $region42: #{_lambda_.2} parent=39 // pred_check_branch
        %1624 = sbr.rel (%p1622) target = $region44
      $region43: #{_lambda_.2} parent=39 // pred_region
        %s1625 = smul.u32 2, %s22
        %p1626 = scmp.lt.s32.totalorder %s21, 1
        %s1627 = scalar_select %p1626, %s21, 1
        %p1628 = scmp.lt.s32.totalorder %s1625, 1
        %s1629 = scalar_select %p1628, %s1625, 1
        %s1630 = smul.addr %s1627, 32
        %s1631 = sadd.s32 %s1629, %s1630
        %s1632 = smul.addr %s1631, 4
        %s1633 = scalar_lea.vmem %s2, %s1632
      $region44: #{_lambda_.2} parent=39 // pred_fallthru
        _
      // Predicated region
      $region45: #{_lambda_.2} parent=39 // pred_check
        %p1634 = pneg %p130
      $region46: #{_lambda_.2} parent=39 // pred_check_branch
        %1636 = sbr.rel (%p1634) target = $region48
      $region47: #{_lambda_.2} parent=39 // pred_region
        %p1637 = scmp.lt.s32.totalorder %s21, 1
        %s1638 = scalar_select %p1637, %s21, 1
        %p1639 = scmp.lt.s32.totalorder %s22, 0
        %s1640 = scalar_select %p1639, %s22, 0
        %s1641 = sadd.s32 %s1640, %s1638
        %s1642 = smul.addr %s1641, 2
        %s1643 = scalar_lea.vmem %s3, %s1642
      $region48: #{_lambda_.2} parent=39 // pred_fallthru
        _
    $region40: #{_lambda_.2} parent=5 // pred_fallthru
      _
  $region6: #{_lambda_.2} parent=0 // loop_footer
    %s14 = sadd.s32 1, %s10
  $region7: #{_lambda_.2} parent=0 // loop_footer_branch
    %9 = sbr.rel target = $region3
  $region8: #{_lambda_.2} parent=0 // loop_exit
    _

// kernel: _lambda_.3
$region0: #{_lambda_.3}
  #allocation0 [shape = 'u32[]', space=smem, size = 0x4, offset = 0x4, fixed_abs, tag = 'smem constant byte address 0x4 - core index']
  #allocation1 [shape = 'u32[144,128]{1,0:T(1,128)}', space=vmem, size = 0x12000, scoped, tag = 'internal scratch']
  %s0 = inlined_call_operand.vmem [shape: bf16[2,16,16,128], index: 0, kind: input, shape index: {}]
  %s1 = inlined_call_operand.vmem [shape: f32[1,128], index: 1, kind: input, shape index: {}]
  %s2 = inlined_call_operand.vmem [shape: f32[1,128], index: 2, kind: input, shape index: {}]
  %s3 = inlined_call_operand.vmem [shape: bf16[3,128,128], index: 3, kind: input, shape index: {}]
  %s4 = inlined_call_operand.vmem [shape: bf16[2,16,16,128], index: 4, kind: output, shape index: {0}]
  %s5 = inlined_call_operand.vmem [shape: f32[2,1,2,128], index: 5, kind: output, shape index: {1}]
  %6 = xla_tuple %s4, %s5
  %s7 = sld [smem:[#allocation0]]
  $region57: #{_lambda_.3} parent=0
    _
  %s9 = ssub.s32 1, %s7
  %s10 = scalar_select 0, %s9, %s7
  loop: start=0, step=1, limit=4
  $region2: #{_lambda_.3} parent=0 // loop_pre_header
    _
  $region3: #{_lambda_.3} parent=0 // loop_header
    %s12 = sphi 0, %s16
    %p13 = scmp.ge.s32.totalorder %s12, 4
    %s19 = sphi 0, %s31
    %s20 = sphi 0, %s27
    %s21 = sphi 0, %s19
    %s22 = sphi 0, %s20
    %s23 = sphi 0, %s21
    %s24 = sphi 0, %s22
    %s36 = sphi 0, %s38
    %s39 = sphi 0, %s36
    %s40 = sphi 0, %s39
    %s56 = sphi 0, %s40
    %s60 = sphi 0, %s60
    %s62 = sphi 0, %s60
    %s63 = sphi 0, %s62
    %s77 = sphi 0, %s63
    %s81 = sphi 0, %s81
    %s83 = sphi 0, %s81
    %s84 = sphi 0, %s83
    %s98 = sphi 0, %s84
    %s102 = sphi 0, %s102
    %s104 = sphi 0, %s102
    %s105 = sphi 0, %s104
    %s119 = sphi 0, %s105
    %s127 = sphi 0, %s129
    %s130 = sphi 0, %s127
    %s131 = sphi 0, %s130
    %s147 = sphi 0, %s131
    %s155 = sphi 0, %s157
    %s158 = sphi 0, %s155
    %s159 = sphi 0, %s158
    %s175 = sphi 0, %s159
  $region4: #{_lambda_.3} parent=0 // loop_header_branch
    %15 = sbr.rel (%p13) target = $region8
  $region5: #{_lambda_.3} parent=0 // loop_body
    %s17 = ssub.s32 %s12, 1
    %s18 = ssub.s32 %s12, 2
    %s25 = sadd.s32 1, %s20
    %p26 = scmp.ge.s32.totalorder %s25, 1
    %s27 = scalar_select %p26, 0, %s25
    %s28 = sadd.s32 1, %s19
    %s29 = scalar_select %p26, %s28, %s19
    %p30 = scmp.ge.s32.totalorder %s29, 2
    %s31 = scalar_select %p30, 0, %s29
    %s32 = ssub.s32 %s19, %s31
    %s33 = ssub.s32 %s20, %s27
    %s34 = sor.u32 %s32, %s33
    %p35 = scmp.eq.s32.totalorder %s34, 0
    %s37 = sadd.s32 %s36, 1
    %s38 = scalar_select %p35, %s36, %s37
    %p41 = pneg %p35
    %p42 = scmp.eq.s32.totalorder %s12, 1
    %p43 = por %p41, %p42
    %p44 = scmp.ne.s32.totalorder %s36, %s39
    %p45 = scmp.eq.s32.totalorder %s12, 0
    %p46 = por %p44, %p45
    %p47 = scmp.ne.s32.totalorder %s36, %s39
    %p48 = scmp.eq.s32.totalorder %s17, 1
    %p49 = por %p47, %p48
    %p50 = scmp.ne.s32.totalorder %s39, %s40
    %p51 = scmp.eq.s32.totalorder %s17, 0
    %p52 = por %p50, %p51
    %p53 = scmp.ne.s32.totalorder %s39, %s40
    %p54 = scmp.eq.s32.totalorder %s18, 1
    %p55 = por %p53, %p54
    %p57 = scmp.ne.s32.totalorder %s40, %s56
    %p58 = scmp.eq.s32.totalorder %s18, 0
    %p59 = por %p57, %p58
    %s61 = sadd.s32 %s60, 1
    %p64 = scmp.eq.s32.totalorder %s12, 1
    %p65 = scmp.ne.s32.totalorder %s60, %s62
    %p66 = scmp.eq.s32.totalorder %s12, 0
    %p67 = por %p65, %p66
    %p68 = scmp.ne.s32.totalorder %s60, %s62
    %p69 = scmp.eq.s32.totalorder %s17, 1
    %p70 = por %p68, %p69
    %p71 = scmp.ne.s32.totalorder %s62, %s63
    %p72 = scmp.eq.s32.totalorder %s17, 0
    %p73 = por %p71, %p72
    %p74 = scmp.ne.s32.totalorder %s62, %s63
    %p75 = scmp.eq.s32.totalorder %s18, 1
    %p76 = por %p74, %p75
    %p78 = scmp.ne.s32.totalorder %s63, %s77
    %p79 = scmp.eq.s32.totalorder %s18, 0
    %p80 = por %p78, %p79
    %s82 = sadd.s32 %s81, 1
    %p85 = scmp.eq.s32.totalorder %s12, 1
    %p86 = scmp.ne.s32.totalorder %s81, %s83
    %p87 = scmp.eq.s32.totalorder %s12, 0
    %p88 = por %p86, %p87
    %p89 = scmp.ne.s32.totalorder %s81, %s83
    %p90 = scmp.eq.s32.totalorder %s17, 1
    %p91 = por %p89, %p90
    %p92 = scmp.ne.s32.totalorder %s83, %s84
    %p93 = scmp.eq.s32.totalorder %s17, 0
    %p94 = por %p92, %p93
    %p95 = scmp.ne.s32.totalorder %s83, %s84
    %p96 = scmp.eq.s32.totalorder %s18, 1
    %p97 = por %p95, %p96
    %p99 = scmp.ne.s32.totalorder %s84, %s98
    %p100 = scmp.eq.s32.totalorder %s18, 0
    %p101 = por %p99, %p100
    %s103 = sadd.s32 %s102, 1
    %p106 = scmp.eq.s32.totalorder %s12, 1
    %p107 = scmp.ne.s32.totalorder %s102, %s104
    %p108 = scmp.eq.s32.totalorder %s12, 0
    %p109 = por %p107, %p108
    %p110 = scmp.ne.s32.totalorder %s102, %s104
    %p111 = scmp.eq.s32.totalorder %s17, 1
    %p112 = por %p110, %p111
    %p113 = scmp.ne.s32.totalorder %s104, %s105
    %p114 = scmp.eq.s32.totalorder %s17, 0
    %p115 = por %p113, %p114
    %p116 = scmp.ne.s32.totalorder %s104, %s105
    %p117 = scmp.eq.s32.totalorder %s18, 1
    %p118 = por %p116, %p117
    %p120 = scmp.ne.s32.totalorder %s105, %s119
    %p121 = scmp.eq.s32.totalorder %s18, 0
    %p122 = por %p120, %p121
    %s123 = ssub.s32 %s19, %s31
    %s124 = ssub.s32 %s20, %s27
    %s125 = sor.u32 %s123, %s124
    %p126 = scmp.eq.s32.totalorder %s125, 0
    %s128 = sadd.s32 %s127, 1
    %s129 = scalar_select %p126, %s127, %s128
    %p132 = pneg %p126
    %p133 = scmp.eq.s32.totalorder %s12, 1
    %p134 = por %p132, %p133
    %p135 = scmp.ne.s32.totalorder %s127, %s130
    %p136 = scmp.eq.s32.totalorder %s12, 0
    %p137 = por %p135, %p136
    %p138 = scmp.ne.s32.totalorder %s127, %s130
    %p139 = scmp.eq.s32.totalorder %s17, 1
    %p140 = por %p138, %p139
    %p141 = scmp.ne.s32.totalorder %s130, %s131
    %p142 = scmp.eq.s32.totalorder %s17, 0
    %p143 = por %p141, %p142
    %p144 = scmp.ne.s32.totalorder %s130, %s131
    %p145 = scmp.eq.s32.totalorder %s18, 1
    %p146 = por %p144, %p145
    %p148 = scmp.ne.s32.totalorder %s131, %s147
    %p149 = scmp.eq.s32.totalorder %s18, 0
    %p150 = por %p148, %p149
    %s151 = ssub.s32 %s19, %s31
    %s152 = ssub.s32 %s20, %s27
    %s153 = sor.u32 %s151, %s152
    %p154 = scmp.eq.s32.totalorder %s153, 0
    %s156 = sadd.s32 %s155, 1
    %s157 = scalar_select %p154, %s155, %s156
    %p160 = pneg %p154
    %p161 = scmp.eq.s32.totalorder %s12, 1
    %p162 = por %p160, %p161
    %p163 = scmp.ne.s32.totalorder %s155, %s158
    %p164 = scmp.eq.s32.totalorder %s12, 0
    %p165 = por %p163, %p164
    %p166 = scmp.ne.s32.totalorder %s155, %s158
    %p167 = scmp.eq.s32.totalorder %s17, 1
    %p168 = por %p166, %p167
    %p169 = scmp.ne.s32.totalorder %s158, %s159
    %p170 = scmp.eq.s32.totalorder %s17, 0
    %p171 = por %p169, %p170
    %p172 = scmp.ne.s32.totalorder %s158, %s159
    %p173 = scmp.eq.s32.totalorder %s18, 1
    %p174 = por %p172, %p173
    %p176 = scmp.ne.s32.totalorder %s159, %s175
    %p177 = scmp.eq.s32.totalorder %s18, 0
    %p178 = por %p176, %p177
    %p179 = scmp.le.s32.totalorder 1, %s12
    %p180 = scmp.lt.s32.totalorder %s12, 3
    %p181 = pnand %p179, %p180
    %p182 = pneg %p181
    // Predicated region
    $region9: #{_lambda_.3} parent=5 // pred_check
      _
    $region10: #{_lambda_.3} parent=5 // pred_check_branch
      %184 = sbr.rel (%p181) target = $region12
    $region11: #{_lambda_.3} parent=5 // pred_region
      %s185 = ssub.s32 %s12, 1
      // Predicated region
      $region13: #{_lambda_.3} parent=11 // pred_check
        %p186 = pneg %p73
      $region14: #{_lambda_.3} parent=11 // pred_check_branch
        %188 = sbr.rel (%p186) target = $region16
      $region15: #{_lambda_.3} parent=11 // pred_region
        _
      $region16: #{_lambda_.3} parent=11 // pred_fallthru
        _
      // Predicated region
      $region17: #{_lambda_.3} parent=11 // pred_check
        %p189 = pneg %p94
      $region18: #{_lambda_.3} parent=11 // pred_check_branch
        %191 = sbr.rel (%p189) target = $region20
      $region19: #{_lambda_.3} parent=11 // pred_region
        _
      $region20: #{_lambda_.3} parent=11 // pred_fallthru
        _
      // Predicated region
      $region21: #{_lambda_.3} parent=11 // pred_check
        %p192 = pneg %p115
      $region22: #{_lambda_.3} parent=11 // pred_check_branch
        %194 = sbr.rel (%p192) target = $region24
      $region23: #{_lambda_.3} parent=11 // pred_region
        _
      $region24: #{_lambda_.3} parent=11 // pred_fallthru
        _
    $region12: #{_lambda_.3} parent=5 // pred_fallthru
      _
    %p195 = scmp.lt.s32.totalorder %s12, 2
    // Predicated region
    $region25: #{_lambda_.3} parent=5 // pred_check
      %p196 = pneg %p195
    $region26: #{_lambda_.3} parent=5 // pred_check_branch
      %198 = sbr.rel (%p196) target = $region28
    $region27: #{_lambda_.3} parent=5 // pred_region
      // Predicated region
      $region29: #{_lambda_.3} parent=27 // pred_check
        %p199 = pneg %p46
      $region30: #{_lambda_.3} parent=27 // pred_check_branch
        %201 = sbr.rel (%p199) target = $region32
      $region31: #{_lambda_.3} parent=27 // pred_region
        %s202 = smul.u32 16, %s20
        %p203 = scmp.lt.s32.totalorder %s19, 1
        %s204 = scalar_select %p203, %s19, 1
        %p205 = scmp.lt.s32.totalorder %s202, 15
        %s206 = scalar_select %p205, %s202, 15
        %s207 = smul.addr %s206, 2
        %s208 = smul.addr %s204, 32
        %s209 = sadd.s32 %s207, %s208
        %s210 = smul.addr %s209, 4
        %s211 = scalar_lea.vmem %s0, %s210
        %s212 = smul.u32 16, %s20
      $region32: #{_lambda_.3} parent=27 // pred_fallthru
        _
    $region28: #{_lambda_.3} parent=5 // pred_fallthru
      _
    %p213 = scmp.le.s32.totalorder 1, %s12
    %p214 = scmp.lt.s32.totalorder %s12, 3
    %p215 = pnand %p213, %p214
    %p216 = pneg %p215
    // Predicated region
    $region33: #{_lambda_.3} parent=5 // pred_check
      _
    $region34: #{_lambda_.3} parent=5 // pred_check_branch
      %218 = sbr.rel (%p215) target = $region36
    $region35: #{_lambda_.3} parent=5 // pred_region
      %s219 = ssub.s32 %s12, 1
      %s220 = smul.u32 16, %s22
      %p221 = scmp.lt.s32.totalorder %s21, 1
      %s222 = scalar_select %p221, %s21, 1
      %p223 = scmp.lt.s32.totalorder %s220, 15
      %s224 = scalar_select %p223, %s220, 15
      %s225 = smul.addr %s224, 2
      %s226 = smul.addr %s222, 32
      %s227 = sadd.s32 %s225, %s226
      %s228 = smul.addr %s227, 4
      %s229 = scalar_lea.vmem %s0, %s228
      %p230 = pneg %p52
      %p231 = pneg %p49
      %p232 = pneg %p73
      %p233 = pneg %p70
      %p234 = pneg %p94
      %p235 = pneg %p91
      %p236 = pneg %p115
      %p237 = pneg %p112
      %p238 = pneg %p143
      %p239 = pneg %p140
      %s240 = smul.u32 16, %s22
      %p241 = scmp.lt.s32.totalorder %s21, 1
      %s242 = scalar_select %p241, %s21, 1
      %p243 = scmp.lt.s32.totalorder %s240, 15
      %s244 = scalar_select %p243, %s240, 15
      %s245 = smul.addr %s244, 2
      %s246 = smul.addr %s242, 32
      %s247 = sadd.s32 %s245, %s246
      %s248 = smul.addr %s247, 4
      %s249 = scalar_lea.vmem %s4, %s248
      %p250 = pneg %p171
      %p251 = pneg %p168
      %p252 = scmp.lt.s32.totalorder %s21, 1
      %s253 = scalar_select %p252, %s21, 1
      %p254 = scmp.lt.s32.totalorder %s22, 0
      %s255 = scalar_select %p254, %s22, 0
      %s256 = sadd.s32 %s255, %s253
      %s257 = smul.addr %s256, 2
      %s258 = scalar_lea.vmem %s5, %s257
      %s259 = smul.u32 16, %s22
      %p260 = scmp.lt.s32.totalorder %s21, 1
      %s261 = scalar_select %p260, %s21, 1
      %p262 = scmp.lt.s32.totalorder %s259, 15
      %s263 = scalar_select %p262, %s259, 15
      %s264 = smul.addr %s263, 2
      %s265 = smul.addr %s261, 32
      %s266 = sadd.s32 %s264, %s265
      %s267 = smul.addr %s266, 4
      %s268 = scalar_lea.vmem %s0, %s267
      %s269 = smul.u32 16, %s22
      %s270 = smul.u32 16, %s22
      %p271 = scmp.lt.s32.totalorder %s21, 1
      %s272 = scalar_select %p271, %s21, 1
      %p273 = scmp.lt.s32.totalorder %s270, 15
      %s274 = scalar_select %p273, %s270, 15
      %s275 = smul.addr %s274, 2
      %s276 = smul.addr %s272, 32
      %s277 = sadd.s32 %s275, %s276
      %s278 = smul.addr %s277, 4
      %s279 = scalar_lea.vmem %s4, %s278
      %s280 = smul.u32 16, %s22
      %p281 = scmp.lt.s32.totalorder %s21, 1
      %s282 = scalar_select %p281, %s21, 1
      %p283 = scmp.lt.s32.totalorder %s22, 0
      %s284 = scalar_select %p283, %s22, 0
      %s285 = sadd.s32 %s284, %s282
      %s286 = smul.addr %s285, 2
      %s287 = scalar_lea.vmem %s5, %s286
      %v289 = vld [vmem:[%s268] sm:$0xf]
      %v290 = vld [vmem:[%s268 + $0x4] sm:$0xf]
      %v291 = vld [vmem:[%s268 + $0x8] sm:$0xf]
      %v292 = vld [vmem:[%s268 + $0xc] sm:$0xf]
      %v293 = vld [vmem:[%s268 + $0x10] sm:$0xf]
      %v294 = vld [vmem:[%s268 + $0x14] sm:$0xf]
      %v295 = vld [vmem:[%s268 + $0x18] sm:$0xf]
      %v296 = vld [vmem:[%s268 + $0x1c] sm:$0xf]
      %v297 = vld [vmem:[%s268 + $0x20] sm:$0xf]
      %v298 = vld [vmem:[%s268 + $0x24] sm:$0xf]
      %v299 = vld [vmem:[%s268 + $0x28] sm:$0xf]
      %v300 = vld [vmem:[%s268 + $0x2c] sm:$0xf]
      %v301 = vld [vmem:[%s268 + $0x30] sm:$0xf]
      %v302 = vld [vmem:[%s268 + $0x34] sm:$0xf]
      %v303 = vld [vmem:[%s268 + $0x38] sm:$0xf]
      %v304 = vld [vmem:[%s268 + $0x3c] sm:$0xf]
      %v305 = vld [vmem:[%s268 + $0x40] sm:$0xf]
      %v306 = vld [vmem:[%s268 + $0x44] sm:$0xf]
      %v307 = vld [vmem:[%s268 + $0x48] sm:$0xf]
      %v308 = vld [vmem:[%s268 + $0x4c] sm:$0xf]
      %v309 = vld [vmem:[%s268 + $0x50] sm:$0xf]
      %v310 = vld [vmem:[%s268 + $0x54] sm:$0xf]
      %v311 = vld [vmem:[%s268 + $0x58] sm:$0xf]
      %v312 = vld [vmem:[%s268 + $0x5c] sm:$0xf]
      %v313 = vld [vmem:[%s268 + $0x60] sm:$0xf]
      %v314 = vld [vmem:[%s268 + $0x64] sm:$0xf]
      %v315 = vld [vmem:[%s268 + $0x68] sm:$0xf]
      %v316 = vld [vmem:[%s268 + $0x6c] sm:$0xf]
      %v317 = vld [vmem:[%s268 + $0x70] sm:$0xf]
      %v318 = vld [vmem:[%s268 + $0x74] sm:$0xf]
      %v319 = vld [vmem:[%s268 + $0x78] sm:$0xf]
      %v320 = vld [vmem:[%s268 + $0x7c] sm:$0xf]
      %v321 = vunpack.c.l.bf16 %v289
      %v322 = vunpack.c.l.bf16 %v290
      %v323 = vunpack.c.l.bf16 %v291
      %v324 = vunpack.c.l.bf16 %v292
      %v325 = vunpack.c.l.bf16 %v293
      %v326 = vunpack.c.l.bf16 %v294
      %v327 = vunpack.c.l.bf16 %v295
      %v328 = vunpack.c.l.bf16 %v296
      %v329 = vunpack.c.l.bf16 %v297
      %v330 = vunpack.c.l.bf16 %v298
      %v331 = vunpack.c.l.bf16 %v299
      %v332 = vunpack.c.l.bf16 %v300
      %v333 = vunpack.c.l.bf16 %v301
      %v334 = vunpack.c.l.bf16 %v302
      %v335 = vunpack.c.l.bf16 %v303
      %v336 = vunpack.c.l.bf16 %v304
      %v337 = vunpack.c.l.bf16 %v305
      %v338 = vunpack.c.l.bf16 %v306
      %v339 = vunpack.c.l.bf16 %v307
      %v340 = vunpack.c.l.bf16 %v308
      %v341 = vunpack.c.l.bf16 %v309
      %v342 = vunpack.c.l.bf16 %v310
      %v343 = vunpack.c.l.bf16 %v311
      %v344 = vunpack.c.l.bf16 %v312
      %v345 = vunpack.c.l.bf16 %v313
      %v346 = vunpack.c.l.bf16 %v314
      %v347 = vunpack.c.l.bf16 %v315
      %v348 = vunpack.c.l.bf16 %v316
      %v349 = vunpack.c.l.bf16 %v317
      %v350 = vunpack.c.l.bf16 %v318
      %v351 = vunpack.c.l.bf16 %v319
      %v352 = vunpack.c.l.bf16 %v320
      %v353 = vld [vmem:[%s1] sm:$0x1]
      %v355 = vlaneseq
      %v356 = vshrl.u32 %v355, 7
      %v357 = vsub.s32 0, %v356
      %v358 = vrot.slane %v353, %v357
      %v360 = vmul.f32 %v321, %v358
      %v361 = vmul.f32 %v322, %v358
      %v362 = vmul.f32 %v323, %v358
      %v363 = vmul.f32 %v324, %v358
      %v364 = vmul.f32 %v325, %v358
      %v365 = vmul.f32 %v326, %v358
      %v366 = vmul.f32 %v327, %v358
      %v367 = vmul.f32 %v328, %v358
      %v368 = vmul.f32 %v329, %v358
      %v369 = vmul.f32 %v330, %v358
      %v370 = vmul.f32 %v331, %v358
      %v371 = vmul.f32 %v332, %v358
      %v372 = vmul.f32 %v333, %v358
      %v373 = vmul.f32 %v334, %v358
      %v374 = vmul.f32 %v335, %v358
      %v375 = vmul.f32 %v336, %v358
      %v376 = vmul.f32 %v337, %v358
      %v377 = vmul.f32 %v338, %v358
      %v378 = vmul.f32 %v339, %v358
      %v379 = vmul.f32 %v340, %v358
      %v380 = vmul.f32 %v341, %v358
      %v381 = vmul.f32 %v342, %v358
      %v382 = vmul.f32 %v343, %v358
      %v383 = vmul.f32 %v344, %v358
      %v384 = vmul.f32 %v345, %v358
      %v385 = vmul.f32 %v346, %v358
      %v386 = vmul.f32 %v347, %v358
      %v387 = vmul.f32 %v348, %v358
      %v388 = vmul.f32 %v349, %v358
      %v389 = vmul.f32 %v350, %v358
      %v390 = vmul.f32 %v351, %v358
      %v391 = vmul.f32 %v352, %v358
      %v392 = vld [vmem:[%s2] sm:$0x1]
      %v394 = vlaneseq
      %v395 = vshrl.u32 %v394, 7
      %v396 = vsub.s32 0, %v395
      %v397 = vrot.slane %v392, %v396
      %v399 = vadd.f32 %v360, %v397
      %v400 = vadd.f32 %v361, %v397
      %v401 = vadd.f32 %v362, %v397
      %v402 = vadd.f32 %v363, %v397
      %v403 = vadd.f32 %v364, %v397
      %v404 = vadd.f32 %v365, %v397
      %v405 = vadd.f32 %v366, %v397
      %v406 = vadd.f32 %v367, %v397
      %v407 = vadd.f32 %v368, %v397
      %v408 = vadd.f32 %v369, %v397
      %v409 = vadd.f32 %v370, %v397
      %v410 = vadd.f32 %v371, %v397
      %v411 = vadd.f32 %v372, %v397
      %v412 = vadd.f32 %v373, %v397
      %v413 = vadd.f32 %v374, %v397
      %v414 = vadd.f32 %v375, %v397
      %v415 = vadd.f32 %v376, %v397
      %v416 = vadd.f32 %v377, %v397
      %v417 = vadd.f32 %v378, %v397
      %v418 = vadd.f32 %v379, %v397
      %v419 = vadd.f32 %v380, %v397
      %v420 = vadd.f32 %v381, %v397
      %v421 = vadd.f32 %v382, %v397
      %v422 = vadd.f32 %v383, %v397
      %v423 = vadd.f32 %v384, %v397
      %v424 = vadd.f32 %v385, %v397
      %v425 = vadd.f32 %v386, %v397
      %v426 = vadd.f32 %v387, %v397
      %v427 = vadd.f32 %v388, %v397
      %v428 = vadd.f32 %v389, %v397
      %v429 = vadd.f32 %v390, %v397
      %v430 = vadd.f32 %v391, %v397
      %v431 = vmax.f32 %v399, 0.0
      %v432 = vmax.f32 %v400, 0.0
      %v433 = vmax.f32 %v401, 0.0
      %v434 = vmax.f32 %v402, 0.0
      %v435 = vmax.f32 %v403, 0.0
      %v436 = vmax.f32 %v404, 0.0
      %v437 = vmax.f32 %v405, 0.0
      %v438 = vmax.f32 %v406, 0.0
      %v439 = vmax.f32 %v407, 0.0
      %v440 = vmax.f32 %v408, 0.0
      %v441 = vmax.f32 %v409, 0.0
      %v442 = vmax.f32 %v410, 0.0
      %v443 = vmax.f32 %v411, 0.0
      %v444 = vmax.f32 %v412, 0.0
      %v445 = vmax.f32 %v413, 0.0
      %v446 = vmax.f32 %v414, 0.0
      %v447 = vmax.f32 %v415, 0.0
      %v448 = vmax.f32 %v416, 0.0
      %v449 = vmax.f32 %v417, 0.0
      %v450 = vmax.f32 %v418, 0.0
      %v451 = vmax.f32 %v419, 0.0
      %v452 = vmax.f32 %v420, 0.0
      %v453 = vmax.f32 %v421, 0.0
      %v454 = vmax.f32 %v422, 0.0
      %v455 = vmax.f32 %v423, 0.0
      %v456 = vmax.f32 %v424, 0.0
      %v457 = vmax.f32 %v425, 0.0
      %v458 = vmax.f32 %v426, 0.0
      %v459 = vmax.f32 %v427, 0.0
      %v460 = vmax.f32 %v428, 0.0
      %v461 = vmax.f32 %v429, 0.0
      %v462 = vmax.f32 %v430, 0.0
      %vm495 = vcmask 1040384
      %v496 = vrot.slane %v431, 7
      %v497 = vrot.slane %v432, 7
      %v498 = vsel %vm495, %v496, %v497
      %v499 = vrot.slane %v433, 7
      %v500 = vrot.slane %v434, 7
      %v501 = vsel %vm495, %v499, %v500
      %v502 = vrot.slane %v435, 7
      %v503 = vrot.slane %v436, 7
      %v504 = vsel %vm495, %v502, %v503
      %v505 = vrot.slane %v437, 7
      %v506 = vrot.slane %v438, 7
      %v507 = vsel %vm495, %v505, %v506
      %v508 = vrot.slane %v439, 7
      %v509 = vrot.slane %v440, 7
      %v510 = vsel %vm495, %v508, %v509
      %v511 = vrot.slane %v441, 7
      %v512 = vrot.slane %v442, 7
      %v513 = vsel %vm495, %v511, %v512
      %v514 = vrot.slane %v443, 7
      %v515 = vrot.slane %v444, 7
      %v516 = vsel %vm495, %v514, %v515
      %v517 = vrot.slane %v445, 7
      %v518 = vrot.slane %v446, 7
      %v519 = vsel %vm495, %v517, %v518
      %v520 = vrot.slane %v447, 7
      %v521 = vrot.slane %v448, 7
      %v522 = vsel %vm495, %v520, %v521
      %v523 = vrot.slane %v449, 7
      %v524 = vrot.slane %v450, 7
      %v525 = vsel %vm495, %v523, %v524
      %v526 = vrot.slane %v451, 7
      %v527 = vrot.slane %v452, 7
      %v528 = vsel %vm495, %v526, %v527
      %v529 = vrot.slane %v453, 7
      %v530 = vrot.slane %v454, 7
      %v531 = vsel %vm495, %v529, %v530
      %v532 = vrot.slane %v455, 7
      %v533 = vrot.slane %v456, 7
      %v534 = vsel %vm495, %v532, %v533
      %v535 = vrot.slane %v457, 7
      %v536 = vrot.slane %v458, 7
      %v537 = vsel %vm495, %v535, %v536
      %v538 = vrot.slane %v459, 7
      %v539 = vrot.slane %v460, 7
      %v540 = vsel %vm495, %v538, %v539
      %v541 = vrot.slane %v461, 7
      %v542 = vrot.slane %v462, 7
      %v543 = vsel %vm495, %v541, %v542
      %v576 = vsel %vm495, 0.0, %v496
      %v577 = vsel %vm495, 0.0, %v499
      %v578 = vsel %vm495, 0.0, %v502
      %v579 = vsel %vm495, 0.0, %v505
      %v580 = vsel %vm495, 0.0, %v508
      %v581 = vsel %vm495, 0.0, %v511
      %v582 = vsel %vm495, 0.0, %v514
      %v583 = vsel %vm495, 0.0, %v517
      %v584 = vsel %vm495, 0.0, %v520
      %v585 = vsel %vm495, 0.0, %v523
      %v586 = vsel %vm495, 0.0, %v526
      %v587 = vsel %vm495, 0.0, %v529
      %v588 = vsel %vm495, 0.0, %v532
      %v589 = vsel %vm495, 0.0, %v535
      %v590 = vsel %vm495, 0.0, %v538
      %v591 = vsel %vm495, 0.0, %v541
      %v592 = vpack.c.bf16 %v498, %v576
      %v593 = vpack.c.bf16 %v501, %v577
      %v594 = vpack.c.bf16 %v504, %v578
      %v595 = vpack.c.bf16 %v507, %v579
      %v596 = vpack.c.bf16 %v510, %v580
      %v597 = vpack.c.bf16 %v513, %v581
      %v598 = vpack.c.bf16 %v516, %v582
      %v599 = vpack.c.bf16 %v519, %v583
      %v600 = vpack.c.bf16 %v522, %v584
      %v601 = vpack.c.bf16 %v525, %v585
      %v602 = vpack.c.bf16 %v528, %v586
      %v603 = vpack.c.bf16 %v531, %v587
      %v604 = vpack.c.bf16 %v534, %v588
      %v605 = vpack.c.bf16 %v537, %v589
      %v606 = vpack.c.bf16 %v540, %v590
      %v607 = vpack.c.bf16 %v543, %v591
      %v608 = vld [vmem:[%s3] sm:$0xf]
      %v609 = vld [vmem:[%s3 + $0x4] sm:$0xf]
      %v610 = vld [vmem:[%s3 + $0x8] sm:$0xf]
      %v611 = vld [vmem:[%s3 + $0xc] sm:$0xf]
      %v612 = vld [vmem:[%s3 + $0x10] sm:$0xf]
      %v613 = vld [vmem:[%s3 + $0x14] sm:$0xf]
      %v614 = vld [vmem:[%s3 + $0x18] sm:$0xf]
      %v615 = vld [vmem:[%s3 + $0x1c] sm:$0xf]
      %v616 = vld [vmem:[%s3 + $0x20] sm:$0xf]
      %v617 = vld [vmem:[%s3 + $0x24] sm:$0xf]
      %v618 = vld [vmem:[%s3 + $0x28] sm:$0xf]
      %v619 = vld [vmem:[%s3 + $0x2c] sm:$0xf]
      %v620 = vld [vmem:[%s3 + $0x30] sm:$0xf]
      %v621 = vld [vmem:[%s3 + $0x34] sm:$0xf]
      %v622 = vld [vmem:[%s3 + $0x38] sm:$0xf]
      %v623 = vld [vmem:[%s3 + $0x3c] sm:$0xf]
      %v624 = vpack.c.bf16 %v432, %v431
      %v625 = vpack.c.bf16 %v434, %v433
      %v626 = vpack.c.bf16 %v436, %v435
      %v627 = vpack.c.bf16 %v438, %v437
      %v628 = vpack.c.bf16 %v440, %v439
      %v629 = vpack.c.bf16 %v442, %v441
      %v630 = vpack.c.bf16 %v444, %v443
      %v631 = vpack.c.bf16 %v446, %v445
      %v632 = vpack.c.bf16 %v448, %v447
      %v633 = vpack.c.bf16 %v450, %v449
      %v634 = vpack.c.bf16 %v452, %v451
      %v635 = vpack.c.bf16 %v454, %v453
      %v636 = vpack.c.bf16 %v456, %v455
      %v637 = vpack.c.bf16 %v458, %v457
      %v638 = vpack.c.bf16 %v460, %v459
      %v639 = vpack.c.bf16 %v462, %v461
      %s640 = scalar_lea.vmem %s3, 64
      %v641 = vld [vmem:[%s640] sm:$0xf]
      %v642 = vld [vmem:[%s640 + $0x4] sm:$0xf]
      %v643 = vld [vmem:[%s640 + $0x8] sm:$0xf]
      %v644 = vld [vmem:[%s640 + $0xc] sm:$0xf]
      %v645 = vld [vmem:[%s640 + $0x10] sm:$0xf]
      %v646 = vld [vmem:[%s640 + $0x14] sm:$0xf]
      %v647 = vld [vmem:[%s640 + $0x18] sm:$0xf]
      %v648 = vld [vmem:[%s640 + $0x1c] sm:$0xf]
      %v649 = vld [vmem:[%s640 + $0x20] sm:$0xf]
      %v650 = vld [vmem:[%s640 + $0x24] sm:$0xf]
      %v651 = vld [vmem:[%s640 + $0x28] sm:$0xf]
      %v652 = vld [vmem:[%s640 + $0x2c] sm:$0xf]
      %v653 = vld [vmem:[%s640 + $0x30] sm:$0xf]
      %v654 = vld [vmem:[%s640 + $0x34] sm:$0xf]
      %v655 = vld [vmem:[%s640 + $0x38] sm:$0xf]
      %v656 = vld [vmem:[%s640 + $0x3c] sm:$0xf]
      %v673 = vunpack.c.l.b16 %v641
      %v674 = vunpack.c.l.b16 %v642
      %v675 = vunpack.c.l.b16 %v643
      %v676 = vunpack.c.l.b16 %v644
      %v677 = vunpack.c.l.b16 %v645
      %v678 = vunpack.c.l.b16 %v646
      %v679 = vunpack.c.l.b16 %v647
      %v680 = vunpack.c.l.b16 %v648
      %v681 = vunpack.c.l.b16 %v649
      %v682 = vunpack.c.l.b16 %v650
      %v683 = vunpack.c.l.b16 %v651
      %v684 = vunpack.c.l.b16 %v652
      %v685 = vunpack.c.l.b16 %v653
      %v686 = vunpack.c.l.b16 %v654
      %v687 = vunpack.c.l.b16 %v655
      %v688 = vunpack.c.l.b16 %v656
      %v689 = vpack.c.b16 %v674, %v673
      %v690 = vpack.c.b16 %v676, %v675
      %v691 = vpack.c.b16 %v678, %v677
      %v692 = vpack.c.b16 %v680, %v679
      %v693 = vpack.c.b16 %v682, %v681
      %v694 = vpack.c.b16 %v684, %v683
      %v695 = vpack.c.b16 %v686, %v685
      %v696 = vpack.c.b16 %v688, %v687
      %705 = vmatprep.subr.bf16.mxu0 0
      %706 = vmatpush1.bf16.msra.mxu0 %v689
      %707 = vmatprep.subr.bf16.mxu0 0
      %708 = vmatpush1.bf16.msra.mxu0 %v690
      %709 = vmatprep.subr.bf16.mxu0 0
      %710 = vmatpush1.bf16.msra.mxu0 %v691
      %711 = vmatprep.subr.bf16.mxu0 0
      %712 = vmatpush1.bf16.msra.mxu0 %v692
      %713 = vmatprep.subr.bf16.mxu0 0
      %714 = vmatpush1.bf16.msra.mxu0 %v693
      %715 = vmatprep.subr.bf16.mxu0 0
      %716 = vmatpush1.bf16.msra.mxu0 %v694
      %717 = vmatprep.subr.bf16.mxu0 0
      %718 = vmatpush1.bf16.msra.mxu0 %v695
      %719 = vmatprep.subr.bf16.mxu0 0
      %720 = vmatpush1.bf16.msra.mxu0 %v696
      %721 = vmatprep.subr.bf16.mxu0 0
      %722 = vmatpush1.bf16.msra.mxu0 0
      %723 = vmatprep.subr.bf16.mxu0 0
      %724 = vmatpush1.bf16.msra.mxu0 0
      %725 = vmatprep.subr.bf16.mxu0 0
      %726 = vmatpush1.bf16.msra.mxu0 0
      %727 = vmatprep.subr.bf16.mxu0 0
      %728 = vmatpush1.bf16.msra.mxu0 0
      %729 = vmatprep.subr.bf16.mxu0 0
      %730 = vmatpush1.bf16.msra.mxu0 0
      %731 = vmatprep.subr.bf16.mxu0 0
      %732 = vmatpush1.bf16.msra.mxu0 0
      %733 = vmatprep.subr.bf16.mxu0 0
      %734 = vmatpush1.bf16.msra.mxu0 0
      %735 = vmatprep.subr.bf16.mxu0 0
      %736 = vmatpush1.bf16.msra.mxu0 0
      %737 = vmatprep.mubr.bf16.mxu0 0
      %738 = vmatmul.mubr.bf16.gmra.mrb[0].mxu0 %v624
      %v739 = vpop.f32.mrb[0].mxu0
      %v740 = vadd.f32 0.0, %v739
      %v741 = vpop.f32.mrb[0].mxu0
      %v742 = vpop.f32.mrb[0].mxu0
      %v743 = vadd.f32 0.0, %v742
      %v744 = vpop.f32.mrb[0].mxu0
      %745 = vmatprep.mubr.bf16.mxu0 0
      %746 = vmatmul.mubr.bf16.gmra.mrb[0].mxu0 %v625
      %v747 = vpop.f32.mrb[0].mxu0
      %v748 = vadd.f32 0.0, %v747
      %v749 = vpop.f32.mrb[0].mxu0
      %v750 = vpop.f32.mrb[0].mxu0
      %v751 = vadd.f32 0.0, %v750
      %v752 = vpop.f32.mrb[0].mxu0
      %753 = vmatprep.mubr.bf16.mxu0 0
      %754 = vmatmul.mubr.bf16.gmra.mrb[0].mxu0 %v626
      %v755 = vpop.f32.mrb[0].mxu0
      %v756 = vadd.f32 0.0, %v755
      %v757 = vpop.f32.mrb[0].mxu0
      %v758 = vpop.f32.mrb[0].mxu0
      %v759 = vadd.f32 0.0, %v758
      %v760 = vpop.f32.mrb[0].mxu0
      %761 = vmatprep.mubr.bf16.mxu0 0
      %762 = vmatmul.mubr.bf16.gmra.mrb[0].mxu0 %v627
      %v763 = vpop.f32.mrb[0].mxu0
      %v764 = vadd.f32 0.0, %v763
      %v765 = vpop.f32.mrb[0].mxu0
      %v766 = vpop.f32.mrb[0].mxu0
      %v767 = vadd.f32 0.0, %v766
      %v768 = vpop.f32.mrb[0].mxu0
      %769 = vmatprep.mubr.bf16.mxu0 0
      %770 = vmatmul.mubr.bf16.gmra.mrb[0].mxu0 %v628
      %v771 = vpop.f32.mrb[0].mxu0
      %v772 = vadd.f32 0.0, %v771
      %v773 = vpop.f32.mrb[0].mxu0
      %v774 = vpop.f32.mrb[0].mxu0
      %v775 = vadd.f32 0.0, %v774
      %v776 = vpop.f32.mrb[0].mxu0
      %777 = vmatprep.mubr.bf16.mxu0 0
      %778 = vmatmul.mubr.bf16.gmra.mrb[0].mxu0 %v629
      %v779 = vpop.f32.mrb[0].mxu0
      %v780 = vadd.f32 0.0, %v779
      %v781 = vpop.f32.mrb[0].mxu0
      %v782 = vpop.f32.mrb[0].mxu0
      %v783 = vadd.f32 0.0, %v782
      %v784 = vpop.f32.mrb[0].mxu0
      %785 = vmatprep.mubr.bf16.mxu0 0
      %786 = vmatmul.mubr.bf16.gmra.mrb[0].mxu0 %v630
      %v787 = vpop.f32.mrb[0].mxu0
      %v788 = vadd.f32 0.0, %v787
      %v789 = vpop.f32.mrb[0].mxu0
      %v790 = vpop.f32.mrb[0].mxu0
      %v791 = vadd.f32 0.0, %v790
      %v792 = vpop.f32.mrb[0].mxu0
      %793 = vmatprep.mubr.bf16.mxu0 0
      %794 = vmatmul.mubr.bf16.gmra.mrb[0].mxu0 %v631
      %v795 = vpop.f32.mrb[0].mxu0
      %v796 = vadd.f32 0.0, %v795
      %v797 = vpop.f32.mrb[0].mxu0
      %v798 = vpop.f32.mrb[0].mxu0
      %v799 = vadd.f32 0.0, %v798
      %v800 = vpop.f32.mrb[0].mxu0
      %801 = vmatprep.mubr.bf16.mxu0 0
      %802 = vmatmul.mubr.bf16.gmra.mrb[0].mxu0 %v632
      %v803 = vpop.f32.mrb[0].mxu0
      %v804 = vadd.f32 0.0, %v803
      %v805 = vpop.f32.mrb[0].mxu0
      %v806 = vpop.f32.mrb[0].mxu0
      %v807 = vadd.f32 0.0, %v806
      %v808 = vpop.f32.mrb[0].mxu0
      %809 = vmatprep.mubr.bf16.mxu0 0
      %810 = vmatmul.mubr.bf16.gmra.mrb[0].mxu0 %v633
      %v811 = vpop.f32.mrb[0].mxu0
      %v812 = vadd.f32 0.0, %v811
      %v813 = vpop.f32.mrb[0].mxu0
      %v814 = vpop.f32.mrb[0].mxu0
      %v815 = vadd.f32 0.0, %v814
      %v816 = vpop.f32.mrb[0].mxu0
      %817 = vmatprep.mubr.bf16.mxu0 0
      %818 = vmatmul.mubr.bf16.gmra.mrb[0].mxu0 %v634
      %v819 = vpop.f32.mrb[0].mxu0
      %v820 = vadd.f32 0.0, %v819
      %v821 = vpop.f32.mrb[0].mxu0
      %v822 = vpop.f32.mrb[0].mxu0
      %v823 = vadd.f32 0.0, %v822
      %v824 = vpop.f32.mrb[0].mxu0
      %825 = vmatprep.mubr.bf16.mxu0 0
      %826 = vmatmul.mubr.bf16.gmra.mrb[0].mxu0 %v635
      %v827 = vpop.f32.mrb[0].mxu0
      %v828 = vadd.f32 0.0, %v827
      %v829 = vpop.f32.mrb[0].mxu0
      %v830 = vpop.f32.mrb[0].mxu0
      %v831 = vadd.f32 0.0, %v830
      %v832 = vpop.f32.mrb[0].mxu0
      %833 = vmatprep.mubr.bf16.mxu0 0
      %834 = vmatmul.mubr.bf16.gmra.mrb[0].mxu0 %v636
      %v835 = vpop.f32.mrb[0].mxu0
      %v836 = vadd.f32 0.0, %v835
      %v837 = vpop.f32.mrb[0].mxu0
      %v838 = vpop.f32.mrb[0].mxu0
      %v839 = vadd.f32 0.0, %v838
      %v840 = vpop.f32.mrb[0].mxu0
      %841 = vmatprep.mubr.bf16.mxu0 0
      %842 = vmatmul.mubr.bf16.gmra.mrb[0].mxu0 %v637
      %v843 = vpop.f32.mrb[0].mxu0
      %v844 = vadd.f32 0.0, %v843
      %v845 = vpop.f32.mrb[0].mxu0
      %v846 = vpop.f32.mrb[0].mxu0
      %v847 = vadd.f32 0.0, %v846
      %v848 = vpop.f32.mrb[0].mxu0
      %849 = vmatprep.mubr.bf16.mxu0 0
      %850 = vmatmul.mubr.bf16.gmra.mrb[0].mxu0 %v638
      %v851 = vpop.f32.mrb[0].mxu0
      %v852 = vadd.f32 0.0, %v851
      %v853 = vpop.f32.mrb[0].mxu0
      %v854 = vpop.f32.mrb[0].mxu0
      %v855 = vadd.f32 0.0, %v854
      %v856 = vpop.f32.mrb[0].mxu0
      %857 = vmatprep.mubr.bf16.mxu0 0
      %858 = vmatmul.mubr.bf16.gmra.mrb[0].mxu0 %v639
      %v859 = vpop.f32.mrb[0].mxu0
      %v860 = vadd.f32 0.0, %v859
      %v861 = vpop.f32.mrb[0].mxu0
      %v862 = vpop.f32.mrb[0].mxu0
      %v863 = vadd.f32 0.0, %v862
      %v864 = vpop.f32.mrb[0].mxu0
      %865 = vdwg.mxu0
      %v882 = vunpack.c.l.b16 %v608
      %v883 = vunpack.c.l.b16 %v609
      %v884 = vunpack.c.l.b16 %v610
      %v885 = vunpack.c.l.b16 %v611
      %v886 = vunpack.c.l.b16 %v612
      %v887 = vunpack.c.l.b16 %v613
      %v888 = vunpack.c.l.b16 %v614
      %v889 = vunpack.c.l.b16 %v615
      %v890 = vunpack.c.l.b16 %v616
      %v891 = vunpack.c.l.b16 %v617
      %v892 = vunpack.c.l.b16 %v618
      %v893 = vunpack.c.l.b16 %v619
      %v894 = vunpack.c.l.b16 %v620
      %v895 = vunpack.c.l.b16 %v621
      %v896 = vunpack.c.l.b16 %v622
      %v897 = vunpack.c.l.b16 %v623
      %v898 = vpack.c.b16 %v883, %v882
      %v899 = vpack.c.b16 %v885, %v884
      %v900 = vpack.c.b16 %v887, %v886
      %v901 = vpack.c.b16 %v889, %v888
      %v902 = vpack.c.b16 %v891, %v890
      %v903 = vpack.c.b16 %v893, %v892
      %v904 = vpack.c.b16 %v895, %v894
      %v905 = vpack.c.b16 %v897, %v896
      %914 = vmatprep.subr.bf16.mxu0 0
      %915 = vmatpush1.bf16.msra.mxu0 %v898
      %916 = vmatprep.subr.bf16.mxu0 0
      %917 = vmatpush1.bf16.msra.mxu0 %v899
      %918 = vmatprep.subr.bf16.mxu0 0
      %919 = vmatpush1.bf16.msra.mxu0 %v900
      %920 = vmatprep.subr.bf16.mxu0 0
      %921 = vmatpush1.bf16.msra.mxu0 %v901
      %922 = vmatprep.subr.bf16.mxu0 0
      %923 = vmatpush1.bf16.msra.mxu0 %v902
      %924 = vmatprep.subr.bf16.mxu0 0
      %925 = vmatpush1.bf16.msra.mxu0 %v903
      %926 = vmatprep.subr.bf16.mxu0 0
      %927 = vmatpush1.bf16.msra.mxu0 %v904
      %928 = vmatprep.subr.bf16.mxu0 0
      %929 = vmatpush1.bf16.msra.mxu0 %v905
      %930 = vmatprep.subr.bf16.mxu0 0
      %931 = vmatpush1.bf16.msra.mxu0 0
      %932 = vmatprep.subr.bf16.mxu0 0
      %933 = vmatpush1.bf16.msra.mxu0 0
      %934 = vmatprep.subr.bf16.mxu0 0
      %935 = vmatpush1.bf16.msra.mxu0 0
      %936 = vmatprep.subr.bf16.mxu0 0
      %937 = vmatpush1.bf16.msra.mxu0 0
      %938 = vmatprep.subr.bf16.mxu0 0
      %939 = vmatpush1.bf16.msra.mxu0 0
      %940 = vmatprep.subr.bf16.mxu0 0
      %941 = vmatpush1.bf16.msra.mxu0 0
      %942 = vmatprep.subr.bf16.mxu0 0
      %943 = vmatpush1.bf16.msra.mxu0 0
      %944 = vmatprep.subr.bf16.mxu0 0
      %945 = vmatpush1.bf16.msra.mxu0 0
      %946 = vmatprep.mubr.bf16.mxu0 0
      %947 = vmatmul.mubr.bf16.gmra.mrb[0].mxu0 %v592
      %v948 = vpop.f32.mrb[0].mxu0
      %v949 = vadd.f32 %v740, %v948
      %v950 = vpop.f32.mrb[0].mxu0
      %v951 = vpop.f32.mrb[0].mxu0
      %v952 = vadd.f32 %v743, %v951
      %v953 = vpop.f32.mrb[0].mxu0
      %954 = vmatprep.mubr.bf16.mxu0 0
      %955 = vmatmul.mubr.bf16.gmra.mrb[0].mxu0 %v593
      %v956 = vpop.f32.mrb[0].mxu0
      %v957 = vadd.f32 %v748, %v956
      %v958 = vpop.f32.mrb[0].mxu0
      %v959 = vpop.f32.mrb[0].mxu0
      %v960 = vadd.f32 %v751, %v959
      %v961 = vpop.f32.mrb[0].mxu0
      %962 = vmatprep.mubr.bf16.mxu0 0
      %963 = vmatmul.mubr.bf16.gmra.mrb[0].mxu0 %v594
      %v964 = vpop.f32.mrb[0].mxu0
      %v965 = vadd.f32 %v756, %v964
      %v966 = vpop.f32.mrb[0].mxu0
      %v967 = vpop.f32.mrb[0].mxu0
      %v968 = vadd.f32 %v759, %v967
      %v969 = vpop.f32.mrb[0].mxu0
      %970 = vmatprep.mubr.bf16.mxu0 0
      %971 = vmatmul.mubr.bf16.gmra.mrb[0].mxu0 %v595
      %v972 = vpop.f32.mrb[0].mxu0
      %v973 = vadd.f32 %v764, %v972
      %v974 = vpop.f32.mrb[0].mxu0
      %v975 = vpop.f32.mrb[0].mxu0
      %v976 = vadd.f32 %v767, %v975
      %v977 = vpop.f32.mrb[0].mxu0
      %978 = vmatprep.mubr.bf16.mxu0 0
      %979 = vmatmul.mubr.bf16.gmra.mrb[0].mxu0 %v596
      %v980 = vpop.f32.mrb[0].mxu0
      %v981 = vadd.f32 %v772, %v980
      %v982 = vpop.f32.mrb[0].mxu0
      %v983 = vpop.f32.mrb[0].mxu0
      %v984 = vadd.f32 %v775, %v983
      %v985 = vpop.f32.mrb[0].mxu0
      %986 = vmatprep.mubr.bf16.mxu0 0
      %987 = vmatmul.mubr.bf16.gmra.mrb[0].mxu0 %v597
      %v988 = vpop.f32.mrb[0].mxu0
      %v989 = vadd.f32 %v780, %v988
      %v990 = vpop.f32.mrb[0].mxu0
      %v991 = vpop.f32.mrb[0].mxu0
      %v992 = vadd.f32 %v783, %v991
      %v993 = vpop.f32.mrb[0].mxu0
      %994 = vmatprep.mubr.bf16.mxu0 0
      %995 = vmatmul.mubr.bf16.gmra.mrb[0].mxu0 %v598
      %v996 = vpop.f32.mrb[0].mxu0
      %v997 = vadd.f32 %v788, %v996
      %v998 = vpop.f32.mrb[0].mxu0
      %v999 = vpop.f32.mrb[0].mxu0
      %v1000 = vadd.f32 %v791, %v999
      %v1001 = vpop.f32.mrb[0].mxu0
      %1002 = vmatprep.mubr.bf16.mxu0 0
      %1003 = vmatmul.mubr.bf16.gmra.mrb[0].mxu0 %v599
      %v1004 = vpop.f32.mrb[0].mxu0
      %v1005 = vadd.f32 %v796, %v1004
      %v1006 = vpop.f32.mrb[0].mxu0
      %v1007 = vpop.f32.mrb[0].mxu0
      %v1008 = vadd.f32 %v799, %v1007
      %v1009 = vpop.f32.mrb[0].mxu0
      %1010 = vmatprep.mubr.bf16.mxu0 0
      %1011 = vmatmul.mubr.bf16.gmra.mrb[0].mxu0 %v600
      %v1012 = vpop.f32.mrb[0].mxu0
      %v1013 = vadd.f32 %v804, %v1012
      %v1014 = vpop.f32.mrb[0].mxu0
      %v1015 = vpop.f32.mrb[0].mxu0
      %v1016 = vadd.f32 %v807, %v1015
      %v1017 = vpop.f32.mrb[0].mxu0
      %1018 = vmatprep.mubr.bf16.mxu0 0
      %1019 = vmatmul.mubr.bf16.gmra.mrb[0].mxu0 %v601
      %v1020 = vpop.f32.mrb[0].mxu0
      %v1021 = vadd.f32 %v812, %v1020
      %v1022 = vpop.f32.mrb[0].mxu0
      %v1023 = vpop.f32.mrb[0].mxu0
      %v1024 = vadd.f32 %v815, %v1023
      %v1025 = vpop.f32.mrb[0].mxu0
      %1026 = vmatprep.mubr.bf16.mxu0 0
      %1027 = vmatmul.mubr.bf16.gmra.mrb[0].mxu0 %v602
      %v1028 = vpop.f32.mrb[0].mxu0
      %v1029 = vadd.f32 %v820, %v1028
      %v1030 = vpop.f32.mrb[0].mxu0
      %v1031 = vpop.f32.mrb[0].mxu0
      %v1032 = vadd.f32 %v823, %v1031
      %v1033 = vpop.f32.mrb[0].mxu0
      %1034 = vmatprep.mubr.bf16.mxu0 0
      %1035 = vmatmul.mubr.bf16.gmra.mrb[0].mxu0 %v603
      %v1036 = vpop.f32.mrb[0].mxu0
      %v1037 = vadd.f32 %v828, %v1036
      %v1038 = vpop.f32.mrb[0].mxu0
      %v1039 = vpop.f32.mrb[0].mxu0
      %v1040 = vadd.f32 %v831, %v1039
      %v1041 = vpop.f32.mrb[0].mxu0
      %1042 = vmatprep.mubr.bf16.mxu0 0
      %1043 = vmatmul.mubr.bf16.gmra.mrb[0].mxu0 %v604
      %v1044 = vpop.f32.mrb[0].mxu0
      %v1045 = vadd.f32 %v836, %v1044
      %v1046 = vpop.f32.mrb[0].mxu0
      %v1047 = vpop.f32.mrb[0].mxu0
      %v1048 = vadd.f32 %v839, %v1047
      %v1049 = vpop.f32.mrb[0].mxu0
      %1050 = vmatprep.mubr.bf16.mxu0 0
      %1051 = vmatmul.mubr.bf16.gmra.mrb[0].mxu0 %v605
      %v1052 = vpop.f32.mrb[0].mxu0
      %v1053 = vadd.f32 %v844, %v1052
      %v1054 = vpop.f32.mrb[0].mxu0
      %v1055 = vpop.f32.mrb[0].mxu0
      %v1056 = vadd.f32 %v847, %v1055
      %v1057 = vpop.f32.mrb[0].mxu0
      %1058 = vmatprep.mubr.bf16.mxu0 0
      %1059 = vmatmul.mubr.bf16.gmra.mrb[0].mxu0 %v606
      %v1060 = vpop.f32.mrb[0].mxu0
      %v1061 = vadd.f32 %v852, %v1060
      %v1062 = vpop.f32.mrb[0].mxu0
      %v1063 = vpop.f32.mrb[0].mxu0
      %v1064 = vadd.f32 %v855, %v1063
      %v1065 = vpop.f32.mrb[0].mxu0
      %1066 = vmatprep.mubr.bf16.mxu0 0
      %1067 = vmatmul.mubr.bf16.gmra.mrb[0].mxu0 %v607
      %v1068 = vpop.f32.mrb[0].mxu0
      %v1069 = vadd.f32 %v860, %v1068
      %v1070 = vpop.f32.mrb[0].mxu0
      %v1071 = vpop.f32.mrb[0].mxu0
      %v1072 = vadd.f32 %v863, %v1071
      %v1073 = vpop.f32.mrb[0].mxu0
      %1074 = vdwg.mxu0
      %vm1075 = vcmask 1046528
      %v1076 = vrot.slane %v431, 1
      %v1077 = vrot.slane %v432, 1
      %v1078 = vsel %vm1075, %v1076, %v1077
      %v1079 = vrot.slane %v433, 1
      %v1080 = vrot.slane %v434, 1
      %v1081 = vsel %vm1075, %v1079, %v1080
      %v1082 = vrot.slane %v435, 1
      %v1083 = vrot.slane %v436, 1
      %v1084 = vsel %vm1075, %v1082, %v1083
      %v1085 = vrot.slane %v437, 1
      %v1086 = vrot.slane %v438, 1
      %v1087 = vsel %vm1075, %v1085, %v1086
      %v1088 = vrot.slane %v439, 1
      %v1089 = vrot.slane %v440, 1
      %v1090 = vsel %vm1075, %v1088, %v1089
      %v1091 = vrot.slane %v441, 1
      %v1092 = vrot.slane %v442, 1
      %v1093 = vsel %vm1075, %v1091, %v1092
      %v1094 = vrot.slane %v443, 1
      %v1095 = vrot.slane %v444, 1
      %v1096 = vsel %vm1075, %v1094, %v1095
      %v1097 = vrot.slane %v445, 1
      %v1098 = vrot.slane %v446, 1
      %v1099 = vsel %vm1075, %v1097, %v1098
      %v1100 = vrot.slane %v447, 1
      %v1101 = vrot.slane %v448, 1
      %v1102 = vsel %vm1075, %v1100, %v1101
      %v1103 = vrot.slane %v449, 1
      %v1104 = vrot.slane %v450, 1
      %v1105 = vsel %vm1075, %v1103, %v1104
      %v1106 = vrot.slane %v451, 1
      %v1107 = vrot.slane %v452, 1
      %v1108 = vsel %vm1075, %v1106, %v1107
      %v1109 = vrot.slane %v453, 1
      %v1110 = vrot.slane %v454, 1
      %v1111 = vsel %vm1075, %v1109, %v1110
      %v1112 = vrot.slane %v455, 1
      %v1113 = vrot.slane %v456, 1
      %v1114 = vsel %vm1075, %v1112, %v1113
      %v1115 = vrot.slane %v457, 1
      %v1116 = vrot.slane %v458, 1
      %v1117 = vsel %vm1075, %v1115, %v1116
      %v1118 = vrot.slane %v459, 1
      %v1119 = vrot.slane %v460, 1
      %v1120 = vsel %vm1075, %v1118, %v1119
      %v1121 = vrot.slane %v461, 1
      %v1122 = vrot.slane %v462, 1
      %v1123 = vsel %vm1075, %v1121, %v1122
      %v1156 = vsel %vm1075, %v1077, 0.0
      %v1157 = vsel %vm1075, %v1080, 0.0
      %v1158 = vsel %vm1075, %v1083, 0.0
      %v1159 = vsel %vm1075, %v1086, 0.0
      %v1160 = vsel %vm1075, %v1089, 0.0
      %v1161 = vsel %vm1075, %v1092, 0.0
      %v1162 = vsel %vm1075, %v1095, 0.0
      %v1163 = vsel %vm1075, %v1098, 0.0
      %v1164 = vsel %vm1075, %v1101, 0.0
      %v1165 = vsel %vm1075, %v1104, 0.0
      %v1166 = vsel %vm1075, %v1107, 0.0
      %v1167 = vsel %vm1075, %v1110, 0.0
      %v1168 = vsel %vm1075, %v1113, 0.0
      %v1169 = vsel %vm1075, %v1116, 0.0
      %v1170 = vsel %vm1075, %v1119, 0.0
      %v1171 = vsel %vm1075, %v1122, 0.0
      %v1172 = vpack.c.bf16 %v1156, %v1078
      %v1173 = vpack.c.bf16 %v1157, %v1081
      %v1174 = vpack.c.bf16 %v1158, %v1084
      %v1175 = vpack.c.bf16 %v1159, %v1087
      %v1176 = vpack.c.bf16 %v1160, %v1090
      %v1177 = vpack.c.bf16 %v1161, %v1093
      %v1178 = vpack.c.bf16 %v1162, %v1096
      %v1179 = vpack.c.bf16 %v1163, %v1099
      %v1180 = vpack.c.bf16 %v1164, %v1102
      %v1181 = vpack.c.bf16 %v1165, %v1105
      %v1182 = vpack.c.bf16 %v1166, %v1108
      %v1183 = vpack.c.bf16 %v1167, %v1111
      %v1184 = vpack.c.bf16 %v1168, %v1114
      %v1185 = vpack.c.bf16 %v1169, %v1117
      %v1186 = vpack.c.bf16 %v1170, %v1120
      %v1187 = vpack.c.bf16 %v1171, %v1123
      %s1188 = scalar_lea.vmem %s3, 128
      %v1189 = vld [vmem:[%s1188] sm:$0xf]
      %v1190 = vld [vmem:[%s1188 + $0x4] sm:$0xf]
      %v1191 = vld [vmem:[%s1188 + $0x8] sm:$0xf]
      %v1192 = vld [vmem:[%s1188 + $0xc] sm:$0xf]
      %v1193 = vld [vmem:[%s1188 + $0x10] sm:$0xf]
      %v1194 = vld [vmem:[%s1188 + $0x14] sm:$0xf]
      %v1195 = vld [vmem:[%s1188 + $0x18] sm:$0xf]
      %v1196 = vld [vmem:[%s1188 + $0x1c] sm:$0xf]
      %v1197 = vld [vmem:[%s1188 + $0x20] sm:$0xf]
      %v1198 = vld [vmem:[%s1188 + $0x24] sm:$0xf]
      %v1199 = vld [vmem:[%s1188 + $0x28] sm:$0xf]
      %v1200 = vld [vmem:[%s1188 + $0x2c] sm:$0xf]
      %v1201 = vld [vmem:[%s1188 + $0x30] sm:$0xf]
      %v1202 = vld [vmem:[%s1188 + $0x34] sm:$0xf]
      %v1203 = vld [vmem:[%s1188 + $0x38] sm:$0xf]
      %v1204 = vld [vmem:[%s1188 + $0x3c] sm:$0xf]
      %v1221 = vunpack.c.l.b16 %v1189
      %v1222 = vunpack.c.l.b16 %v1190
      %v1223 = vunpack.c.l.b16 %v1191
      %v1224 = vunpack.c.l.b16 %v1192
      %v1225 = vunpack.c.l.b16 %v1193
      %v1226 = vunpack.c.l.b16 %v1194
      %v1227 = vunpack.c.l.b16 %v1195
      %v1228 = vunpack.c.l.b16 %v1196
      %v1229 = vunpack.c.l.b16 %v1197
      %v1230 = vunpack.c.l.b16 %v1198
      %v1231 = vunpack.c.l.b16 %v1199
      %v1232 = vunpack.c.l.b16 %v1200
      %v1233 = vunpack.c.l.b16 %v1201
      %v1234 = vunpack.c.l.b16 %v1202
      %v1235 = vunpack.c.l.b16 %v1203
      %v1236 = vunpack.c.l.b16 %v1204
      %v1237 = vpack.c.b16 %v1222, %v1221
      %v1238 = vpack.c.b16 %v1224, %v1223
      %v1239 = vpack.c.b16 %v1226, %v1225
      %v1240 = vpack.c.b16 %v1228, %v1227
      %v1241 = vpack.c.b16 %v1230, %v1229
      %v1242 = vpack.c.b16 %v1232, %v1231
      %v1243 = vpack.c.b16 %v1234, %v1233
      %v1244 = vpack.c.b16 %v1236, %v1235
      %1253 = vmatprep.subr.bf16.mxu0 0
      %1254 = vmatpush1.bf16.msra.mxu0 %v1237
      %1255 = vmatprep.subr.bf16.mxu0 0
      %1256 = vmatpush1.bf16.msra.mxu0 %v1238
      %1257 = vmatprep.subr.bf16.mxu0 0
      %1258 = vmatpush1.bf16.msra.mxu0 %v1239
      %1259 = vmatprep.subr.bf16.mxu0 0
      %1260 = vmatpush1.bf16.msra.mxu0 %v1240
      %1261 = vmatprep.subr.bf16.mxu0 0
      %1262 = vmatpush1.bf16.msra.mxu0 %v1241
      %1263 = vmatprep.subr.bf16.mxu0 0
      %1264 = vmatpush1.bf16.msra.mxu0 %v1242
      %1265 = vmatprep.subr.bf16.mxu0 0
      %1266 = vmatpush1.bf16.msra.mxu0 %v1243
      %1267 = vmatprep.subr.bf16.mxu0 0
      %1268 = vmatpush1.bf16.msra.mxu0 %v1244
      %1269 = vmatprep.subr.bf16.mxu0 0
      %1270 = vmatpush1.bf16.msra.mxu0 0
      %1271 = vmatprep.subr.bf16.mxu0 0
      %1272 = vmatpush1.bf16.msra.mxu0 0
      %1273 = vmatprep.subr.bf16.mxu0 0
      %1274 = vmatpush1.bf16.msra.mxu0 0
      %1275 = vmatprep.subr.bf16.mxu0 0
      %1276 = vmatpush1.bf16.msra.mxu0 0
      %1277 = vmatprep.subr.bf16.mxu0 0
      %1278 = vmatpush1.bf16.msra.mxu0 0
      %1279 = vmatprep.subr.bf16.mxu0 0
      %1280 = vmatpush1.bf16.msra.mxu0 0
      %1281 = vmatprep.subr.bf16.mxu0 0
      %1282 = vmatpush1.bf16.msra.mxu0 0
      %1283 = vmatprep.subr.bf16.mxu0 0
      %1284 = vmatpush1.bf16.msra.mxu0 0
      %1285 = vmatprep.mubr.bf16.mxu0 0
      %1286 = vmatmul.mubr.bf16.gmra.mrb[0].mxu0 %v1172
      %v1287 = vpop.f32.mrb[0].mxu0
      %v1288 = vadd.f32 0.0, %v1287
      %v1289 = vpop.f32.mrb[0].mxu0
      %v1290 = vpop.f32.mrb[0].mxu0
      %v1291 = vadd.f32 0.0, %v1290
      %v1292 = vpop.f32.mrb[0].mxu0
      %1293 = vmatprep.mubr.bf16.mxu0 0
      %1294 = vmatmul.mubr.bf16.gmra.mrb[0].mxu0 %v1173
      %v1295 = vpop.f32.mrb[0].mxu0
      %v1296 = vadd.f32 0.0, %v1295
      %v1297 = vpop.f32.mrb[0].mxu0
      %v1298 = vpop.f32.mrb[0].mxu0
      %v1299 = vadd.f32 0.0, %v1298
      %v1300 = vpop.f32.mrb[0].mxu0
      %1301 = vmatprep.mubr.bf16.mxu0 0
      %1302 = vmatmul.mubr.bf16.gmra.mrb[0].mxu0 %v1174
      %v1303 = vpop.f32.mrb[0].mxu0
      %v1304 = vadd.f32 0.0, %v1303
      %v1305 = vpop.f32.mrb[0].mxu0
      %v1306 = vpop.f32.mrb[0].mxu0
      %v1307 = vadd.f32 0.0, %v1306
      %v1308 = vpop.f32.mrb[0].mxu0
      %1309 = vmatprep.mubr.bf16.mxu0 0
      %1310 = vmatmul.mubr.bf16.gmra.mrb[0].mxu0 %v1175
      %v1311 = vpop.f32.mrb[0].mxu0
      %v1312 = vadd.f32 0.0, %v1311
      %v1313 = vpop.f32.mrb[0].mxu0
      %v1314 = vpop.f32.mrb[0].mxu0
      %v1315 = vadd.f32 0.0, %v1314
      %v1316 = vpop.f32.mrb[0].mxu0
      %1317 = vmatprep.mubr.bf16.mxu0 0
      %1318 = vmatmul.mubr.bf16.gmra.mrb[0].mxu0 %v1176
      %v1319 = vpop.f32.mrb[0].mxu0
      %v1320 = vadd.f32 0.0, %v1319
      %v1321 = vpop.f32.mrb[0].mxu0
      %v1322 = vpop.f32.mrb[0].mxu0
      %v1323 = vadd.f32 0.0, %v1322
      %v1324 = vpop.f32.mrb[0].mxu0
      %1325 = vmatprep.mubr.bf16.mxu0 0
      %1326 = vmatmul.mubr.bf16.gmra.mrb[0].mxu0 %v1177
      %v1327 = vpop.f32.mrb[0].mxu0
      %v1328 = vadd.f32 0.0, %v1327
      %v1329 = vpop.f32.mrb[0].mxu0
      %v1330 = vpop.f32.mrb[0].mxu0
      %v1331 = vadd.f32 0.0, %v1330
      %v1332 = vpop.f32.mrb[0].mxu0
      %1333 = vmatprep.mubr.bf16.mxu0 0
      %1334 = vmatmul.mubr.bf16.gmra.mrb[0].mxu0 %v1178
      %v1335 = vpop.f32.mrb[0].mxu0
      %v1336 = vadd.f32 0.0, %v1335
      %v1337 = vpop.f32.mrb[0].mxu0
      %v1338 = vpop.f32.mrb[0].mxu0
      %v1339 = vadd.f32 0.0, %v1338
      %v1340 = vpop.f32.mrb[0].mxu0
      %1341 = vmatprep.mubr.bf16.mxu0 0
      %1342 = vmatmul.mubr.bf16.gmra.mrb[0].mxu0 %v1179
      %v1343 = vpop.f32.mrb[0].mxu0
      %v1344 = vadd.f32 0.0, %v1343
      %v1345 = vpop.f32.mrb[0].mxu0
      %v1346 = vpop.f32.mrb[0].mxu0
      %v1347 = vadd.f32 0.0, %v1346
      %v1348 = vpop.f32.mrb[0].mxu0
      %1349 = vmatprep.mubr.bf16.mxu0 0
      %1350 = vmatmul.mubr.bf16.gmra.mrb[0].mxu0 %v1180
      %v1351 = vpop.f32.mrb[0].mxu0
      %v1352 = vadd.f32 0.0, %v1351
      %v1353 = vpop.f32.mrb[0].mxu0
      %v1354 = vpop.f32.mrb[0].mxu0
      %v1355 = vadd.f32 0.0, %v1354
      %v1356 = vpop.f32.mrb[0].mxu0
      %1357 = vmatprep.mubr.bf16.mxu0 0
      %1358 = vmatmul.mubr.bf16.gmra.mrb[0].mxu0 %v1181
      %v1359 = vpop.f32.mrb[0].mxu0
      %v1360 = vadd.f32 0.0, %v1359
      %v1361 = vpop.f32.mrb[0].mxu0
      %v1362 = vpop.f32.mrb[0].mxu0
      %v1363 = vadd.f32 0.0, %v1362
      %v1364 = vpop.f32.mrb[0].mxu0
      %1365 = vmatprep.mubr.bf16.mxu0 0
      %1366 = vmatmul.mubr.bf16.gmra.mrb[0].mxu0 %v1182
      %v1367 = vpop.f32.mrb[0].mxu0
      %v1368 = vadd.f32 0.0, %v1367
      %v1369 = vpop.f32.mrb[0].mxu0
      %v1370 = vpop.f32.mrb[0].mxu0
      %v1371 = vadd.f32 0.0, %v1370
      %v1372 = vpop.f32.mrb[0].mxu0
      %1373 = vmatprep.mubr.bf16.mxu0 0
      %1374 = vmatmul.mubr.bf16.gmra.mrb[0].mxu0 %v1183
      %v1375 = vpop.f32.mrb[0].mxu0
      %v1376 = vadd.f32 0.0, %v1375
      %v1377 = vpop.f32.mrb[0].mxu0
      %v1378 = vpop.f32.mrb[0].mxu0
      %v1379 = vadd.f32 0.0, %v1378
      %v1380 = vpop.f32.mrb[0].mxu0
      %1381 = vmatprep.mubr.bf16.mxu0 0
      %1382 = vmatmul.mubr.bf16.gmra.mrb[0].mxu0 %v1184
      %v1383 = vpop.f32.mrb[0].mxu0
      %v1384 = vadd.f32 0.0, %v1383
      %v1385 = vpop.f32.mrb[0].mxu0
      %v1386 = vpop.f32.mrb[0].mxu0
      %v1387 = vadd.f32 0.0, %v1386
      %v1388 = vpop.f32.mrb[0].mxu0
      %1389 = vmatprep.mubr.bf16.mxu0 0
      %1390 = vmatmul.mubr.bf16.gmra.mrb[0].mxu0 %v1185
      %v1391 = vpop.f32.mrb[0].mxu0
      %v1392 = vadd.f32 0.0, %v1391
      %v1393 = vpop.f32.mrb[0].mxu0
      %v1394 = vpop.f32.mrb[0].mxu0
      %v1395 = vadd.f32 0.0, %v1394
      %v1396 = vpop.f32.mrb[0].mxu0
      %1397 = vmatprep.mubr.bf16.mxu0 0
      %1398 = vmatmul.mubr.bf16.gmra.mrb[0].mxu0 %v1186
      %v1399 = vpop.f32.mrb[0].mxu0
      %v1400 = vadd.f32 0.0, %v1399
      %v1401 = vpop.f32.mrb[0].mxu0
      %v1402 = vpop.f32.mrb[0].mxu0
      %v1403 = vadd.f32 0.0, %v1402
      %v1404 = vpop.f32.mrb[0].mxu0
      %1405 = vmatprep.mubr.bf16.mxu0 0
      %1406 = vmatmul.mubr.bf16.gmra.mrb[0].mxu0 %v1187
      %v1407 = vpop.f32.mrb[0].mxu0
      %v1408 = vadd.f32 0.0, %v1407
      %v1409 = vpop.f32.mrb[0].mxu0
      %v1410 = vpop.f32.mrb[0].mxu0
      %v1411 = vadd.f32 0.0, %v1410
      %v1412 = vpop.f32.mrb[0].mxu0
      %1413 = vdwg.mxu0
      %v1414 = vadd.f32 %v949, %v1288
      %v1415 = vadd.f32 %v952, %v1291
      %v1416 = vadd.f32 %v957, %v1296
      %v1417 = vadd.f32 %v960, %v1299
      %v1418 = vadd.f32 %v965, %v1304
      %v1419 = vadd.f32 %v968, %v1307
      %v1420 = vadd.f32 %v973, %v1312
      %v1421 = vadd.f32 %v976, %v1315
      %v1422 = vadd.f32 %v981, %v1320
      %v1423 = vadd.f32 %v984, %v1323
      %v1424 = vadd.f32 %v989, %v1328
      %v1425 = vadd.f32 %v992, %v1331
      %v1426 = vadd.f32 %v997, %v1336
      %v1427 = vadd.f32 %v1000, %v1339
      %v1428 = vadd.f32 %v1005, %v1344
      %v1429 = vadd.f32 %v1008, %v1347
      %v1430 = vadd.f32 %v1013, %v1352
      %v1431 = vadd.f32 %v1016, %v1355
      %v1432 = vadd.f32 %v1021, %v1360
      %v1433 = vadd.f32 %v1024, %v1363
      %v1434 = vadd.f32 %v1029, %v1368
      %v1435 = vadd.f32 %v1032, %v1371
      %v1436 = vadd.f32 %v1037, %v1376
      %v1437 = vadd.f32 %v1040, %v1379
      %v1438 = vadd.f32 %v1045, %v1384
      %v1439 = vadd.f32 %v1048, %v1387
      %v1440 = vadd.f32 %v1053, %v1392
      %v1441 = vadd.f32 %v1056, %v1395
      %v1442 = vadd.f32 %v1061, %v1400
      %v1443 = vadd.f32 %v1064, %v1403
      %v1444 = vadd.f32 %v1069, %v1408
      %v1445 = vadd.f32 %v1072, %v1411
      %v1446 = vpack.c.bf16 %v1415, %v1414
      %v1447 = vpack.c.bf16 %v1417, %v1416
      %v1448 = vpack.c.bf16 %v1419, %v1418
      %v1449 = vpack.c.bf16 %v1421, %v1420
      %v1450 = vpack.c.bf16 %v1423, %v1422
      %v1451 = vpack.c.bf16 %v1425, %v1424
      %v1452 = vpack.c.bf16 %v1427, %v1426
      %v1453 = vpack.c.bf16 %v1429, %v1428
      %v1454 = vpack.c.bf16 %v1431, %v1430
      %v1455 = vpack.c.bf16 %v1433, %v1432
      %v1456 = vpack.c.bf16 %v1435, %v1434
      %v1457 = vpack.c.bf16 %v1437, %v1436
      %v1458 = vpack.c.bf16 %v1439, %v1438
      %v1459 = vpack.c.bf16 %v1441, %v1440
      %v1460 = vpack.c.bf16 %v1443, %v1442
      %v1461 = vpack.c.bf16 %v1445, %v1444
      %v1478 = vunpack.c.l.b16 %v1446
      %v1479 = vunpack.c.h.b16 %v1446
      %v1480 = vunpack.c.l.b16 %v1447
      %v1481 = vunpack.c.h.b16 %v1447
      %v1482 = vunpack.c.l.b16 %v1448
      %v1483 = vunpack.c.h.b16 %v1448
      %v1484 = vunpack.c.l.b16 %v1449
      %v1485 = vunpack.c.h.b16 %v1449
      %v1486 = vunpack.c.l.b16 %v1450
      %v1487 = vunpack.c.h.b16 %v1450
      %v1488 = vunpack.c.l.b16 %v1451
      %v1489 = vunpack.c.h.b16 %v1451
      %v1490 = vunpack.c.l.b16 %v1452
      %v1491 = vunpack.c.h.b16 %v1452
      %v1492 = vunpack.c.l.b16 %v1453
      %v1493 = vunpack.c.h.b16 %v1453
      %v1494 = vunpack.c.l.b16 %v1454
      %v1495 = vunpack.c.h.b16 %v1454
      %v1496 = vunpack.c.l.b16 %v1455
      %v1497 = vunpack.c.h.b16 %v1455
      %v1498 = vunpack.c.l.b16 %v1456
      %v1499 = vunpack.c.h.b16 %v1456
      %v1500 = vunpack.c.l.b16 %v1457
      %v1501 = vunpack.c.h.b16 %v1457
      %v1502 = vunpack.c.l.b16 %v1458
      %v1503 = vunpack.c.h.b16 %v1458
      %v1504 = vunpack.c.l.b16 %v1459
      %v1505 = vunpack.c.h.b16 %v1459
      %v1506 = vunpack.c.l.b16 %v1460
      %v1507 = vunpack.c.h.b16 %v1460
      %v1508 = vunpack.c.l.b16 %v1461
      %v1509 = vunpack.c.h.b16 %v1461
      %v1510 = vpack.c.b16 %v1478, %v1478
      %v1511 = vpack.c.b16 %v1479, %v1479
      %v1512 = vpack.c.b16 %v1480, %v1480
      %v1513 = vpack.c.b16 %v1481, %v1481
      %v1514 = vpack.c.b16 %v1482, %v1482
      %v1515 = vpack.c.b16 %v1483, %v1483
      %v1516 = vpack.c.b16 %v1484, %v1484
      %v1517 = vpack.c.b16 %v1485, %v1485
      %v1518 = vpack.c.b16 %v1486, %v1486
      %v1519 = vpack.c.b16 %v1487, %v1487
      %v1520 = vpack.c.b16 %v1488, %v1488
      %v1521 = vpack.c.b16 %v1489, %v1489
      %v1522 = vpack.c.b16 %v1490, %v1490
      %v1523 = vpack.c.b16 %v1491, %v1491
      %v1524 = vpack.c.b16 %v1492, %v1492
      %v1525 = vpack.c.b16 %v1493, %v1493
      %v1526 = vpack.c.b16 %v1494, %v1494
      %v1527 = vpack.c.b16 %v1495, %v1495
      %v1528 = vpack.c.b16 %v1496, %v1496
      %v1529 = vpack.c.b16 %v1497, %v1497
      %v1530 = vpack.c.b16 %v1498, %v1498
      %v1531 = vpack.c.b16 %v1499, %v1499
      %v1532 = vpack.c.b16 %v1500, %v1500
      %v1533 = vpack.c.b16 %v1501, %v1501
      %v1534 = vpack.c.b16 %v1502, %v1502
      %v1535 = vpack.c.b16 %v1503, %v1503
      %v1536 = vpack.c.b16 %v1504, %v1504
      %v1537 = vpack.c.b16 %v1505, %v1505
      %v1538 = vpack.c.b16 %v1506, %v1506
      %v1539 = vpack.c.b16 %v1507, %v1507
      %v1540 = vpack.c.b16 %v1508, %v1508
      %v1541 = vpack.c.b16 %v1509, %v1509
      %1574 = vst [vmem:[%s279] sm:$0xf] %v1510
      %1575 = vst [vmem:[%s279 + $0x4] sm:$0xf] %v1511
      %1576 = vst [vmem:[%s279 + $0x8] sm:$0xf] %v1512
      %1577 = vst [vmem:[%s279 + $0xc] sm:$0xf] %v1513
      %1578 = vst [vmem:[%s279 + $0x10] sm:$0xf] %v1514
      %1579 = vst [vmem:[%s279 + $0x14] sm:$0xf] %v1515
      %1580 = vst [vmem:[%s279 + $0x18] sm:$0xf] %v1516
      %1581 = vst [vmem:[%s279 + $0x1c] sm:$0xf] %v1517
      %1582 = vst [vmem:[%s279 + $0x20] sm:$0xf] %v1518
      %1583 = vst [vmem:[%s279 + $0x24] sm:$0xf] %v1519
      %1584 = vst [vmem:[%s279 + $0x28] sm:$0xf] %v1520
      %1585 = vst [vmem:[%s279 + $0x2c] sm:$0xf] %v1521
      %1586 = vst [vmem:[%s279 + $0x30] sm:$0xf] %v1522
      %1587 = vst [vmem:[%s279 + $0x34] sm:$0xf] %v1523
      %1588 = vst [vmem:[%s279 + $0x38] sm:$0xf] %v1524
      %1589 = vst [vmem:[%s279 + $0x3c] sm:$0xf] %v1525
      %1590 = vst [vmem:[%s279 + $0x40] sm:$0xf] %v1526
      %1591 = vst [vmem:[%s279 + $0x44] sm:$0xf] %v1527
      %1592 = vst [vmem:[%s279 + $0x48] sm:$0xf] %v1528
      %1593 = vst [vmem:[%s279 + $0x4c] sm:$0xf] %v1529
      %1594 = vst [vmem:[%s279 + $0x50] sm:$0xf] %v1530
      %1595 = vst [vmem:[%s279 + $0x54] sm:$0xf] %v1531
      %1596 = vst [vmem:[%s279 + $0x58] sm:$0xf] %v1532
      %1597 = vst [vmem:[%s279 + $0x5c] sm:$0xf] %v1533
      %1598 = vst [vmem:[%s279 + $0x60] sm:$0xf] %v1534
      %1599 = vst [vmem:[%s279 + $0x64] sm:$0xf] %v1535
      %1600 = vst [vmem:[%s279 + $0x68] sm:$0xf] %v1536
      %1601 = vst [vmem:[%s279 + $0x6c] sm:$0xf] %v1537
      %1602 = vst [vmem:[%s279 + $0x70] sm:$0xf] %v1538
      %1603 = vst [vmem:[%s279 + $0x74] sm:$0xf] %v1539
      %1604 = vst [vmem:[%s279 + $0x78] sm:$0xf] %v1540
      %1605 = vst [vmem:[%s279 + $0x7c] sm:$0xf] %v1541
      %v1606 = vadd.f32 %v1414, %v1415
      %v1607 = vadd.f32 %v1606, %v1416
      %v1608 = vadd.f32 %v1607, %v1417
      %v1609 = vadd.f32 %v1608, %v1418
      %v1610 = vadd.f32 %v1609, %v1419
      %v1611 = vadd.f32 %v1610, %v1420
      %v1612 = vadd.f32 %v1611, %v1421
      %v1613 = vadd.f32 %v1612, %v1422
      %v1614 = vadd.f32 %v1613, %v1423
      %v1615 = vadd.f32 %v1614, %v1424
      %v1616 = vadd.f32 %v1615, %v1425
      %v1617 = vadd.f32 %v1616, %v1426
      %v1618 = vadd.f32 %v1617, %v1427
      %v1619 = vadd.f32 %v1618, %v1428
      %v1620 = vadd.f32 %v1619, %v1429
      %v1621 = vadd.f32 %v1620, %v1430
      %v1622 = vadd.f32 %v1621, %v1431
      %v1623 = vadd.f32 %v1622, %v1432
      %v1624 = vadd.f32 %v1623, %v1433
      %v1625 = vadd.f32 %v1624, %v1434
      %v1626 = vadd.f32 %v1625, %v1435
      %v1627 = vadd.f32 %v1626, %v1436
      %v1628 = vadd.f32 %v1627, %v1437
      %v1629 = vadd.f32 %v1628, %v1438
      %v1630 = vadd.f32 %v1629, %v1439
      %v1631 = vadd.f32 %v1630, %v1440
      %v1632 = vadd.f32 %v1631, %v1441
      %v1633 = vadd.f32 %v1632, %v1442
      %v1634 = vadd.f32 %v1633, %v1443
      %v1635 = vadd.f32 %v1634, %v1444
      %v1636 = vadd.f32 %v1635, %v1445
      %v1637 = vrot.slane %v1636, 4
      %v1638 = vadd.f32 %v1636, %v1637
      %v1639 = vrot.slane %v1638, 2
      %v1640 = vadd.f32 %v1638, %v1639
      %v1641 = vrot.slane %v1640, 1
      %v1642 = vadd.f32 %v1640, %v1641
      %v1643 = vmul.f32 %v1414, %v1414
      %v1644 = vmul.f32 %v1415, %v1415
      %v1645 = vmul.f32 %v1416, %v1416
      %v1646 = vmul.f32 %v1417, %v1417
      %v1647 = vmul.f32 %v1418, %v1418
      %v1648 = vmul.f32 %v1419, %v1419
      %v1649 = vmul.f32 %v1420, %v1420
      %v1650 = vmul.f32 %v1421, %v1421
      %v1651 = vmul.f32 %v1422, %v1422
      %v1652 = vmul.f32 %v1423, %v1423
      %v1653 = vmul.f32 %v1424, %v1424
      %v1654 = vmul.f32 %v1425, %v1425
      %v1655 = vmul.f32 %v1426, %v1426
      %v1656 = vmul.f32 %v1427, %v1427
      %v1657 = vmul.f32 %v1428, %v1428
      %v1658 = vmul.f32 %v1429, %v1429
      %v1659 = vmul.f32 %v1430, %v1430
      %v1660 = vmul.f32 %v1431, %v1431
      %v1661 = vmul.f32 %v1432, %v1432
      %v1662 = vmul.f32 %v1433, %v1433
      %v1663 = vmul.f32 %v1434, %v1434
      %v1664 = vmul.f32 %v1435, %v1435
      %v1665 = vmul.f32 %v1436, %v1436
      %v1666 = vmul.f32 %v1437, %v1437
      %v1667 = vmul.f32 %v1438, %v1438
      %v1668 = vmul.f32 %v1439, %v1439
      %v1669 = vmul.f32 %v1440, %v1440
      %v1670 = vmul.f32 %v1441, %v1441
      %v1671 = vmul.f32 %v1442, %v1442
      %v1672 = vmul.f32 %v1443, %v1443
      %v1673 = vmul.f32 %v1444, %v1444
      %v1674 = vmul.f32 %v1445, %v1445
      %v1675 = vadd.f32 %v1643, %v1644
      %v1676 = vadd.f32 %v1675, %v1645
      %v1677 = vadd.f32 %v1676, %v1646
      %v1678 = vadd.f32 %v1677, %v1647
      %v1679 = vadd.f32 %v1678, %v1648
      %v1680 = vadd.f32 %v1679, %v1649
      %v1681 = vadd.f32 %v1680, %v1650
      %v1682 = vadd.f32 %v1681, %v1651
      %v1683 = vadd.f32 %v1682, %v1652
      %v1684 = vadd.f32 %v1683, %v1653
      %v1685 = vadd.f32 %v1684, %v1654
      %v1686 = vadd.f32 %v1685, %v1655
      %v1687 = vadd.f32 %v1686, %v1656
      %v1688 = vadd.f32 %v1687, %v1657
      %v1689 = vadd.f32 %v1688, %v1658
      %v1690 = vadd.f32 %v1689, %v1659
      %v1691 = vadd.f32 %v1690, %v1660
      %v1692 = vadd.f32 %v1691, %v1661
      %v1693 = vadd.f32 %v1692, %v1662
      %v1694 = vadd.f32 %v1693, %v1663
      %v1695 = vadd.f32 %v1694, %v1664
      %v1696 = vadd.f32 %v1695, %v1665
      %v1697 = vadd.f32 %v1696, %v1666
      %v1698 = vadd.f32 %v1697, %v1667
      %v1699 = vadd.f32 %v1698, %v1668
      %v1700 = vadd.f32 %v1699, %v1669
      %v1701 = vadd.f32 %v1700, %v1670
      %v1702 = vadd.f32 %v1701, %v1671
      %v1703 = vadd.f32 %v1702, %v1672
      %v1704 = vadd.f32 %v1703, %v1673
      %v1705 = vadd.f32 %v1704, %v1674
      %v1706 = vrot.slane %v1705, 4
      %v1707 = vadd.f32 %v1705, %v1706
      %v1708 = vrot.slane %v1707, 2
      %v1709 = vadd.f32 %v1707, %v1708
      %v1710 = vrot.slane %v1709, 1
      %v1711 = vadd.f32 %v1709, %v1710
      %v1712 = vsel %vm495, %v1642, %v1711
      %1713 = vst [vmem:[%s287] sm:$0x3] %v1712
      %s1714 = smul.u32 16, %s22
      %p1715 = scmp.lt.s32.totalorder %s21, 1
      %s1716 = scalar_select %p1715, %s21, 1
      %p1717 = scmp.lt.s32.totalorder %s1714, 15
      %s1718 = scalar_select %p1717, %s1714, 15
      %s1719 = smul.addr %s1718, 2
      %s1720 = smul.addr %s1716, 32
      %s1721 = sadd.s32 %s1719, %s1720
      %s1722 = smul.addr %s1721, 4
      %s1723 = scalar_lea.vmem %s4, %s1722
      %p1724 = scmp.lt.s32.totalorder %s21, 1
      %s1725 = scalar_select %p1724, %s21, 1
      %p1726 = scmp.lt.s32.totalorder %s22, 0
      %s1727 = scalar_select %p1726, %s22, 0
      %s1728 = sadd.s32 %s1727, %s1725
      %s1729 = smul.addr %s1728, 2
      %s1730 = scalar_lea.vmem %s5, %s1729
      // Predicated region
      $region37: #{_lambda_.3} parent=35 // pred_check
        %p1731 = pneg %p140
      $region38: #{_lambda_.3} parent=35 // pred_check_branch
        %1733 = sbr.rel (%p1731) target = $region40
      $region39: #{_lambda_.3} parent=35 // pred_region
        %s1734 = smul.u32 16, %s22
      $region40: #{_lambda_.3} parent=35 // pred_fallthru
        _
      // Predicated region
      $region41: #{_lambda_.3} parent=35 // pred_check
        %p1735 = pneg %p168
      $region42: #{_lambda_.3} parent=35 // pred_check_branch
        %1737 = sbr.rel (%p1735) target = $region44
      $region43: #{_lambda_.3} parent=35 // pred_region
        _
      $region44: #{_lambda_.3} parent=35 // pred_fallthru
        _
    $region36: #{_lambda_.3} parent=5 // pred_fallthru
      _
    %p1738 = scmp.le.s32.totalorder 2, %s12
    // Predicated region
    $region45: #{_lambda_.3} parent=5 // pred_check
      %p1739 = pneg %p1738
    $region46: #{_lambda_.3} parent=5 // pred_check_branch
      %1741 = sbr.rel (%p1739) target = $region48
    $region47: #{_lambda_.3} parent=5 // pred_region
      %s1742 = ssub.s32 %s12, 2
      // Predicated region
      $region49: #{_lambda_.3} parent=47 // pred_check
        %p1743 = pneg %p146
      $region50: #{_lambda_.3} parent=47 // pred_check_branch
        %1745 = sbr.rel (%p1743) target = $region52
      $region51: #{_lambda_.3} parent=47 // pred_region
        %s1746 = smul.u32 16, %s24
        %p1747 = scmp.lt.s32.totalorder %s23, 1
        %s1748 = scalar_select %p1747, %s23, 1
        %p1749 = scmp.lt.s32.totalorder %s1746, 15
        %s1750 = scalar_select %p1749, %s1746, 15
        %s1751 = smul.addr %s1750, 2
        %s1752 = smul.addr %s1748, 32
        %s1753 = sadd.s32 %s1751, %s1752
        %s1754 = smul.addr %s1753, 4
        %s1755 = scalar_lea.vmem %s4, %s1754
      $region52: #{_lambda_.3} parent=47 // pred_fallthru
        _
      // Predicated region
      $region53: #{_lambda_.3} parent=47 // pred_check
        %p1756 = pneg %p174
      $region54: #{_lambda_.3} parent=47 // pred_check_branch
        %1758 = sbr.rel (%p1756) target = $region56
      $region55: #{_lambda_.3} parent=47 // pred_region
        %p1759 = scmp.lt.s32.totalorder %s23, 1
        %s1760 = scalar_select %p1759, %s23, 1
        %p1761 = scmp.lt.s32.totalorder %s24, 0
        %s1762 = scalar_select %p1761, %s24, 0
        %s1763 = sadd.s32 %s1762, %s1760
        %s1764 = smul.addr %s1763, 2
        %s1765 = scalar_lea.vmem %s5, %s1764
      $region56: #{_lambda_.3} parent=47 // pred_fallthru
        _
    $region48: #{_lambda_.3} parent=5 // pred_fallthru
      _
  $region6: #{_lambda_.3} parent=0 // loop_footer
    %s16 = sadd.s32 1, %s12
  $region7: #{_lambda_.3} parent=0 // loop_footer_branch
    %11 = sbr.rel target = $region3
  $region8: #{_lambda_.3} parent=0 // loop_exit
    _

</llo_original>
